<compile_context>
chip_gen: v7x
topology: tpu7x:2x2x1
jax: 0.10.0
libtpu: 0.0.40
codegen_flags: <defaults>
</compile_context>

<pallas_src>
import functools

import jax
import jax.numpy as jnp
from jax.experimental import pallas as pl
from jax.experimental.pallas import tpu as pltpu

C_IN = 4     # in_channels of the module
C_HID = 32   # hidden channels


def _noise_level_kernel(x_ref, w1_ref, b1_ref, w2_ref, b2_ref, w3_ref, b3_ref,
                        mask_ref, out_ref, gbuf, *, pp, margin, offs):
    """One image per grid step.

    x_ref   : (1, C_IN, Pp)   zero-padded image, flattened (Hp*Wp) on lanes
    w*_ref  : (9*C_out, C_in) packed conv weights (row = tap*C_out + c_out)
    b*_ref  : (C_out, 1)
    mask_ref: (1, Pp)  1.0 on interior pixels, 0.0 on the 1-pixel border
    out_ref : (1, 1, Pp)
    gbuf    : (9*C_HID, 2*margin + Pp) f32 VMEM scratch for tap-shift reads
    """
    x = x_ref[0].astype(jnp.float32)          # (C_IN, Pp)
    interior = mask_ref[...] > 0.5            # (1, Pp) bool

    def conv3x3(inp, w_ref, b_ref, c_out):
        # inp: (c_in, Pp) with an exactly-zero border.
        # One matmul covers all 9 taps and all output channels.
        g = jnp.dot(w_ref[...], inp, preferred_element_type=jnp.float32)
        gbuf[0:9 * c_out, margin:margin + pp] = g       # lane-aligned store
        acc = jnp.broadcast_to(b_ref[...].astype(jnp.float32), (c_out, pp))
        for k, off in enumerate(offs):                   # 9 lane-shifted adds
            start = margin + off
            acc = acc + gbuf[k * c_out:(k + 1) * c_out, start:start + pp]
        return acc

    h = conv3x3(x, w1_ref, b1_ref, C_HID)
    h = jnp.where(interior, jnp.maximum(h, 0.0), 0.0)    # ReLU + zero border
    h = conv3x3(h, w2_ref, b2_ref, C_HID)
    h = jnp.where(interior, jnp.maximum(h, 0.0), 0.0)    # ReLU + zero border
    s = conv3x3(h, w3_ref, b3_ref, 1)
    out_ref[0] = jnp.where(interior, jax.nn.sigmoid(s), 0.0).astype(out_ref.dtype)


def noise_level_network(x_nchw, w1, b1, w2, b2, w3, b3):
    """x_nchw: (N, 4, H, W) f32; weights in PyTorch Conv2d layout.
    Returns (N, 1, H, W)."""
    N, C, H, W = x_nchw.shape
    assert C == C_IN
    Hp, Wp = H + 2, W + 2
    Pp = Hp * Wp
    margin = ((Wp + 1 + 127) // 128) * 128       # lane-tile aligned, >= Wp+1
    assert margin >= Wp + 1
    L = Pp + 2 * margin
    # tap k = (dy+1)*3 + (dx+1); flat-index offset for that tap
    offs = tuple(dy * Wp + dx for dy in (-1, 0, 1) for dx in (-1, 0, 1))

    # Zero-pad once in the wrapper; flatten padded spatial onto the lane axis.
    xp = jnp.pad(x_nchw.astype(jnp.float32),
                 ((0, 0), (0, 0), (1, 1), (1, 1))).reshape(N, C_IN, Pp)

    def pack(w):  # (C_out, C_in, 3, 3) -> (9*C_out, C_in), row = tap*C_out + co
        co, ci = w.shape[0], w.shape[1]
        return jnp.transpose(w, (2, 3, 0, 1)).reshape(9 * co, ci).astype(jnp.float32)

    w1p, w2p, w3p = pack(w1), pack(w2), pack(w3)
    b1p = b1.reshape(C_HID, 1).astype(jnp.float32)
    b2p = b2.reshape(C_HID, 1).astype(jnp.float32)
    b3p = b3.reshape(1, 1).astype(jnp.float32)

    yy, xx = jnp.meshgrid(jnp.arange(Hp), jnp.arange(Wp), indexing="ij")
    mask = ((yy >= 1) & (yy <= H) & (xx >= 1) & (xx <= W)
            ).reshape(1, Pp).astype(jnp.float32)

    kernel = functools.partial(_noise_level_kernel,
                               pp=Pp, margin=margin, offs=offs)

    out_flat = pl.pallas_call(
        kernel,
        out_shape=jax.ShapeDtypeStruct((N, 1, Pp), jnp.float32),
        grid_spec=pltpu.PrefetchScalarGridSpec(
            num_scalar_prefetch=0,
            grid=(N,),
            in_specs=[
                pl.BlockSpec((1, C_IN, Pp), lambda n: (n, 0, 0)),
                pl.BlockSpec((9 * C_HID, C_IN), lambda n: (0, 0)),
                pl.BlockSpec((C_HID, 1), lambda n: (0, 0)),
                pl.BlockSpec((9 * C_HID, C_HID), lambda n: (0, 0)),
                pl.BlockSpec((C_HID, 1), lambda n: (0, 0)),
                pl.BlockSpec((9, C_HID), lambda n: (0, 0)),
                pl.BlockSpec((1, 1), lambda n: (0, 0)),
                pl.BlockSpec((1, Pp), lambda n: (0, 0)),
            ],
            out_specs=pl.BlockSpec((1, 1, Pp), lambda n: (n, 0, 0)),
            scratch_shapes=[pltpu.VMEM((9 * C_HID, L), jnp.float32)],
        ),
        compiler_params=pltpu.CompilerParams(
            dimension_semantics=("parallel",)),
    )(xp, w1p, b1p, w2p, b2p, w3p, b3p, mask)

    # Drop the padding border; back to (N, 1, H, W).
    return out_flat.reshape(N, 1, Hp, Wp)[:, :, 1:H + 1, 1:W + 1]


def reference_jax(x, w1, b1, w2, b2, w3, b3):
    """Pure-JAX reference mirroring the PyTorch forward (NCHW)."""
    dn = ('NCHW', 'OIHW', 'NCHW')
    h = jax.lax.conv_general_dilated(x, w1, (1, 1), ((1, 1), (1, 1)),
                                     dimension_numbers=dn)
    h = jnp.maximum(h + b1[None, :, None, None], 0.0)
    h = jax.lax.conv_general_dilated(h, w2, (1, 1), ((1, 1), (1, 1)),
                                     dimension_numbers=dn)
    h = jnp.maximum(h + b2[None, :, None, None], 0.0)
    s = jax.lax.conv_general_dilated(h, w3, (1, 1), ((1, 1), (1, 1)),
                                     dimension_numbers=dn)
    s = s + b3[None, :, None, None]
    return jax.nn.sigmoid(s)


if __name__ == "__main__":
    key = jax.random.PRNGKey(0)
    kx, k1, k2, k3, k4, k5, k6 = jax.random.split(key, 7)

    N, C, H, W = 2, 4, 16, 16
    x = jax.random.normal(kx, (N, C, H, W), jnp.float32)

    # deterministic synthetic parameters (shapes from nn.Conv2d in __init__)
    w1 = 0.1 * jax.random.normal(k1, (C_HID, C_IN, 3, 3), jnp.float32)
    b1 = 0.1 * jax.random.normal(k2, (C_HID,), jnp.float32)
    w2 = 0.1 * jax.random.normal(k3, (C_HID, C_HID, 3, 3), jnp.float32)
    b2 = 0.1 * jax.random.normal(k4, (C_HID,), jnp.float32)
    w3 = 0.1 * jax.random.normal(k5, (1, C_HID, 3, 3), jnp.float32)
    b3 = 0.1 * jax.random.normal(k6, (1,), jnp.float32)

    out = noise_level_network(x, w1, b1, w2, b2, w3, b3)
    out = jax.block_until_ready(out)

    ref = reference_jax(x, w1, b1, w2, b2, w3, b3)
    assert out.shape == (N, 1, H, W) and out.dtype == jnp.float32
    assert jnp.allclose(out, ref, atol=1e-4, rtol=1e-4), (
        float(jnp.max(jnp.abs(out - ref))))

    print("KERNEL_OK")
</pallas_src>

<mosaic_0001>
module attributes {stable_mosaic.version = 11 : i64} {
  func.func @_noise_level_kernel(%arg0: i32, %arg1: memref<1x4x324xf32, #tpu.memory_space<vmem>>, %arg2: memref<288x4xf32, #tpu.memory_space<vmem>>, %arg3: memref<32x1xf32, #tpu.memory_space<vmem>>, %arg4: memref<288x32xf32, #tpu.memory_space<vmem>>, %arg5: memref<32x1xf32, #tpu.memory_space<vmem>>, %arg6: memref<9x32xf32, #tpu.memory_space<vmem>>, %arg7: memref<1x1xf32, #tpu.memory_space<vmem>>, %arg8: memref<1x324xf32, #tpu.memory_space<vmem>>, %arg9: memref<1x1x324xf32, #tpu.memory_space<vmem>>, %arg10: memref<288x580xf32, #tpu.memory_space<vmem>>) attributes {dimension_semantics = [#tpu.dimension_semantics<parallel>], iteration_bounds = array<i64: 2>, scalar_prefetch = 0 : i64, scratch_operands = 1 : i64, tpu.core_type = #tpu.core_type<tc>, window_params = [{transform_indices = @transform_0, window_bounds = array<i64: 1, 4, 324>}, {pipeline_mode = #tpu.pipeline_mode<synchronous>, transform_indices = @transform_1, window_bounds = array<i64: 288, 4>}, {pipeline_mode = #tpu.pipeline_mode<synchronous>, transform_indices = @transform_2, window_bounds = array<i64: 32, 1>}, {pipeline_mode = #tpu.pipeline_mode<synchronous>, transform_indices = @transform_3, window_bounds = array<i64: 288, 32>}, {pipeline_mode = #tpu.pipeline_mode<synchronous>, transform_indices = @transform_4, window_bounds = array<i64: 32, 1>}, {pipeline_mode = #tpu.pipeline_mode<synchronous>, transform_indices = @transform_5, window_bounds = array<i64: 9, 32>}, {pipeline_mode = #tpu.pipeline_mode<synchronous>, transform_indices = @transform_6, window_bounds = array<i64: 1, 1>}, {pipeline_mode = #tpu.pipeline_mode<synchronous>, transform_indices = @transform_7, window_bounds = array<i64: 1, 324>}, {transform_indices = @transform_8, window_bounds = array<i64: 1, 1, 324>}]} {
    %c0 = arith.constant 0 : index
    %c0_0 = arith.constant 0 : index
    %c0_1 = arith.constant 0 : index
    %0 = vector.load %arg1[%c0, %c0_0, %c0_1] : memref<1x4x324xf32, #tpu.memory_space<vmem>>, vector<1x4x324xf32>
    %1 = vector.shape_cast %0 : vector<1x4x324xf32> to vector<4x324xf32>
    %c0_2 = arith.constant 0 : index
    %c0_3 = arith.constant 0 : index
    %2 = vector.load %arg8[%c0_2, %c0_3] : memref<1x324xf32, #tpu.memory_space<vmem>>, vector<1x324xf32>
    %cst = arith.constant 5.000000e-01 : f32
    %3 = vector.broadcast %cst : f32 to vector<1x324xf32>
    %4 = arith.cmpf ogt, %2, %3 : vector<1x324xf32>
    %c0_4 = arith.constant 0 : index
    %c0_5 = arith.constant 0 : index
    %5 = vector.load %arg2[%c0_4, %c0_5] : memref<288x4xf32, #tpu.memory_space<vmem>>, vector<288x4xf32>
    %cst_6 = arith.constant dense<0.000000e+00> : vector<288x324xf32>
    %6 = tpu.matmul %5, %1, %cst_6 {dimension_numbers = #tpu.dot_dimension_numbers<[1], [0], [0], [1], [0, 0, 1, 1], [], []>} : vector<288x4xf32>, vector<4x324xf32>, vector<288x324xf32> -> vector<288x324xf32>
    %c0_7 = arith.constant 0 : index
    %c128 = arith.constant 128 : index
    %7 = vector.load %arg10[%c0_7, %c128] : memref<288x580xf32, #tpu.memory_space<vmem>>, vector<288x324xf32>
    tpu.vector_store %arg10[%c0_7, %c128], %6 {strides = array<i32>} : memref<288x580xf32, #tpu.memory_space<vmem>>, vector<288x324xf32>,
    %c0_8 = arith.constant 0 : index
    %c0_9 = arith.constant 0 : index
    %8 = vector.load %arg3[%c0_8, %c0_9] : memref<32x1xf32, #tpu.memory_space<vmem>>, vector<32x1xf32>
    %9 = vector.shape_cast %8 : vector<32x1xf32> to vector<32x1xf32>
    %10 = vector.broadcast %9 : vector<32x1xf32> to vector<32x324xf32>
    %c0_10 = arith.constant 0 : index
    %c109 = arith.constant 109 : index
    %11 = vector.load %arg10[%c0_10, %c109] : memref<288x580xf32, #tpu.memory_space<vmem>>, vector<32x324xf32>
    %12 = arith.addf %10, %11 : vector<32x324xf32>
    %c32 = arith.constant 32 : index
    %c110 = arith.constant 110 : index
    %13 = vector.load %arg10[%c32, %c110] : memref<288x580xf32, #tpu.memory_space<vmem>>, vector<32x324xf32>
    %14 = arith.addf %12, %13 : vector<32x324xf32>
    %c64 = arith.constant 64 : index
    %c111 = arith.constant 111 : index
    %15 = vector.load %arg10[%c64, %c111] : memref<288x580xf32, #tpu.memory_space<vmem>>, vector<32x324xf32>
    %16 = arith.addf %14, %15 : vector<32x324xf32>
    %c96 = arith.constant 96 : index
    %c127 = arith.constant 127 : index
    %17 = vector.load %arg10[%c96, %c127] : memref<288x580xf32, #tpu.memory_space<vmem>>, vector<32x324xf32>
    %18 = arith.addf %16, %17 : vector<32x324xf32>
    %c128_11 = arith.constant 128 : index
    %c128_12 = arith.constant 128 : index
    %19 = vector.load %arg10[%c128_11, %c128_12] : memref<288x580xf32, #tpu.memory_space<vmem>>, vector<32x324xf32>
    %20 = arith.addf %18, %19 : vector<32x324xf32>
    %c160 = arith.constant 160 : index
    %c129 = arith.constant 129 : index
    %21 = vector.load %arg10[%c160, %c129] : memref<288x580xf32, #tpu.memory_space<vmem>>, vector<32x324xf32>
    %22 = arith.addf %20, %21 : vector<32x324xf32>
    %c192 = arith.constant 192 : index
    %c145 = arith.constant 145 : index
    %23 = vector.load %arg10[%c192, %c145] : memref<288x580xf32, #tpu.memory_space<vmem>>, vector<32x324xf32>
    %24 = arith.addf %22, %23 : vector<32x324xf32>
    %c224 = arith.constant 224 : index
    %c146 = arith.constant 146 : index
    %25 = vector.load %arg10[%c224, %c146] : memref<288x580xf32, #tpu.memory_space<vmem>>, vector<32x324xf32>
    %26 = arith.addf %24, %25 : vector<32x324xf32>
    %c256 = arith.constant 256 : index
    %c147 = arith.constant 147 : index
    %27 = vector.load %arg10[%c256, %c147] : memref<288x580xf32, #tpu.memory_space<vmem>>, vector<32x324xf32>
    %28 = arith.addf %26, %27 : vector<32x324xf32>
    %cst_13 = arith.constant 0.000000e+00 : f32
    %29 = vector.broadcast %cst_13 : f32 to vector<32x324xf32>
    %30 = arith.maximumf %28, %29 : vector<32x324xf32>
    %cst_14 = arith.constant 0.000000e+00 : f32
    %31 = vector.shape_cast %4 : vector<1x324xi1> to vector<1x324xi1>
    %32 = vector.broadcast %31 : vector<1x324xi1> to vector<32x324xi1>
    %33 = vector.broadcast %cst_14 : f32 to vector<32x324xf32>
    %34 = arith.select %32, %30, %33 : vector<32x324xi1>, vector<32x324xf32>
    %c0_15 = arith.constant 0 : index
    %c0_16 = arith.constant 0 : index
    %35 = vector.load %arg4[%c0_15, %c0_16] : memref<288x32xf32, #tpu.memory_space<vmem>>, vector<288x32xf32>
    %cst_17 = arith.constant dense<0.000000e+00> : vector<288x324xf32>
    %36 = tpu.matmul %35, %34, %cst_17 {dimension_numbers = #tpu.dot_dimension_numbers<[1], [0], [0], [1], [0, 0, 1, 1], [], []>} : vector<288x32xf32>, vector<32x324xf32>, vector<288x324xf32> -> vector<288x324xf32>
    %c0_18 = arith.constant 0 : index
    %c128_19 = arith.constant 128 : index
    %37 = vector.load %arg10[%c0_18, %c128_19] : memref<288x580xf32, #tpu.memory_space<vmem>>, vector<288x324xf32>
    tpu.vector_store %arg10[%c0_18, %c128_19], %36 {strides = array<i32>} : memref<288x580xf32, #tpu.memory_space<vmem>>, vector<288x324xf32>,
    %c0_20 = arith.constant 0 : index
    %c0_21 = arith.constant 0 : index
    %38 = vector.load %arg5[%c0_20, %c0_21] : memref<32x1xf32, #tpu.memory_space<vmem>>, vector<32x1xf32>
    %39 = vector.shape_cast %38 : vector<32x1xf32> to vector<32x1xf32>
    %40 = vector.broadcast %39 : vector<32x1xf32> to vector<32x324xf32>
    %c0_22 = arith.constant 0 : index
    %c109_23 = arith.constant 109 : index
    %41 = vector.load %arg10[%c0_22, %c109_23] : memref<288x580xf32, #tpu.memory_space<vmem>>, vector<32x324xf32>
    %42 = arith.addf %40, %41 : vector<32x324xf32>
    %c32_24 = arith.constant 32 : index
    %c110_25 = arith.constant 110 : index
    %43 = vector.load %arg10[%c32_24, %c110_25] : memref<288x580xf32, #tpu.memory_space<vmem>>, vector<32x324xf32>
    %44 = arith.addf %42, %43 : vector<32x324xf32>
    %c64_26 = arith.constant 64 : index
    %c111_27 = arith.constant 111 : index
    %45 = vector.load %arg10[%c64_26, %c111_27] : memref<288x580xf32, #tpu.memory_space<vmem>>, vector<32x324xf32>
    %46 = arith.addf %44, %45 : vector<32x324xf32>
    %c96_28 = arith.constant 96 : index
    %c127_29 = arith.constant 127 : index
    %47 = vector.load %arg10[%c96_28, %c127_29] : memref<288x580xf32, #tpu.memory_space<vmem>>, vector<32x324xf32>
    %48 = arith.addf %46, %47 : vector<32x324xf32>
    %c128_30 = arith.constant 128 : index
    %c128_31 = arith.constant 128 : index
    %49 = vector.load %arg10[%c128_30, %c128_31] : memref<288x580xf32, #tpu.memory_space<vmem>>, vector<32x324xf32>
    %50 = arith.addf %48, %49 : vector<32x324xf32>
    %c160_32 = arith.constant 160 : index
    %c129_33 = arith.constant 129 : index
    %51 = vector.load %arg10[%c160_32, %c129_33] : memref<288x580xf32, #tpu.memory_space<vmem>>, vector<32x324xf32>
    %52 = arith.addf %50, %51 : vector<32x324xf32>
    %c192_34 = arith.constant 192 : index
    %c145_35 = arith.constant 145 : index
    %53 = vector.load %arg10[%c192_34, %c145_35] : memref<288x580xf32, #tpu.memory_space<vmem>>, vector<32x324xf32>
    %54 = arith.addf %52, %53 : vector<32x324xf32>
    %c224_36 = arith.constant 224 : index
    %c146_37 = arith.constant 146 : index
    %55 = vector.load %arg10[%c224_36, %c146_37] : memref<288x580xf32, #tpu.memory_space<vmem>>, vector<32x324xf32>
    %56 = arith.addf %54, %55 : vector<32x324xf32>
    %c256_38 = arith.constant 256 : index
    %c147_39 = arith.constant 147 : index
    %57 = vector.load %arg10[%c256_38, %c147_39] : memref<288x580xf32, #tpu.memory_space<vmem>>, vector<32x324xf32>
    %58 = arith.addf %56, %57 : vector<32x324xf32>
    %cst_40 = arith.constant 0.000000e+00 : f32
    %59 = vector.broadcast %cst_40 : f32 to vector<32x324xf32>
    %60 = arith.maximumf %58, %59 : vector<32x324xf32>
    %cst_41 = arith.constant 0.000000e+00 : f32
    %61 = vector.shape_cast %4 : vector<1x324xi1> to vector<1x324xi1>
    %62 = vector.broadcast %61 : vector<1x324xi1> to vector<32x324xi1>
    %63 = vector.broadcast %cst_41 : f32 to vector<32x324xf32>
    %64 = arith.select %62, %60, %63 : vector<32x324xi1>, vector<32x324xf32>
    %c0_42 = arith.constant 0 : index
    %c0_43 = arith.constant 0 : index
    %65 = vector.load %arg6[%c0_42, %c0_43] : memref<9x32xf32, #tpu.memory_space<vmem>>, vector<9x32xf32>
    %cst_44 = arith.constant dense<0.000000e+00> : vector<9x324xf32>
    %66 = tpu.matmul %65, %64, %cst_44 {dimension_numbers = #tpu.dot_dimension_numbers<[1], [0], [0], [1], [0, 0, 1, 1], [], []>} : vector<9x32xf32>, vector<32x324xf32>, vector<9x324xf32> -> vector<9x324xf32>
    %c0_45 = arith.constant 0 : index
    %c128_46 = arith.constant 128 : index
    %67 = vector.load %arg10[%c0_45, %c128_46] : memref<288x580xf32, #tpu.memory_space<vmem>>, vector<9x324xf32>
    tpu.vector_store %arg10[%c0_45, %c128_46], %66 {strides = array<i32>} : memref<288x580xf32, #tpu.memory_space<vmem>>, vector<9x324xf32>,
    %c0_47 = arith.constant 0 : index
    %c0_48 = arith.constant 0 : index
    %68 = vector.load %arg7[%c0_47, %c0_48] : memref<1x1xf32, #tpu.memory_space<vmem>>, vector<1x1xf32>
    %69 = vector.shape_cast %68 : vector<1x1xf32> to vector<1x1xf32>
    %70 = vector.broadcast %69 : vector<1x1xf32> to vector<1x324xf32>
    %c0_49 = arith.constant 0 : index
    %c109_50 = arith.constant 109 : index
    %71 = vector.load %arg10[%c0_49, %c109_50] : memref<288x580xf32, #tpu.memory_space<vmem>>, vector<1x324xf32>
    %72 = arith.addf %70, %71 : vector<1x324xf32>
    %c1 = arith.constant 1 : index
    %c110_51 = arith.constant 110 : index
    %73 = vector.load %arg10[%c1, %c110_51] : memref<288x580xf32, #tpu.memory_space<vmem>>, vector<1x324xf32>
    %74 = arith.addf %72, %73 : vector<1x324xf32>
    %c2 = arith.constant 2 : index
    %c111_52 = arith.constant 111 : index
    %75 = vector.load %arg10[%c2, %c111_52] : memref<288x580xf32, #tpu.memory_space<vmem>>, vector<1x324xf32>
    %76 = arith.addf %74, %75 : vector<1x324xf32>
    %c3 = arith.constant 3 : index
    %c127_53 = arith.constant 127 : index
    %77 = vector.load %arg10[%c3, %c127_53] : memref<288x580xf32, #tpu.memory_space<vmem>>, vector<1x324xf32>
    %78 = arith.addf %76, %77 : vector<1x324xf32>
    %c4 = arith.constant 4 : index
    %c128_54 = arith.constant 128 : index
    %79 = vector.load %arg10[%c4, %c128_54] : memref<288x580xf32, #tpu.memory_space<vmem>>, vector<1x324xf32>
    %80 = arith.addf %78, %79 : vector<1x324xf32>
    %c5 = arith.constant 5 : index
    %c129_55 = arith.constant 129 : index
    %81 = vector.load %arg10[%c5, %c129_55] : memref<288x580xf32, #tpu.memory_space<vmem>>, vector<1x324xf32>
    %82 = arith.addf %80, %81 : vector<1x324xf32>
    %c6 = arith.constant 6 : index
    %c145_56 = arith.constant 145 : index
    %83 = vector.load %arg10[%c6, %c145_56] : memref<288x580xf32, #tpu.memory_space<vmem>>, vector<1x324xf32>
    %84 = arith.addf %82, %83 : vector<1x324xf32>
    %c7 = arith.constant 7 : index
    %c146_57 = arith.constant 146 : index
    %85 = vector.load %arg10[%c7, %c146_57] : memref<288x580xf32, #tpu.memory_space<vmem>>, vector<1x324xf32>
    %86 = arith.addf %84, %85 : vector<1x324xf32>
    %c8 = arith.constant 8 : index
    %c147_58 = arith.constant 147 : index
    %87 = vector.load %arg10[%c8, %c147_58] : memref<288x580xf32, #tpu.memory_space<vmem>>, vector<1x324xf32>
    %88 = arith.addf %86, %87 : vector<1x324xf32>
    %89 = arith.negf %88 : vector<1x324xf32>
    %90 = math.exp %89 : vector<1x324xf32>
    %cst_59 = arith.constant 1.000000e+00 : f32
    %91 = vector.broadcast %cst_59 : f32 to vector<1x324xf32>
    %92 = arith.addf %91, %90 : vector<1x324xf32>
    %93 = arith.divf %91, %92 : vector<1x324xf32>
    %cst_60 = arith.constant 0.000000e+00 : f32
    %94 = vector.broadcast %cst_60 : f32 to vector<1x324xf32>
    %95 = arith.select %4, %93, %94 : vector<1x324xi1>, vector<1x324xf32>
    %c0_61 = arith.constant 0 : index
    %c0_62 = arith.constant 0 : index
    %c0_63 = arith.constant 0 : index
    %96 = vector.load %arg9[%c0_61, %c0_62, %c0_63] : memref<1x1x324xf32, #tpu.memory_space<vmem>>, vector<1x1x324xf32>
    %97 = vector.shape_cast %96 : vector<1x1x324xf32> to vector<1x324xf32>
    %98 = vector.shape_cast %95 : vector<1x324xf32> to vector<1x1x324xf32>
    tpu.vector_store %arg9[%c0_61, %c0_62, %c0_63], %98 {strides = array<i32>} : memref<1x1x324xf32, #tpu.memory_space<vmem>>, vector<1x1x324xf32>,
    return
  }
  func.func @transform_0(%arg0: i32) -> (i32, i32, i32) {
    %c0_i32 = arith.constant 0 : i32
    %c0_i32_0 = arith.constant 0 : i32
    %c0_i32_1 = arith.constant 0 : i32
    return %arg0, %c0_i32, %c0_i32_0 : i32, i32, i32
  }
  func.func @transform_1(%arg0: i32) -> (i32, i32) {
    %c0_i32 = arith.constant 0 : i32
    %c0_i32_0 = arith.constant 0 : i32
    %c0_i32_1 = arith.constant 0 : i32
    return %c0_i32, %c0_i32_0 : i32, i32
  }
  func.func @transform_2(%arg0: i32) -> (i32, i32) {
    %c0_i32 = arith.constant 0 : i32
    %c0_i32_0 = arith.constant 0 : i32
    %c0_i32_1 = arith.constant 0 : i32
    return %c0_i32, %c0_i32_0 : i32, i32
  }
  func.func @transform_3(%arg0: i32) -> (i32, i32) {
    %c0_i32 = arith.constant 0 : i32
    %c0_i32_0 = arith.constant 0 : i32
    %c0_i32_1 = arith.constant 0 : i32
    return %c0_i32, %c0_i32_0 : i32, i32
  }
  func.func @transform_4(%arg0: i32) -> (i32, i32) {
    %c0_i32 = arith.constant 0 : i32
    %c0_i32_0 = arith.constant 0 : i32
    %c0_i32_1 = arith.constant 0 : i32
    return %c0_i32, %c0_i32_0 : i32, i32
  }
  func.func @transform_5(%arg0: i32) -> (i32, i32) {
    %c0_i32 = arith.constant 0 : i32
    %c0_i32_0 = arith.constant 0 : i32
    %c0_i32_1 = arith.constant 0 : i32
    return %c0_i32, %c0_i32_0 : i32, i32
  }
  func.func @transform_6(%arg0: i32) -> (i32, i32) {
    %c0_i32 = arith.constant 0 : i32
    %c0_i32_0 = arith.constant 0 : i32
    %c0_i32_1 = arith.constant 0 : i32
    return %c0_i32, %c0_i32_0 : i32, i32
  }
  func.func @transform_7(%arg0: i32) -> (i32, i32) {
    %c0_i32 = arith.constant 0 : i32
    %c0_i32_0 = arith.constant 0 : i32
    %c0_i32_1 = arith.constant 0 : i32
    return %c0_i32, %c0_i32_0 : i32, i32
  }
  func.func @transform_8(%arg0: i32) -> (i32, i32, i32) {
    %c0_i32 = arith.constant 0 : i32
    %c0_i32_0 = arith.constant 0 : i32
    %c0_i32_1 = arith.constant 0 : i32
    return %arg0, %c0_i32, %c0_i32_0 : i32, i32, i32
  }
}

</mosaic_0001>

<llo_original>
// kernel: tpu_custom_call.1
$region0: #{tpu_custom_call.1}
  #allocation0 [shape = 'u32[]', space=smem, size = 0x4, offset = 0x4, fixed_abs, tag = 'smem constant byte address 0x4 - core index']
  #allocation1 [shape = 'u32[144,128]{1,0:T(1,128)}', space=vmem, size = 0x12000, scoped, tag = 'internal scratch']
  #allocation2 [shape = 'f32[288,580]{1,0:T(8,128)}', space=vmem, size = 0xb4000, scoped, tag = 'scratch operand']
  #allocation3 [shape = 'f32[1,1]{1,0:T(1,128)S(1)}', space=vmem, size = 0x200, scoped, tag = 'scoped memory for tpu_custom_call.1']
  %s0 = inlined_call_operand.vmem [shape: f32[2,4,324], index: 0, kind: input, shape index: {}]
  %s1 = inlined_call_operand.vmem [shape: f32[288,4], index: 1, kind: input, shape index: {}]
  %s2 = inlined_call_operand.vmem [shape: f32[32,1], index: 2, kind: input, shape index: {}]
  %s3 = inlined_call_operand.vmem [shape: f32[288,32], index: 3, kind: input, shape index: {}]
  %s4 = inlined_call_operand.vmem [shape: f32[32,1], index: 4, kind: input, shape index: {}]
  %s5 = inlined_call_operand.vmem [shape: f32[9,32], index: 5, kind: input, shape index: {}]
  %s6 = inlined_call_operand.<no memory space> [shape: f32[1,1], index: 6, kind: input, shape index: {}]
  %s7 = inlined_call_operand.vmem [shape: f32[1,324], index: 7, kind: input, shape index: {}]
  %s8 = inlined_call_operand.hbm [shape: f32[2,1,324], index: 8, kind: output, shape index: {}]
  %s9 = sld [smem:[#allocation0]]
  $region65: #{tpu_custom_call.1} parent=0
    _
  %s11 = ssub.s32 1, %s9
  %s12 = scalar_select 0, %s11, %s9
  %v13 = vstv %s6
  %14 = vst [vmem:[#allocation3] sm:$0x1] %v13
  $region1: #{tpu_custom_call.1} parent=0
    #allocation4 [shape = 'u8[3072]{0}', space=vmem, size = 0xc00, scoped, tag = 'output window, operand 0']
    #allocation5 [shape = 's32[2]{0}', space=sflag, size = 0x8, scoped, tag = 'scoped memory for tpu_custom_call.1']
    %15 = vsyncpa [#allocation5], 0
    %s16 = scalar_lea.sflag [#allocation5], 1
    %17 = vsyncpa %s16, 0
    loop: start=0, step=1, limit=4
    $region2: #{tpu_custom_call.1} parent=1 // loop_pre_header
      _
    $region3: #{tpu_custom_call.1} parent=1 // loop_header
      %s19 = sphi 0, %s23
      %p20 = scmp.ge.s32.totalorder %s19, 4
      %s29 = sphi 0, %s31
      %s32 = sphi 0, %s29
      %s33 = sphi 0, %s32
      %s49 = sphi 0, %s33
      %s53 = sphi 0, %s53
      %s55 = sphi 0, %s53
      %s56 = sphi 0, %s55
      %s70 = sphi 0, %s56
      %s74 = sphi 0, %s74
      %s76 = sphi 0, %s74
      %s77 = sphi 0, %s76
      %s91 = sphi 0, %s77
      %s95 = sphi 0, %s95
      %s97 = sphi 0, %s95
      %s98 = sphi 0, %s97
      %s112 = sphi 0, %s98
      %s116 = sphi 0, %s116
      %s118 = sphi 0, %s116
      %s119 = sphi 0, %s118
      %s133 = sphi 0, %s119
      %s137 = sphi 0, %s137
      %s139 = sphi 0, %s137
      %s140 = sphi 0, %s139
      %s154 = sphi 0, %s140
      %s158 = sphi 0, %s158
      %s160 = sphi 0, %s158
      %s161 = sphi 0, %s160
      %s175 = sphi 0, %s161
      %s179 = sphi 0, %s179
      %s181 = sphi 0, %s179
      %s182 = sphi 0, %s181
      %s196 = sphi 0, %s182
      %s202 = sphi 0, %s204
      %s205 = sphi 0, %s202
      %s206 = sphi 0, %s205
      %s222 = sphi 0, %s206
    $region4: #{tpu_custom_call.1} parent=1 // loop_header_branch
      %22 = sbr.rel (%p20) target = $region8
    $region5: #{tpu_custom_call.1} parent=1 // loop_body
      %s24 = ssub.s32 %s19, 1
      %s25 = ssub.s32 %s19, 2
      %s26 = sadd.s32 %s19, 1
      %s27 = ssub.s32 %s19, %s26
      %p28 = scmp.eq.s32.totalorder %s27, 0
      %s30 = sadd.s32 %s29, 1
      %s31 = scalar_select %p28, %s29, %s30
      %p34 = pneg %p28
      %p35 = scmp.eq.s32.totalorder %s19, 1
      %p36 = por %p34, %p35
      %p37 = scmp.ne.s32.totalorder %s29, %s32
      %p38 = scmp.eq.s32.totalorder %s19, 0
      %p39 = por %p37, %p38
      %p40 = scmp.ne.s32.totalorder %s29, %s32
      %p41 = scmp.eq.s32.totalorder %s24, 1
      %p42 = por %p40, %p41
      %p43 = scmp.ne.s32.totalorder %s32, %s33
      %p44 = scmp.eq.s32.totalorder %s24, 0
      %p45 = por %p43, %p44
      %p46 = scmp.ne.s32.totalorder %s32, %s33
      %p47 = scmp.eq.s32.totalorder %s25, 1
      %p48 = por %p46, %p47
      %p50 = scmp.ne.s32.totalorder %s33, %s49
      %p51 = scmp.eq.s32.totalorder %s25, 0
      %p52 = por %p50, %p51
      %s54 = sadd.s32 %s53, 1
      %p57 = scmp.eq.s32.totalorder %s19, 1
      %p58 = scmp.ne.s32.totalorder %s53, %s55
      %p59 = scmp.eq.s32.totalorder %s19, 0
      %p60 = por %p58, %p59
      %p61 = scmp.ne.s32.totalorder %s53, %s55
      %p62 = scmp.eq.s32.totalorder %s24, 1
      %p63 = por %p61, %p62
      %p64 = scmp.ne.s32.totalorder %s55, %s56
      %p65 = scmp.eq.s32.totalorder %s24, 0
      %p66 = por %p64, %p65
      %p67 = scmp.ne.s32.totalorder %s55, %s56
      %p68 = scmp.eq.s32.totalorder %s25, 1
      %p69 = por %p67, %p68
      %p71 = scmp.ne.s32.totalorder %s56, %s70
      %p72 = scmp.eq.s32.totalorder %s25, 0
      %p73 = por %p71, %p72
      %s75 = sadd.s32 %s74, 1
      %p78 = scmp.eq.s32.totalorder %s19, 1
      %p79 = scmp.ne.s32.totalorder %s74, %s76
      %p80 = scmp.eq.s32.totalorder %s19, 0
      %p81 = por %p79, %p80
      %p82 = scmp.ne.s32.totalorder %s74, %s76
      %p83 = scmp.eq.s32.totalorder %s24, 1
      %p84 = por %p82, %p83
      %p85 = scmp.ne.s32.totalorder %s76, %s77
      %p86 = scmp.eq.s32.totalorder %s24, 0
      %p87 = por %p85, %p86
      %p88 = scmp.ne.s32.totalorder %s76, %s77
      %p89 = scmp.eq.s32.totalorder %s25, 1
      %p90 = por %p88, %p89
      %p92 = scmp.ne.s32.totalorder %s77, %s91
      %p93 = scmp.eq.s32.totalorder %s25, 0
      %p94 = por %p92, %p93
      %s96 = sadd.s32 %s95, 1
      %p99 = scmp.eq.s32.totalorder %s19, 1
      %p100 = scmp.ne.s32.totalorder %s95, %s97
      %p101 = scmp.eq.s32.totalorder %s19, 0
      %p102 = por %p100, %p101
      %p103 = scmp.ne.s32.totalorder %s95, %s97
      %p104 = scmp.eq.s32.totalorder %s24, 1
      %p105 = por %p103, %p104
      %p106 = scmp.ne.s32.totalorder %s97, %s98
      %p107 = scmp.eq.s32.totalorder %s24, 0
      %p108 = por %p106, %p107
      %p109 = scmp.ne.s32.totalorder %s97, %s98
      %p110 = scmp.eq.s32.totalorder %s25, 1
      %p111 = por %p109, %p110
      %p113 = scmp.ne.s32.totalorder %s98, %s112
      %p114 = scmp.eq.s32.totalorder %s25, 0
      %p115 = por %p113, %p114
      %s117 = sadd.s32 %s116, 1
      %p120 = scmp.eq.s32.totalorder %s19, 1
      %p121 = scmp.ne.s32.totalorder %s116, %s118
      %p122 = scmp.eq.s32.totalorder %s19, 0
      %p123 = por %p121, %p122
      %p124 = scmp.ne.s32.totalorder %s116, %s118
      %p125 = scmp.eq.s32.totalorder %s24, 1
      %p126 = por %p124, %p125
      %p127 = scmp.ne.s32.totalorder %s118, %s119
      %p128 = scmp.eq.s32.totalorder %s24, 0
      %p129 = por %p127, %p128
      %p130 = scmp.ne.s32.totalorder %s118, %s119
      %p131 = scmp.eq.s32.totalorder %s25, 1
      %p132 = por %p130, %p131
      %p134 = scmp.ne.s32.totalorder %s119, %s133
      %p135 = scmp.eq.s32.totalorder %s25, 0
      %p136 = por %p134, %p135
      %s138 = sadd.s32 %s137, 1
      %p141 = scmp.eq.s32.totalorder %s19, 1
      %p142 = scmp.ne.s32.totalorder %s137, %s139
      %p143 = scmp.eq.s32.totalorder %s19, 0
      %p144 = por %p142, %p143
      %p145 = scmp.ne.s32.totalorder %s137, %s139
      %p146 = scmp.eq.s32.totalorder %s24, 1
      %p147 = por %p145, %p146
      %p148 = scmp.ne.s32.totalorder %s139, %s140
      %p149 = scmp.eq.s32.totalorder %s24, 0
      %p150 = por %p148, %p149
      %p151 = scmp.ne.s32.totalorder %s139, %s140
      %p152 = scmp.eq.s32.totalorder %s25, 1
      %p153 = por %p151, %p152
      %p155 = scmp.ne.s32.totalorder %s140, %s154
      %p156 = scmp.eq.s32.totalorder %s25, 0
      %p157 = por %p155, %p156
      %s159 = sadd.s32 %s158, 1
      %p162 = scmp.eq.s32.totalorder %s19, 1
      %p163 = scmp.ne.s32.totalorder %s158, %s160
      %p164 = scmp.eq.s32.totalorder %s19, 0
      %p165 = por %p163, %p164
      %p166 = scmp.ne.s32.totalorder %s158, %s160
      %p167 = scmp.eq.s32.totalorder %s24, 1
      %p168 = por %p166, %p167
      %p169 = scmp.ne.s32.totalorder %s160, %s161
      %p170 = scmp.eq.s32.totalorder %s24, 0
      %p171 = por %p169, %p170
      %p172 = scmp.ne.s32.totalorder %s160, %s161
      %p173 = scmp.eq.s32.totalorder %s25, 1
      %p174 = por %p172, %p173
      %p176 = scmp.ne.s32.totalorder %s161, %s175
      %p177 = scmp.eq.s32.totalorder %s25, 0
      %p178 = por %p176, %p177
      %s180 = sadd.s32 %s179, 1
      %p183 = scmp.eq.s32.totalorder %s19, 1
      %p184 = scmp.ne.s32.totalorder %s179, %s181
      %p185 = scmp.eq.s32.totalorder %s19, 0
      %p186 = por %p184, %p185
      %p187 = scmp.ne.s32.totalorder %s179, %s181
      %p188 = scmp.eq.s32.totalorder %s24, 1
      %p189 = por %p187, %p188
      %p190 = scmp.ne.s32.totalorder %s181, %s182
      %p191 = scmp.eq.s32.totalorder %s24, 0
      %p192 = por %p190, %p191
      %p193 = scmp.ne.s32.totalorder %s181, %s182
      %p194 = scmp.eq.s32.totalorder %s25, 1
      %p195 = por %p193, %p194
      %p197 = scmp.ne.s32.totalorder %s182, %s196
      %p198 = scmp.eq.s32.totalorder %s25, 0
      %p199 = por %p197, %p198
      %s200 = ssub.s32 %s19, %s26
      %p201 = scmp.eq.s32.totalorder %s200, 0
      %s203 = sadd.s32 %s202, 1
      %s204 = scalar_select %p201, %s202, %s203
      %p207 = pneg %p201
      %p208 = scmp.eq.s32.totalorder %s19, 1
      %p209 = por %p207, %p208
      %p210 = scmp.ne.s32.totalorder %s202, %s205
      %p211 = scmp.eq.s32.totalorder %s19, 0
      %p212 = por %p210, %p211
      %p213 = scmp.ne.s32.totalorder %s202, %s205
      %p214 = scmp.eq.s32.totalorder %s24, 1
      %p215 = por %p213, %p214
      %p216 = scmp.ne.s32.totalorder %s205, %s206
      %p217 = scmp.eq.s32.totalorder %s24, 0
      %p218 = por %p216, %p217
      %p219 = scmp.ne.s32.totalorder %s205, %s206
      %p220 = scmp.eq.s32.totalorder %s25, 1
      %p221 = por %p219, %p220
      %p223 = scmp.ne.s32.totalorder %s206, %s222
      %p224 = scmp.eq.s32.totalorder %s25, 0
      %p225 = por %p223, %p224
      %p226 = scmp.le.s32.totalorder 1, %s19
      %p227 = scmp.lt.s32.totalorder %s19, 3
      %p228 = pnand %p226, %p227
      %p229 = pneg %p228
      // Predicated region
      $region9: #{tpu_custom_call.1} parent=5 // pred_check
        _
      $region10: #{tpu_custom_call.1} parent=5 // pred_check_branch
        %231 = sbr.rel (%p228) target = $region12
      $region11: #{tpu_custom_call.1} parent=5 // pred_region
        %s232 = ssub.s32 %s19, 1
        // Predicated region
        $region13: #{tpu_custom_call.1} parent=11 // pred_check
          %p233 = pneg %p66
        $region14: #{tpu_custom_call.1} parent=11 // pred_check_branch
          %235 = sbr.rel (%p233) target = $region16
        $region15: #{tpu_custom_call.1} parent=11 // pred_region
          _
        $region16: #{tpu_custom_call.1} parent=11 // pred_fallthru
          _
        // Predicated region
        $region17: #{tpu_custom_call.1} parent=11 // pred_check
          %p236 = pneg %p87
        $region18: #{tpu_custom_call.1} parent=11 // pred_check_branch
          %238 = sbr.rel (%p236) target = $region20
        $region19: #{tpu_custom_call.1} parent=11 // pred_region
          _
        $region20: #{tpu_custom_call.1} parent=11 // pred_fallthru
          _
        // Predicated region
        $region21: #{tpu_custom_call.1} parent=11 // pred_check
          %p239 = pneg %p108
        $region22: #{tpu_custom_call.1} parent=11 // pred_check_branch
          %241 = sbr.rel (%p239) target = $region24
        $region23: #{tpu_custom_call.1} parent=11 // pred_region
          _
        $region24: #{tpu_custom_call.1} parent=11 // pred_fallthru
          _
        // Predicated region
        $region25: #{tpu_custom_call.1} parent=11 // pred_check
          %p242 = pneg %p129
        $region26: #{tpu_custom_call.1} parent=11 // pred_check_branch
          %244 = sbr.rel (%p242) target = $region28
        $region27: #{tpu_custom_call.1} parent=11 // pred_region
          _
        $region28: #{tpu_custom_call.1} parent=11 // pred_fallthru
          _
        // Predicated region
        $region29: #{tpu_custom_call.1} parent=11 // pred_check
          %p245 = pneg %p150
        $region30: #{tpu_custom_call.1} parent=11 // pred_check_branch
          %247 = sbr.rel (%p245) target = $region32
        $region31: #{tpu_custom_call.1} parent=11 // pred_region
          _
        $region32: #{tpu_custom_call.1} parent=11 // pred_fallthru
          _
        // Predicated region
        $region33: #{tpu_custom_call.1} parent=11 // pred_check
          %p248 = pneg %p171
        $region34: #{tpu_custom_call.1} parent=11 // pred_check_branch
          %250 = sbr.rel (%p248) target = $region36
        $region35: #{tpu_custom_call.1} parent=11 // pred_region
          _
        $region36: #{tpu_custom_call.1} parent=11 // pred_fallthru
          _
        // Predicated region
        $region37: #{tpu_custom_call.1} parent=11 // pred_check
          %p251 = pneg %p192
        $region38: #{tpu_custom_call.1} parent=11 // pred_check_branch
          %253 = sbr.rel (%p251) target = $region40
        $region39: #{tpu_custom_call.1} parent=11 // pred_region
          _
        $region40: #{tpu_custom_call.1} parent=11 // pred_fallthru
          _
      $region12: #{tpu_custom_call.1} parent=5 // pred_fallthru
        _
      %p254 = scmp.lt.s32.totalorder %s19, 2
      // Predicated region
      $region41: #{tpu_custom_call.1} parent=5 // pred_check
        %p255 = pneg %p254
      $region42: #{tpu_custom_call.1} parent=5 // pred_check_branch
        %257 = sbr.rel (%p255) target = $region44
      $region43: #{tpu_custom_call.1} parent=5 // pred_region
        // Predicated region
        $region45: #{tpu_custom_call.1} parent=43 // pred_check
          %p258 = pneg %p39
        $region46: #{tpu_custom_call.1} parent=43 // pred_check_branch
          %260 = sbr.rel (%p258) target = $region48
        $region47: #{tpu_custom_call.1} parent=43 // pred_region
          %p261 = scmp.lt.s32.totalorder %s19, 1
          %s262 = scalar_select %p261, %s19, 1
          %s263 = smul.addr %s262, 3
          %s264 = smul.addr %s263, 4
          %s265 = scalar_lea.vmem %s0, %s264
        $region48: #{tpu_custom_call.1} parent=43 // pred_fallthru
          _
      $region44: #{tpu_custom_call.1} parent=5 // pred_fallthru
        _
      %p266 = scmp.le.s32.totalorder 1, %s19
      %p267 = scmp.lt.s32.totalorder %s19, 3
      %p268 = pnand %p266, %p267
      %p269 = pneg %p268
      // Predicated region
      $region49: #{tpu_custom_call.1} parent=5 // pred_check
        _
      $region50: #{tpu_custom_call.1} parent=5 // pred_check_branch
        %271 = sbr.rel (%p268) target = $region52
      $region51: #{tpu_custom_call.1} parent=5 // pred_region
        %s272 = ssub.s32 %s19, 1
        %p273 = scmp.lt.s32.totalorder %s24, 1
        %s274 = scalar_select %p273, %s24, 1
        %s275 = smul.addr %s274, 3
        %s276 = smul.addr %s275, 4
        %s277 = scalar_lea.vmem %s0, %s276
        %p278 = pneg %p45
        %p279 = pneg %p42
        %p280 = pneg %p66
        %p281 = pneg %p63
        %p282 = pneg %p87
        %p283 = pneg %p84
        %p284 = pneg %p108
        %p285 = pneg %p105
        %p286 = pneg %p129
        %p287 = pneg %p126
        %p288 = pneg %p150
        %p289 = pneg %p147
        %p290 = pneg %p171
        %p291 = pneg %p168
        %p292 = pneg %p192
        %p293 = pneg %p189
        %p294 = pneg %p218
        %p295 = pneg %p215
        %s296 = sand.u32 %s205, 1
        %s297 = scalar_lea.sflag [#allocation5], %s296
        %s298 = sand.u32 %s205, 1
        %s299 = smul.addr %s298, 3
        %s300 = scalar_lea.vmem [#allocation4], %s299
        %p301 = scmp.lt.s32.totalorder %s24, 1
        %s302 = scalar_select %p301, %s24, 1
        %s303 = smul.addr %s302, 3
        %s304 = smul.addr %s303, 4
        %s305 = scalar_lea.vmem %s0, %s304
        %v306 = vld [vmem:[%s305] sm:$0xff]
        %v307 = vld [vmem:[%s305 + $0x8] sm:$0xf]
        %v308 = vld [vmem:[%s7] sm:$0x7]
        %vm309 = vcmp.gt.f32.partialorder %v308, 0.5
        %v310 = vld [vmem:[%s1] sm:$0xff]
        %v311 = vld [vmem:[%s1 + $0x8] sm:$0xff]
        %v312 = vld [vmem:[%s1 + $0x10] sm:$0xff]
        %v313 = vld [vmem:[%s1 + $0x18] sm:$0xff]
        %v314 = vld [vmem:[%s1 + $0x20] sm:$0xff]
        %v315 = vld [vmem:[%s1 + $0x28] sm:$0xff]
        %v316 = vld [vmem:[%s1 + $0x30] sm:$0xff]
        %v317 = vld [vmem:[%s1 + $0x38] sm:$0xff]
        %v318 = vld [vmem:[%s1 + $0x40] sm:$0xff]
        %v319 = vld [vmem:[%s1 + $0x48] sm:$0xff]
        %v320 = vld [vmem:[%s1 + $0x50] sm:$0xff]
        %v321 = vld [vmem:[%s1 + $0x58] sm:$0xff]
        %v322 = vld [vmem:[%s1 + $0x60] sm:$0xff]
        %v323 = vld [vmem:[%s1 + $0x68] sm:$0xff]
        %v324 = vld [vmem:[%s1 + $0x70] sm:$0xff]
        %v325 = vld [vmem:[%s1 + $0x78] sm:$0xff]
        %v326 = vld [vmem:[%s1 + $0x80] sm:$0xff]
        %v327 = vld [vmem:[%s1 + $0x88] sm:$0xff]
        %v328 = vld [vmem:[%s1 + $0x90] sm:$0xff]
        %v329 = vld [vmem:[%s1 + $0x98] sm:$0xff]
        %v330 = vld [vmem:[%s1 + $0xa0] sm:$0xff]
        %v331 = vld [vmem:[%s1 + $0xa8] sm:$0xff]
        %v332 = vld [vmem:[%s1 + $0xb0] sm:$0xff]
        %v333 = vld [vmem:[%s1 + $0xb8] sm:$0xff]
        %v334 = vld [vmem:[%s1 + $0xc0] sm:$0xff]
        %v335 = vld [vmem:[%s1 + $0xc8] sm:$0xff]
        %v336 = vld [vmem:[%s1 + $0xd0] sm:$0xff]
        %v337 = vld [vmem:[%s1 + $0xd8] sm:$0xff]
        %v338 = vld [vmem:[%s1 + $0xe0] sm:$0xff]
        %v339 = vld [vmem:[%s1 + $0xe8] sm:$0xff]
        %v340 = vld [vmem:[%s1 + $0xf0] sm:$0xff]
        %v341 = vld [vmem:[%s1 + $0xf8] sm:$0xff]
        %v342 = vld [vmem:[%s1 + $0x100] sm:$0xff]
        %v343 = vld [vmem:[%s1 + $0x108] sm:$0xff]
        %v344 = vld [vmem:[%s1 + $0x110] sm:$0xff]
        %v345 = vld [vmem:[%s1 + $0x118] sm:$0xff]
        %v348 = vcombine.high %v306, %v306
        %vm349 = vcmask 31744
        %v351 = vsel %vm349, %v310, 0
        %v354 = vsel %vm349, %v311, 0
        %v357 = vsel %vm349, %v312, 0
        %v360 = vsel %vm349, %v313, 0
        %v363 = vsel %vm349, %v314, 0
        %v366 = vsel %vm349, %v315, 0
        %v369 = vsel %vm349, %v316, 0
        %v372 = vsel %vm349, %v317, 0
        %v375 = vsel %vm349, %v318, 0
        %v378 = vsel %vm349, %v319, 0
        %v381 = vsel %vm349, %v320, 0
        %v384 = vsel %vm349, %v321, 0
        %v387 = vsel %vm349, %v322, 0
        %v390 = vsel %vm349, %v323, 0
        %v393 = vsel %vm349, %v324, 0
        %v396 = vsel %vm349, %v325, 0
        %v399 = vsel %vm349, %v326, 0
        %v402 = vsel %vm349, %v327, 0
        %v405 = vsel %vm349, %v328, 0
        %v408 = vsel %vm349, %v329, 0
        %v411 = vsel %vm349, %v330, 0
        %v414 = vsel %vm349, %v331, 0
        %v417 = vsel %vm349, %v332, 0
        %v420 = vsel %vm349, %v333, 0
        %v423 = vsel %vm349, %v334, 0
        %v426 = vsel %vm349, %v335, 0
        %v429 = vsel %vm349, %v336, 0
        %v432 = vsel %vm349, %v337, 0
        %v435 = vsel %vm349, %v338, 0
        %v438 = vsel %vm349, %v339, 0
        %v441 = vsel %vm349, %v340, 0
        %v444 = vsel %vm349, %v341, 0
        %v447 = vsel %vm349, %v342, 0
        %v450 = vsel %vm349, %v343, 0
        %v453 = vsel %vm349, %v344, 0
        %v456 = vsel %vm349, %v345, 0
        %vm458 = vcmask 1043456
        %v459 = vsel %vm458, %v306, 0
        %v461 = vsel %vm458, %v348, 0
        %v463 = vsel %vm458, %v307, 0
        %465 = vmatprep.subr.mxu0 %v461
        %466 = vmatpush1.msra.mxu0 %v459
        %467 = vmatprep.subr.mxu0 0.0
        %468 = vmatpush1.msra.mxu0 0.0
        %469 = vmatprep.subr.mxu0 0.0
        %470 = vmatpush1.msra.mxu0 0.0
        %471 = vmatprep.subr.mxu0 0.0
        %472 = vmatpush1.msra.mxu0 0.0
        %473 = vmatprep.subr.mxu0 0.0
        %474 = vmatpush1.msra.mxu0 0.0
        %475 = vmatprep.subr.mxu0 0.0
        %476 = vmatpush1.msra.mxu0 0.0
        %477 = vmatprep.subr.mxu0 0.0
        %478 = vmatpush1.msra.mxu0 0.0
        %479 = vmatprep.subr.mxu0 0.0
        %480 = vmatpush1.msra.mxu0 0.0
        %481 = vmatprep.subr.mxu0 0.0
        %482 = vmatpush1.msra.mxu0 0.0
        %483 = vmatprep.subr.mxu0 0.0
        %484 = vmatpush1.msra.mxu0 0.0
        %485 = vmatprep.subr.mxu0 0.0
        %486 = vmatpush1.msra.mxu0 0.0
        %487 = vmatprep.subr.mxu0 0.0
        %488 = vmatpush1.msra.mxu0 0.0
        %489 = vmatprep.subr.mxu0 0.0
        %490 = vmatpush1.msra.mxu0 0.0
        %491 = vmatprep.subr.mxu0 0.0
        %492 = vmatpush1.msra.mxu0 0.0
        %493 = vmatprep.subr.mxu0 0.0
        %494 = vmatpush1.msra.mxu0 0.0
        %495 = vmatprep.subr.mxu0 0.0
        %496 = vmatpush1.msra.mxu0 0.0
        %497 = vmatprep.subr.mxu0 0.0
        %498 = vmatpush1.msra.mxu0 0.0
        %499 = vmatprep.subr.mxu0 0.0
        %500 = vmatpush1.msra.mxu0 0.0
        %501 = vmatprep.subr.mxu0 0.0
        %502 = vmatpush1.msra.mxu0 0.0
        %503 = vmatprep.subr.mxu0 0.0
        %504 = vmatpush1.msra.mxu0 0.0
        %505 = vmatprep.subr.mxu0 0.0
        %506 = vmatpush1.msra.mxu0 0.0
        %507 = vmatprep.subr.mxu0 0.0
        %508 = vmatpush1.msra.mxu0 0.0
        %509 = vmatprep.subr.mxu0 0.0
        %510 = vmatpush1.msra.mxu0 0.0
        %511 = vmatprep.subr.mxu0 0.0
        %512 = vmatpush1.msra.mxu0 0.0
        %513 = vmatprep.subr.mxu0 0.0
        %514 = vmatpush1.msra.mxu0 0.0
        %515 = vmatprep.subr.mxu0 0.0
        %516 = vmatpush1.msra.mxu0 0.0
        %517 = vmatprep.subr.mxu0 0.0
        %518 = vmatpush1.msra.mxu0 0.0
        %519 = vmatprep.subr.mxu0 0.0
        %520 = vmatpush1.msra.mxu0 0.0
        %521 = vmatprep.subr.mxu0 0.0
        %522 = vmatpush1.msra.mxu0 0.0
        %523 = vmatprep.subr.mxu0 0.0
        %524 = vmatpush1.msra.mxu0 0.0
        %525 = vmatprep.subr.mxu0 0.0
        %526 = vmatpush1.msra.mxu0 0.0
        %527 = vmatprep.subr.mxu0 0.0
        %528 = vmatpush1.msra.mxu0 0.0
        %529 = vmatprep.mubr.f32.mxu0 0.0
        %530 = vmatmul.mubr.f32.gmra.mrb[0].mxu0 %v351
        %v531 = vpop.f32.mrb[0].mxu0
        %v532 = vadd.f32 0.0, %v531
        %v533 = vpop.f32.mrb[0].mxu0
        %v534 = vadd.f32 0.0, %v533
        %535 = vmatprep.mubr.f32.mxu0 0.0
        %536 = vmatmul.mubr.f32.gmra.mrb[0].mxu0 %v354
        %v537 = vpop.f32.mrb[0].mxu0
        %v538 = vadd.f32 0.0, %v537
        %v539 = vpop.f32.mrb[0].mxu0
        %v540 = vadd.f32 0.0, %v539
        %541 = vmatprep.mubr.f32.mxu0 0.0
        %542 = vmatmul.mubr.f32.gmra.mrb[0].mxu0 %v357
        %v543 = vpop.f32.mrb[0].mxu0
        %v544 = vadd.f32 0.0, %v543
        %v545 = vpop.f32.mrb[0].mxu0
        %v546 = vadd.f32 0.0, %v545
        %547 = vmatprep.mubr.f32.mxu0 0.0
        %548 = vmatmul.mubr.f32.gmra.mrb[0].mxu0 %v360
        %v549 = vpop.f32.mrb[0].mxu0
        %v550 = vadd.f32 0.0, %v549
        %v551 = vpop.f32.mrb[0].mxu0
        %v552 = vadd.f32 0.0, %v551
        %553 = vmatprep.mubr.f32.mxu0 0.0
        %554 = vmatmul.mubr.f32.gmra.mrb[0].mxu0 %v363
        %v555 = vpop.f32.mrb[0].mxu0
        %v556 = vadd.f32 0.0, %v555
        %v557 = vpop.f32.mrb[0].mxu0
        %v558 = vadd.f32 0.0, %v557
        %559 = vmatprep.mubr.f32.mxu0 0.0
        %560 = vmatmul.mubr.f32.gmra.mrb[0].mxu0 %v366
        %v561 = vpop.f32.mrb[0].mxu0
        %v562 = vadd.f32 0.0, %v561
        %v563 = vpop.f32.mrb[0].mxu0
        %v564 = vadd.f32 0.0, %v563
        %565 = vmatprep.mubr.f32.mxu0 0.0
        %566 = vmatmul.mubr.f32.gmra.mrb[0].mxu0 %v369
        %v567 = vpop.f32.mrb[0].mxu0
        %v568 = vadd.f32 0.0, %v567
        %v569 = vpop.f32.mrb[0].mxu0
        %v570 = vadd.f32 0.0, %v569
        %571 = vmatprep.mubr.f32.mxu0 0.0
        %572 = vmatmul.mubr.f32.gmra.mrb[0].mxu0 %v372
        %v573 = vpop.f32.mrb[0].mxu0
        %v574 = vadd.f32 0.0, %v573
        %v575 = vpop.f32.mrb[0].mxu0
        %v576 = vadd.f32 0.0, %v575
        %577 = vmatprep.mubr.f32.mxu0 0.0
        %578 = vmatmul.mubr.f32.gmra.mrb[0].mxu0 %v375
        %v579 = vpop.f32.mrb[0].mxu0
        %v580 = vadd.f32 0.0, %v579
        %v581 = vpop.f32.mrb[0].mxu0
        %v582 = vadd.f32 0.0, %v581
        %583 = vmatprep.mubr.f32.mxu0 0.0
        %584 = vmatmul.mubr.f32.gmra.mrb[0].mxu0 %v378
        %v585 = vpop.f32.mrb[0].mxu0
        %v586 = vadd.f32 0.0, %v585
        %v587 = vpop.f32.mrb[0].mxu0
        %v588 = vadd.f32 0.0, %v587
        %589 = vmatprep.mubr.f32.mxu0 0.0
        %590 = vmatmul.mubr.f32.gmra.mrb[0].mxu0 %v381
        %v591 = vpop.f32.mrb[0].mxu0
        %v592 = vadd.f32 0.0, %v591
        %v593 = vpop.f32.mrb[0].mxu0
        %v594 = vadd.f32 0.0, %v593
        %595 = vmatprep.mubr.f32.mxu0 0.0
        %596 = vmatmul.mubr.f32.gmra.mrb[0].mxu0 %v384
        %v597 = vpop.f32.mrb[0].mxu0
        %v598 = vadd.f32 0.0, %v597
        %v599 = vpop.f32.mrb[0].mxu0
        %v600 = vadd.f32 0.0, %v599
        %601 = vmatprep.mubr.f32.mxu0 0.0
        %602 = vmatmul.mubr.f32.gmra.mrb[0].mxu0 %v387
        %v603 = vpop.f32.mrb[0].mxu0
        %v604 = vadd.f32 0.0, %v603
        %v605 = vpop.f32.mrb[0].mxu0
        %v606 = vadd.f32 0.0, %v605
        %607 = vmatprep.mubr.f32.mxu0 0.0
        %608 = vmatmul.mubr.f32.gmra.mrb[0].mxu0 %v390
        %v609 = vpop.f32.mrb[0].mxu0
        %v610 = vadd.f32 0.0, %v609
        %v611 = vpop.f32.mrb[0].mxu0
        %v612 = vadd.f32 0.0, %v611
        %613 = vmatprep.mubr.f32.mxu0 0.0
        %614 = vmatmul.mubr.f32.gmra.mrb[0].mxu0 %v393
        %v615 = vpop.f32.mrb[0].mxu0
        %v616 = vadd.f32 0.0, %v615
        %v617 = vpop.f32.mrb[0].mxu0
        %v618 = vadd.f32 0.0, %v617
        %619 = vmatprep.mubr.f32.mxu0 0.0
        %620 = vmatmul.mubr.f32.gmra.mrb[0].mxu0 %v396
        %v621 = vpop.f32.mrb[0].mxu0
        %v622 = vadd.f32 0.0, %v621
        %v623 = vpop.f32.mrb[0].mxu0
        %v624 = vadd.f32 0.0, %v623
        %625 = vmatprep.mubr.f32.mxu0 0.0
        %626 = vmatmul.mubr.f32.gmra.mrb[0].mxu0 %v399
        %v627 = vpop.f32.mrb[0].mxu0
        %v628 = vadd.f32 0.0, %v627
        %v629 = vpop.f32.mrb[0].mxu0
        %v630 = vadd.f32 0.0, %v629
        %631 = vmatprep.mubr.f32.mxu0 0.0
        %632 = vmatmul.mubr.f32.gmra.mrb[0].mxu0 %v402
        %v633 = vpop.f32.mrb[0].mxu0
        %v634 = vadd.f32 0.0, %v633
        %v635 = vpop.f32.mrb[0].mxu0
        %v636 = vadd.f32 0.0, %v635
        %637 = vmatprep.mubr.f32.mxu0 0.0
        %638 = vmatmul.mubr.f32.gmra.mrb[0].mxu0 %v405
        %v639 = vpop.f32.mrb[0].mxu0
        %v640 = vadd.f32 0.0, %v639
        %v641 = vpop.f32.mrb[0].mxu0
        %v642 = vadd.f32 0.0, %v641
        %643 = vmatprep.mubr.f32.mxu0 0.0
        %644 = vmatmul.mubr.f32.gmra.mrb[0].mxu0 %v408
        %v645 = vpop.f32.mrb[0].mxu0
        %v646 = vadd.f32 0.0, %v645
        %v647 = vpop.f32.mrb[0].mxu0
        %v648 = vadd.f32 0.0, %v647
        %649 = vmatprep.mubr.f32.mxu0 0.0
        %650 = vmatmul.mubr.f32.gmra.mrb[0].mxu0 %v411
        %v651 = vpop.f32.mrb[0].mxu0
        %v652 = vadd.f32 0.0, %v651
        %v653 = vpop.f32.mrb[0].mxu0
        %v654 = vadd.f32 0.0, %v653
        %655 = vmatprep.mubr.f32.mxu0 0.0
        %656 = vmatmul.mubr.f32.gmra.mrb[0].mxu0 %v414
        %v657 = vpop.f32.mrb[0].mxu0
        %v658 = vadd.f32 0.0, %v657
        %v659 = vpop.f32.mrb[0].mxu0
        %v660 = vadd.f32 0.0, %v659
        %661 = vmatprep.mubr.f32.mxu0 0.0
        %662 = vmatmul.mubr.f32.gmra.mrb[0].mxu0 %v417
        %v663 = vpop.f32.mrb[0].mxu0
        %v664 = vadd.f32 0.0, %v663
        %v665 = vpop.f32.mrb[0].mxu0
        %v666 = vadd.f32 0.0, %v665
        %667 = vmatprep.mubr.f32.mxu0 0.0
        %668 = vmatmul.mubr.f32.gmra.mrb[0].mxu0 %v420
        %v669 = vpop.f32.mrb[0].mxu0
        %v670 = vadd.f32 0.0, %v669
        %v671 = vpop.f32.mrb[0].mxu0
        %v672 = vadd.f32 0.0, %v671
        %673 = vmatprep.mubr.f32.mxu0 0.0
        %674 = vmatmul.mubr.f32.gmra.mrb[0].mxu0 %v423
        %v675 = vpop.f32.mrb[0].mxu0
        %v676 = vadd.f32 0.0, %v675
        %v677 = vpop.f32.mrb[0].mxu0
        %v678 = vadd.f32 0.0, %v677
        %679 = vmatprep.mubr.f32.mxu0 0.0
        %680 = vmatmul.mubr.f32.gmra.mrb[0].mxu0 %v426
        %v681 = vpop.f32.mrb[0].mxu0
        %v682 = vadd.f32 0.0, %v681
        %v683 = vpop.f32.mrb[0].mxu0
        %v684 = vadd.f32 0.0, %v683
        %685 = vmatprep.mubr.f32.mxu0 0.0
        %686 = vmatmul.mubr.f32.gmra.mrb[0].mxu0 %v429
        %v687 = vpop.f32.mrb[0].mxu0
        %v688 = vadd.f32 0.0, %v687
        %v689 = vpop.f32.mrb[0].mxu0
        %v690 = vadd.f32 0.0, %v689
        %691 = vmatprep.mubr.f32.mxu0 0.0
        %692 = vmatmul.mubr.f32.gmra.mrb[0].mxu0 %v432
        %v693 = vpop.f32.mrb[0].mxu0
        %v694 = vadd.f32 0.0, %v693
        %v695 = vpop.f32.mrb[0].mxu0
        %v696 = vadd.f32 0.0, %v695
        %697 = vmatprep.mubr.f32.mxu0 0.0
        %698 = vmatmul.mubr.f32.gmra.mrb[0].mxu0 %v435
        %v699 = vpop.f32.mrb[0].mxu0
        %v700 = vadd.f32 0.0, %v699
        %v701 = vpop.f32.mrb[0].mxu0
        %v702 = vadd.f32 0.0, %v701
        %703 = vmatprep.mubr.f32.mxu0 0.0
        %704 = vmatmul.mubr.f32.gmra.mrb[0].mxu0 %v438
        %v705 = vpop.f32.mrb[0].mxu0
        %v706 = vadd.f32 0.0, %v705
        %v707 = vpop.f32.mrb[0].mxu0
        %v708 = vadd.f32 0.0, %v707
        %709 = vmatprep.mubr.f32.mxu0 0.0
        %710 = vmatmul.mubr.f32.gmra.mrb[0].mxu0 %v441
        %v711 = vpop.f32.mrb[0].mxu0
        %v712 = vadd.f32 0.0, %v711
        %v713 = vpop.f32.mrb[0].mxu0
        %v714 = vadd.f32 0.0, %v713
        %715 = vmatprep.mubr.f32.mxu0 0.0
        %716 = vmatmul.mubr.f32.gmra.mrb[0].mxu0 %v444
        %v717 = vpop.f32.mrb[0].mxu0
        %v718 = vadd.f32 0.0, %v717
        %v719 = vpop.f32.mrb[0].mxu0
        %v720 = vadd.f32 0.0, %v719
        %721 = vmatprep.mubr.f32.mxu0 0.0
        %722 = vmatmul.mubr.f32.gmra.mrb[0].mxu0 %v447
        %v723 = vpop.f32.mrb[0].mxu0
        %v724 = vadd.f32 0.0, %v723
        %v725 = vpop.f32.mrb[0].mxu0
        %v726 = vadd.f32 0.0, %v725
        %727 = vmatprep.mubr.f32.mxu0 0.0
        %728 = vmatmul.mubr.f32.gmra.mrb[0].mxu0 %v450
        %v729 = vpop.f32.mrb[0].mxu0
        %v730 = vadd.f32 0.0, %v729
        %v731 = vpop.f32.mrb[0].mxu0
        %v732 = vadd.f32 0.0, %v731
        %733 = vmatprep.mubr.f32.mxu0 0.0
        %734 = vmatmul.mubr.f32.gmra.mrb[0].mxu0 %v453
        %v735 = vpop.f32.mrb[0].mxu0
        %v736 = vadd.f32 0.0, %v735
        %v737 = vpop.f32.mrb[0].mxu0
        %v738 = vadd.f32 0.0, %v737
        %739 = vmatprep.mubr.f32.mxu0 0.0
        %740 = vmatmul.mubr.f32.gmra.mrb[0].mxu0 %v456
        %v741 = vpop.f32.mrb[0].mxu0
        %v742 = vadd.f32 0.0, %v741
        %v743 = vpop.f32.mrb[0].mxu0
        %v744 = vadd.f32 0.0, %v743
        %745 = vdwg.mxu0
        %746 = vmatprep.subr.mxu0 0.0
        %747 = vmatpush1.msra.mxu0 %v463
        %748 = vmatprep.subr.mxu0 0.0
        %749 = vmatpush1.msra.mxu0 0.0
        %750 = vmatprep.subr.mxu0 0.0
        %751 = vmatpush1.msra.mxu0 0.0
        %752 = vmatprep.subr.mxu0 0.0
        %753 = vmatpush1.msra.mxu0 0.0
        %754 = vmatprep.subr.mxu0 0.0
        %755 = vmatpush1.msra.mxu0 0.0
        %756 = vmatprep.subr.mxu0 0.0
        %757 = vmatpush1.msra.mxu0 0.0
        %758 = vmatprep.subr.mxu0 0.0
        %759 = vmatpush1.msra.mxu0 0.0
        %760 = vmatprep.subr.mxu0 0.0
        %761 = vmatpush1.msra.mxu0 0.0
        %762 = vmatprep.subr.mxu0 0.0
        %763 = vmatpush1.msra.mxu0 0.0
        %764 = vmatprep.subr.mxu0 0.0
        %765 = vmatpush1.msra.mxu0 0.0
        %766 = vmatprep.subr.mxu0 0.0
        %767 = vmatpush1.msra.mxu0 0.0
        %768 = vmatprep.subr.mxu0 0.0
        %769 = vmatpush1.msra.mxu0 0.0
        %770 = vmatprep.subr.mxu0 0.0
        %771 = vmatpush1.msra.mxu0 0.0
        %772 = vmatprep.subr.mxu0 0.0
        %773 = vmatpush1.msra.mxu0 0.0
        %774 = vmatprep.subr.mxu0 0.0
        %775 = vmatpush1.msra.mxu0 0.0
        %776 = vmatprep.subr.mxu0 0.0
        %777 = vmatpush1.msra.mxu0 0.0
        %778 = vmatprep.subr.mxu0 0.0
        %779 = vmatpush1.msra.mxu0 0.0
        %780 = vmatprep.subr.mxu0 0.0
        %781 = vmatpush1.msra.mxu0 0.0
        %782 = vmatprep.subr.mxu0 0.0
        %783 = vmatpush1.msra.mxu0 0.0
        %784 = vmatprep.subr.mxu0 0.0
        %785 = vmatpush1.msra.mxu0 0.0
        %786 = vmatprep.subr.mxu0 0.0
        %787 = vmatpush1.msra.mxu0 0.0
        %788 = vmatprep.subr.mxu0 0.0
        %789 = vmatpush1.msra.mxu0 0.0
        %790 = vmatprep.subr.mxu0 0.0
        %791 = vmatpush1.msra.mxu0 0.0
        %792 = vmatprep.subr.mxu0 0.0
        %793 = vmatpush1.msra.mxu0 0.0
        %794 = vmatprep.subr.mxu0 0.0
        %795 = vmatpush1.msra.mxu0 0.0
        %796 = vmatprep.subr.mxu0 0.0
        %797 = vmatpush1.msra.mxu0 0.0
        %798 = vmatprep.subr.mxu0 0.0
        %799 = vmatpush1.msra.mxu0 0.0
        %800 = vmatprep.subr.mxu0 0.0
        %801 = vmatpush1.msra.mxu0 0.0
        %802 = vmatprep.subr.mxu0 0.0
        %803 = vmatpush1.msra.mxu0 0.0
        %804 = vmatprep.subr.mxu0 0.0
        %805 = vmatpush1.msra.mxu0 0.0
        %806 = vmatprep.subr.mxu0 0.0
        %807 = vmatpush1.msra.mxu0 0.0
        %808 = vmatprep.subr.mxu0 0.0
        %809 = vmatpush1.msra.mxu0 0.0
        %810 = vmatprep.mubr.f32.mxu0 0.0
        %811 = vmatmul.mubr.f32.gmra.mrb[0].mxu0 %v351
        %v812 = vpop.f32.mrb[0].mxu0
        %v813 = vadd.f32 0.0, %v812
        %v814 = vpop.f32.mrb[0].mxu0
        %815 = vmatprep.mubr.f32.mxu0 0.0
        %816 = vmatmul.mubr.f32.gmra.mrb[0].mxu0 %v354
        %v817 = vpop.f32.mrb[0].mxu0
        %v818 = vadd.f32 0.0, %v817
        %v819 = vpop.f32.mrb[0].mxu0
        %820 = vmatprep.mubr.f32.mxu0 0.0
        %821 = vmatmul.mubr.f32.gmra.mrb[0].mxu0 %v357
        %v822 = vpop.f32.mrb[0].mxu0
        %v823 = vadd.f32 0.0, %v822
        %v824 = vpop.f32.mrb[0].mxu0
        %825 = vmatprep.mubr.f32.mxu0 0.0
        %826 = vmatmul.mubr.f32.gmra.mrb[0].mxu0 %v360
        %v827 = vpop.f32.mrb[0].mxu0
        %v828 = vadd.f32 0.0, %v827
        %v829 = vpop.f32.mrb[0].mxu0
        %830 = vmatprep.mubr.f32.mxu0 0.0
        %831 = vmatmul.mubr.f32.gmra.mrb[0].mxu0 %v363
        %v832 = vpop.f32.mrb[0].mxu0
        %v833 = vadd.f32 0.0, %v832
        %v834 = vpop.f32.mrb[0].mxu0
        %835 = vmatprep.mubr.f32.mxu0 0.0
        %836 = vmatmul.mubr.f32.gmra.mrb[0].mxu0 %v366
        %v837 = vpop.f32.mrb[0].mxu0
        %v838 = vadd.f32 0.0, %v837
        %v839 = vpop.f32.mrb[0].mxu0
        %840 = vmatprep.mubr.f32.mxu0 0.0
        %841 = vmatmul.mubr.f32.gmra.mrb[0].mxu0 %v369
        %v842 = vpop.f32.mrb[0].mxu0
        %v843 = vadd.f32 0.0, %v842
        %v844 = vpop.f32.mrb[0].mxu0
        %845 = vmatprep.mubr.f32.mxu0 0.0
        %846 = vmatmul.mubr.f32.gmra.mrb[0].mxu0 %v372
        %v847 = vpop.f32.mrb[0].mxu0
        %v848 = vadd.f32 0.0, %v847
        %v849 = vpop.f32.mrb[0].mxu0
        %850 = vmatprep.mubr.f32.mxu0 0.0
        %851 = vmatmul.mubr.f32.gmra.mrb[0].mxu0 %v375
        %v852 = vpop.f32.mrb[0].mxu0
        %v853 = vadd.f32 0.0, %v852
        %v854 = vpop.f32.mrb[0].mxu0
        %855 = vmatprep.mubr.f32.mxu0 0.0
        %856 = vmatmul.mubr.f32.gmra.mrb[0].mxu0 %v378
        %v857 = vpop.f32.mrb[0].mxu0
        %v858 = vadd.f32 0.0, %v857
        %v859 = vpop.f32.mrb[0].mxu0
        %860 = vmatprep.mubr.f32.mxu0 0.0
        %861 = vmatmul.mubr.f32.gmra.mrb[0].mxu0 %v381
        %v862 = vpop.f32.mrb[0].mxu0
        %v863 = vadd.f32 0.0, %v862
        %v864 = vpop.f32.mrb[0].mxu0
        %865 = vmatprep.mubr.f32.mxu0 0.0
        %866 = vmatmul.mubr.f32.gmra.mrb[0].mxu0 %v384
        %v867 = vpop.f32.mrb[0].mxu0
        %v868 = vadd.f32 0.0, %v867
        %v869 = vpop.f32.mrb[0].mxu0
        %870 = vmatprep.mubr.f32.mxu0 0.0
        %871 = vmatmul.mubr.f32.gmra.mrb[0].mxu0 %v387
        %v872 = vpop.f32.mrb[0].mxu0
        %v873 = vadd.f32 0.0, %v872
        %v874 = vpop.f32.mrb[0].mxu0
        %875 = vmatprep.mubr.f32.mxu0 0.0
        %876 = vmatmul.mubr.f32.gmra.mrb[0].mxu0 %v390
        %v877 = vpop.f32.mrb[0].mxu0
        %v878 = vadd.f32 0.0, %v877
        %v879 = vpop.f32.mrb[0].mxu0
        %880 = vmatprep.mubr.f32.mxu0 0.0
        %881 = vmatmul.mubr.f32.gmra.mrb[0].mxu0 %v393
        %v882 = vpop.f32.mrb[0].mxu0
        %v883 = vadd.f32 0.0, %v882
        %v884 = vpop.f32.mrb[0].mxu0
        %885 = vmatprep.mubr.f32.mxu0 0.0
        %886 = vmatmul.mubr.f32.gmra.mrb[0].mxu0 %v396
        %v887 = vpop.f32.mrb[0].mxu0
        %v888 = vadd.f32 0.0, %v887
        %v889 = vpop.f32.mrb[0].mxu0
        %890 = vmatprep.mubr.f32.mxu0 0.0
        %891 = vmatmul.mubr.f32.gmra.mrb[0].mxu0 %v399
        %v892 = vpop.f32.mrb[0].mxu0
        %v893 = vadd.f32 0.0, %v892
        %v894 = vpop.f32.mrb[0].mxu0
        %895 = vmatprep.mubr.f32.mxu0 0.0
        %896 = vmatmul.mubr.f32.gmra.mrb[0].mxu0 %v402
        %v897 = vpop.f32.mrb[0].mxu0
        %v898 = vadd.f32 0.0, %v897
        %v899 = vpop.f32.mrb[0].mxu0
        %900 = vmatprep.mubr.f32.mxu0 0.0
        %901 = vmatmul.mubr.f32.gmra.mrb[0].mxu0 %v405
        %v902 = vpop.f32.mrb[0].mxu0
        %v903 = vadd.f32 0.0, %v902
        %v904 = vpop.f32.mrb[0].mxu0
        %905 = vmatprep.mubr.f32.mxu0 0.0
        %906 = vmatmul.mubr.f32.gmra.mrb[0].mxu0 %v408
        %v907 = vpop.f32.mrb[0].mxu0
        %v908 = vadd.f32 0.0, %v907
        %v909 = vpop.f32.mrb[0].mxu0
        %910 = vmatprep.mubr.f32.mxu0 0.0
        %911 = vmatmul.mubr.f32.gmra.mrb[0].mxu0 %v411
        %v912 = vpop.f32.mrb[0].mxu0
        %v913 = vadd.f32 0.0, %v912
        %v914 = vpop.f32.mrb[0].mxu0
        %915 = vmatprep.mubr.f32.mxu0 0.0
        %916 = vmatmul.mubr.f32.gmra.mrb[0].mxu0 %v414
        %v917 = vpop.f32.mrb[0].mxu0
        %v918 = vadd.f32 0.0, %v917
        %v919 = vpop.f32.mrb[0].mxu0
        %920 = vmatprep.mubr.f32.mxu0 0.0
        %921 = vmatmul.mubr.f32.gmra.mrb[0].mxu0 %v417
        %v922 = vpop.f32.mrb[0].mxu0
        %v923 = vadd.f32 0.0, %v922
        %v924 = vpop.f32.mrb[0].mxu0
        %925 = vmatprep.mubr.f32.mxu0 0.0
        %926 = vmatmul.mubr.f32.gmra.mrb[0].mxu0 %v420
        %v927 = vpop.f32.mrb[0].mxu0
        %v928 = vadd.f32 0.0, %v927
        %v929 = vpop.f32.mrb[0].mxu0
        %930 = vmatprep.mubr.f32.mxu0 0.0
        %931 = vmatmul.mubr.f32.gmra.mrb[0].mxu0 %v423
        %v932 = vpop.f32.mrb[0].mxu0
        %v933 = vadd.f32 0.0, %v932
        %v934 = vpop.f32.mrb[0].mxu0
        %935 = vmatprep.mubr.f32.mxu0 0.0
        %936 = vmatmul.mubr.f32.gmra.mrb[0].mxu0 %v426
        %v937 = vpop.f32.mrb[0].mxu0
        %v938 = vadd.f32 0.0, %v937
        %v939 = vpop.f32.mrb[0].mxu0
        %940 = vmatprep.mubr.f32.mxu0 0.0
        %941 = vmatmul.mubr.f32.gmra.mrb[0].mxu0 %v429
        %v942 = vpop.f32.mrb[0].mxu0
        %v943 = vadd.f32 0.0, %v942
        %v944 = vpop.f32.mrb[0].mxu0
        %945 = vmatprep.mubr.f32.mxu0 0.0
        %946 = vmatmul.mubr.f32.gmra.mrb[0].mxu0 %v432
        %v947 = vpop.f32.mrb[0].mxu0
        %v948 = vadd.f32 0.0, %v947
        %v949 = vpop.f32.mrb[0].mxu0
        %950 = vmatprep.mubr.f32.mxu0 0.0
        %951 = vmatmul.mubr.f32.gmra.mrb[0].mxu0 %v435
        %v952 = vpop.f32.mrb[0].mxu0
        %v953 = vadd.f32 0.0, %v952
        %v954 = vpop.f32.mrb[0].mxu0
        %955 = vmatprep.mubr.f32.mxu0 0.0
        %956 = vmatmul.mubr.f32.gmra.mrb[0].mxu0 %v438
        %v957 = vpop.f32.mrb[0].mxu0
        %v958 = vadd.f32 0.0, %v957
        %v959 = vpop.f32.mrb[0].mxu0
        %960 = vmatprep.mubr.f32.mxu0 0.0
        %961 = vmatmul.mubr.f32.gmra.mrb[0].mxu0 %v441
        %v962 = vpop.f32.mrb[0].mxu0
        %v963 = vadd.f32 0.0, %v962
        %v964 = vpop.f32.mrb[0].mxu0
        %965 = vmatprep.mubr.f32.mxu0 0.0
        %966 = vmatmul.mubr.f32.gmra.mrb[0].mxu0 %v444
        %v967 = vpop.f32.mrb[0].mxu0
        %v968 = vadd.f32 0.0, %v967
        %v969 = vpop.f32.mrb[0].mxu0
        %970 = vmatprep.mubr.f32.mxu0 0.0
        %971 = vmatmul.mubr.f32.gmra.mrb[0].mxu0 %v447
        %v972 = vpop.f32.mrb[0].mxu0
        %v973 = vadd.f32 0.0, %v972
        %v974 = vpop.f32.mrb[0].mxu0
        %975 = vmatprep.mubr.f32.mxu0 0.0
        %976 = vmatmul.mubr.f32.gmra.mrb[0].mxu0 %v450
        %v977 = vpop.f32.mrb[0].mxu0
        %v978 = vadd.f32 0.0, %v977
        %v979 = vpop.f32.mrb[0].mxu0
        %980 = vmatprep.mubr.f32.mxu0 0.0
        %981 = vmatmul.mubr.f32.gmra.mrb[0].mxu0 %v453
        %v982 = vpop.f32.mrb[0].mxu0
        %v983 = vadd.f32 0.0, %v982
        %v984 = vpop.f32.mrb[0].mxu0
        %985 = vmatprep.mubr.f32.mxu0 0.0
        %986 = vmatmul.mubr.f32.gmra.mrb[0].mxu0 %v456
        %v987 = vpop.f32.mrb[0].mxu0
        %v988 = vadd.f32 0.0, %v987
        %v989 = vpop.f32.mrb[0].mxu0
        %990 = vdwg.mxu0
        %991 = vst [vmem:[#allocation2 + $0x8] sm:$0xff] %v532
        %992 = vst [vmem:[#allocation2 + $0x10] sm:$0xff] %v534
        %vm993 = vcmask 556032
        %994 = vst.msk [vmem:[#allocation2 + $0x18] sm:$0xff] %vm993, %v813
        %995 = vst [vmem:[#allocation2 + $0x30] sm:$0xff] %v538
        %996 = vst [vmem:[#allocation2 + $0x38] sm:$0xff] %v540
        %997 = vst.msk [vmem:[#allocation2 + $0x40] sm:$0xff] %vm993, %v818
        %998 = vst [vmem:[#allocation2 + $0x58] sm:$0xff] %v544
        %999 = vst [vmem:[#allocation2 + $0x60] sm:$0xff] %v546
        %1000 = vst.msk [vmem:[#allocation2 + $0x68] sm:$0xff] %vm993, %v823
        %1001 = vst [vmem:[#allocation2 + $0x80] sm:$0xff] %v550
        %1002 = vst [vmem:[#allocation2 + $0x88] sm:$0xff] %v552
        %1003 = vst.msk [vmem:[#allocation2 + $0x90] sm:$0xff] %vm993, %v828
        %1004 = vst [vmem:[#allocation2 + $0xa8] sm:$0xff] %v556
        %1005 = vst [vmem:[#allocation2 + $0xb0] sm:$0xff] %v558
        %1006 = vst.msk [vmem:[#allocation2 + $0xb8] sm:$0xff] %vm993, %v833
        %1007 = vst [vmem:[#allocation2 + $0xd0] sm:$0xff] %v562
        %1008 = vst [vmem:[#allocation2 + $0xd8] sm:$0xff] %v564
        %1009 = vst.msk [vmem:[#allocation2 + $0xe0] sm:$0xff] %vm993, %v838
        %1010 = vst [vmem:[#allocation2 + $0xf8] sm:$0xff] %v568
        %1011 = vst [vmem:[#allocation2 + $0x100] sm:$0xff] %v570
        %1012 = vst.msk [vmem:[#allocation2 + $0x108] sm:$0xff] %vm993, %v843
        %1013 = vst [vmem:[#allocation2 + $0x120] sm:$0xff] %v574
        %1014 = vst [vmem:[#allocation2 + $0x128] sm:$0xff] %v576
        %1015 = vst.msk [vmem:[#allocation2 + $0x130] sm:$0xff] %vm993, %v848
        %1016 = vst [vmem:[#allocation2 + $0x148] sm:$0xff] %v580
        %1017 = vst [vmem:[#allocation2 + $0x150] sm:$0xff] %v582
        %1018 = vst.msk [vmem:[#allocation2 + $0x158] sm:$0xff] %vm993, %v853
        %1019 = vst [vmem:[#allocation2 + $0x170] sm:$0xff] %v586
        %1020 = vst [vmem:[#allocation2 + $0x178] sm:$0xff] %v588
        %1021 = vst.msk [vmem:[#allocation2 + $0x180] sm:$0xff] %vm993, %v858
        %1022 = vst [vmem:[#allocation2 + $0x198] sm:$0xff] %v592
        %1023 = vst [vmem:[#allocation2 + $0x1a0] sm:$0xff] %v594
        %1024 = vst.msk [vmem:[#allocation2 + $0x1a8] sm:$0xff] %vm993, %v863
        %1025 = vst [vmem:[#allocation2 + $0x1c0] sm:$0xff] %v598
        %1026 = vst [vmem:[#allocation2 + $0x1c8] sm:$0xff] %v600
        %1027 = vst.msk [vmem:[#allocation2 + $0x1d0] sm:$0xff] %vm993, %v868
        %1028 = vst [vmem:[#allocation2 + $0x1e8] sm:$0xff] %v604
        %1029 = vst [vmem:[#allocation2 + $0x1f0] sm:$0xff] %v606
        %1030 = vst.msk [vmem:[#allocation2 + $0x1f8] sm:$0xff] %vm993, %v873
        %1031 = vst [vmem:[#allocation2 + $0x210] sm:$0xff] %v610
        %1032 = vst [vmem:[#allocation2 + $0x218] sm:$0xff] %v612
        %1033 = vst.msk [vmem:[#allocation2 + $0x220] sm:$0xff] %vm993, %v878
        %1034 = vst [vmem:[#allocation2 + $0x238] sm:$0xff] %v616
        %1035 = vst [vmem:[#allocation2 + $0x240] sm:$0xff] %v618
        %1036 = vst.msk [vmem:[#allocation2 + $0x248] sm:$0xff] %vm993, %v883
        %1037 = vst [vmem:[#allocation2 + $0x260] sm:$0xff] %v622
        %1038 = vst [vmem:[#allocation2 + $0x268] sm:$0xff] %v624
        %1039 = vst.msk [vmem:[#allocation2 + $0x270] sm:$0xff] %vm993, %v888
        %1040 = vst [vmem:[#allocation2 + $0x288] sm:$0xff] %v628
        %1041 = vst [vmem:[#allocation2 + $0x290] sm:$0xff] %v630
        %1042 = vst.msk [vmem:[#allocation2 + $0x298] sm:$0xff] %vm993, %v893
        %1043 = vst [vmem:[#allocation2 + $0x2b0] sm:$0xff] %v634
        %1044 = vst [vmem:[#allocation2 + $0x2b8] sm:$0xff] %v636
        %1045 = vst.msk [vmem:[#allocation2 + $0x2c0] sm:$0xff] %vm993, %v898
        %1046 = vst [vmem:[#allocation2 + $0x2d8] sm:$0xff] %v640
        %1047 = vst [vmem:[#allocation2 + $0x2e0] sm:$0xff] %v642
        %1048 = vst.msk [vmem:[#allocation2 + $0x2e8] sm:$0xff] %vm993, %v903
        %1049 = vst [vmem:[#allocation2 + $0x300] sm:$0xff] %v646
        %1050 = vst [vmem:[#allocation2 + $0x308] sm:$0xff] %v648
        %1051 = vst.msk [vmem:[#allocation2 + $0x310] sm:$0xff] %vm993, %v908
        %1052 = vst [vmem:[#allocation2 + $0x328] sm:$0xff] %v652
        %1053 = vst [vmem:[#allocation2 + $0x330] sm:$0xff] %v654
        %1054 = vst.msk [vmem:[#allocation2 + $0x338] sm:$0xff] %vm993, %v913
        %1055 = vst [vmem:[#allocation2 + $0x350] sm:$0xff] %v658
        %1056 = vst [vmem:[#allocation2 + $0x358] sm:$0xff] %v660
        %1057 = vst.msk [vmem:[#allocation2 + $0x360] sm:$0xff] %vm993, %v918
        %1058 = vst [vmem:[#allocation2 + $0x378] sm:$0xff] %v664
        %1059 = vst [vmem:[#allocation2 + $0x380] sm:$0xff] %v666
        %1060 = vst.msk [vmem:[#allocation2 + $0x388] sm:$0xff] %vm993, %v923
        %1061 = vst [vmem:[#allocation2 + $0x3a0] sm:$0xff] %v670
        %1062 = vst [vmem:[#allocation2 + $0x3a8] sm:$0xff] %v672
        %1063 = vst.msk [vmem:[#allocation2 + $0x3b0] sm:$0xff] %vm993, %v928
        %1064 = vst [vmem:[#allocation2 + $0x3c8] sm:$0xff] %v676
        %1065 = vst [vmem:[#allocation2 + $0x3d0] sm:$0xff] %v678
        %1066 = vst.msk [vmem:[#allocation2 + $0x3d8] sm:$0xff] %vm993, %v933
        %1067 = vst [vmem:[#allocation2 + $0x3f0] sm:$0xff] %v682
        %1068 = vst [vmem:[#allocation2 + $0x3f8] sm:$0xff] %v684
        %1069 = vst.msk [vmem:[#allocation2 + $0x400] sm:$0xff] %vm993, %v938
        %1070 = vst [vmem:[#allocation2 + $0x418] sm:$0xff] %v688
        %1071 = vst [vmem:[#allocation2 + $0x420] sm:$0xff] %v690
        %1072 = vst.msk [vmem:[#allocation2 + $0x428] sm:$0xff] %vm993, %v943
        %1073 = vst [vmem:[#allocation2 + $0x440] sm:$0xff] %v694
        %1074 = vst [vmem:[#allocation2 + $0x448] sm:$0xff] %v696
        %1075 = vst.msk [vmem:[#allocation2 + $0x450] sm:$0xff] %vm993, %v948
        %1076 = vst [vmem:[#allocation2 + $0x468] sm:$0xff] %v700
        %1077 = vst [vmem:[#allocation2 + $0x470] sm:$0xff] %v702
        %1078 = vst.msk [vmem:[#allocation2 + $0x478] sm:$0xff] %vm993, %v953
        %1079 = vst [vmem:[#allocation2 + $0x490] sm:$0xff] %v706
        %1080 = vst [vmem:[#allocation2 + $0x498] sm:$0xff] %v708
        %1081 = vst.msk [vmem:[#allocation2 + $0x4a0] sm:$0xff] %vm993, %v958
        %1082 = vst [vmem:[#allocation2 + $0x4b8] sm:$0xff] %v712
        %1083 = vst [vmem:[#allocation2 + $0x4c0] sm:$0xff] %v714
        %1084 = vst.msk [vmem:[#allocation2 + $0x4c8] sm:$0xff] %vm993, %v963
        %1085 = vst [vmem:[#allocation2 + $0x4e0] sm:$0xff] %v718
        %1086 = vst [vmem:[#allocation2 + $0x4e8] sm:$0xff] %v720
        %1087 = vst.msk [vmem:[#allocation2 + $0x4f0] sm:$0xff] %vm993, %v968
        %1088 = vst [vmem:[#allocation2 + $0x508] sm:$0xff] %v724
        %1089 = vst [vmem:[#allocation2 + $0x510] sm:$0xff] %v726
        %1090 = vst.msk [vmem:[#allocation2 + $0x518] sm:$0xff] %vm993, %v973
        %1091 = vst [vmem:[#allocation2 + $0x530] sm:$0xff] %v730
        %1092 = vst [vmem:[#allocation2 + $0x538] sm:$0xff] %v732
        %1093 = vst.msk [vmem:[#allocation2 + $0x540] sm:$0xff] %vm993, %v978
        %1094 = vst [vmem:[#allocation2 + $0x558] sm:$0xff] %v736
        %1095 = vst [vmem:[#allocation2 + $0x560] sm:$0xff] %v738
        %1096 = vst.msk [vmem:[#allocation2 + $0x568] sm:$0xff] %vm993, %v983
        %1097 = vst [vmem:[#allocation2 + $0x580] sm:$0xff] %v742
        %1098 = vst [vmem:[#allocation2 + $0x588] sm:$0xff] %v744
        %1099 = vst.msk [vmem:[#allocation2 + $0x590] sm:$0xff] %vm993, %v988
        %v1100 = vld [vmem:[%s2] sm:$0xff]
        %v1101 = vld [vmem:[%s2 + $0x8] sm:$0xff]
        %v1102 = vld [vmem:[%s2 + $0x10] sm:$0xff]
        %v1103 = vld [vmem:[%s2 + $0x18] sm:$0xff]
        %1105 = vset.pattern.permute.xlu0 0
        %1106 = vperm.xlu0 %1105, %v1100
        %v1107 = vpop.permute.xlu0 %1106
        %1110 = vset.pattern.permute.xlu0 0
        %1111 = vperm.xlu0 %1110, %v1101
        %v1112 = vpop.permute.xlu0 %1111
        %1115 = vset.pattern.permute.xlu0 0
        %1116 = vperm.xlu0 %1115, %v1102
        %v1117 = vpop.permute.xlu0 %1116
        %1120 = vset.pattern.permute.xlu0 0
        %1121 = vperm.xlu0 %1120, %v1103
        %v1122 = vpop.permute.xlu0 %1121
        %v1124 = vld [vmem:[#allocation2] sm:$0xff]
        %v1125 = vld [vmem:[#allocation2 + $0x8] sm:$0xff]
        %v1126 = vld [vmem:[#allocation2 + $0x10] sm:$0xff]
        %v1127 = vld [vmem:[#allocation2 + $0x18] sm:$0xff]
        %v1128 = vld [vmem:[#allocation2 + $0x28] sm:$0xff]
        %v1129 = vld [vmem:[#allocation2 + $0x30] sm:$0xff]
        %v1130 = vld [vmem:[#allocation2 + $0x38] sm:$0xff]
        %v1131 = vld [vmem:[#allocation2 + $0x40] sm:$0xff]
        %v1132 = vld [vmem:[#allocation2 + $0x50] sm:$0xff]
        %v1133 = vld [vmem:[#allocation2 + $0x58] sm:$0xff]
        %v1134 = vld [vmem:[#allocation2 + $0x60] sm:$0xff]
        %v1135 = vld [vmem:[#allocation2 + $0x68] sm:$0xff]
        %v1136 = vld [vmem:[#allocation2 + $0x78] sm:$0xff]
        %v1137 = vld [vmem:[#allocation2 + $0x80] sm:$0xff]
        %v1138 = vld [vmem:[#allocation2 + $0x88] sm:$0xff]
        %v1139 = vld [vmem:[#allocation2 + $0x90] sm:$0xff]
        %v1140 = vadd.f32 %v1107, %v1124
        %v1141 = vadd.f32 %v1107, %v1125
        %v1142 = vadd.f32 %v1107, %v1126
        %v1143 = vadd.f32 %v1107, %v1127
        %v1144 = vadd.f32 %v1112, %v1128
        %v1145 = vadd.f32 %v1112, %v1129
        %v1146 = vadd.f32 %v1112, %v1130
        %v1147 = vadd.f32 %v1112, %v1131
        %v1148 = vadd.f32 %v1117, %v1132
        %v1149 = vadd.f32 %v1117, %v1133
        %v1150 = vadd.f32 %v1117, %v1134
        %v1151 = vadd.f32 %v1117, %v1135
        %v1152 = vadd.f32 %v1122, %v1136
        %v1153 = vadd.f32 %v1122, %v1137
        %v1154 = vadd.f32 %v1122, %v1138
        %v1155 = vadd.f32 %v1122, %v1139
        %v1156 = vld [vmem:[#allocation2 + $0xa0] sm:$0xff]
        %v1157 = vld [vmem:[#allocation2 + $0xa8] sm:$0xff]
        %v1158 = vld [vmem:[#allocation2 + $0xb0] sm:$0xff]
        %v1159 = vld [vmem:[#allocation2 + $0xb8] sm:$0xff]
        %v1160 = vld [vmem:[#allocation2 + $0xc8] sm:$0xff]
        %v1161 = vld [vmem:[#allocation2 + $0xd0] sm:$0xff]
        %v1162 = vld [vmem:[#allocation2 + $0xd8] sm:$0xff]
        %v1163 = vld [vmem:[#allocation2 + $0xe0] sm:$0xff]
        %v1164 = vld [vmem:[#allocation2 + $0xf0] sm:$0xff]
        %v1165 = vld [vmem:[#allocation2 + $0xf8] sm:$0xff]
        %v1166 = vld [vmem:[#allocation2 + $0x100] sm:$0xff]
        %v1167 = vld [vmem:[#allocation2 + $0x108] sm:$0xff]
        %v1168 = vld [vmem:[#allocation2 + $0x118] sm:$0xff]
        %v1169 = vld [vmem:[#allocation2 + $0x120] sm:$0xff]
        %v1170 = vld [vmem:[#allocation2 + $0x128] sm:$0xff]
        %v1171 = vld [vmem:[#allocation2 + $0x130] sm:$0xff]
        %1188 = vrot.lane.b32.xlu0 %v1156, 127
        %v1189 = vpop.permute.xlu0 %1188
        %1190 = vrot.lane.b32.xlu0 %v1157, 127
        %v1191 = vpop.permute.xlu0 %1190
        %1192 = vrot.lane.b32.xlu0 %v1158, 127
        %v1193 = vpop.permute.xlu0 %1192
        %1194 = vrot.lane.b32.xlu0 %v1159, 127
        %v1195 = vpop.permute.xlu0 %1194
        %1196 = vrot.lane.b32.xlu0 %v1160, 127
        %v1197 = vpop.permute.xlu0 %1196
        %1198 = vrot.lane.b32.xlu0 %v1161, 127
        %v1199 = vpop.permute.xlu0 %1198
        %1200 = vrot.lane.b32.xlu0 %v1162, 127
        %v1201 = vpop.permute.xlu0 %1200
        %1202 = vrot.lane.b32.xlu0 %v1163, 127
        %v1203 = vpop.permute.xlu0 %1202
        %1204 = vrot.lane.b32.xlu0 %v1164, 127
        %v1205 = vpop.permute.xlu0 %1204
        %1206 = vrot.lane.b32.xlu0 %v1165, 127
        %v1207 = vpop.permute.xlu0 %1206
        %1208 = vrot.lane.b32.xlu0 %v1166, 127
        %v1209 = vpop.permute.xlu0 %1208
        %1210 = vrot.lane.b32.xlu0 %v1167, 127
        %v1211 = vpop.permute.xlu0 %1210
        %1212 = vrot.lane.b32.xlu0 %v1168, 127
        %v1213 = vpop.permute.xlu0 %1212
        %1214 = vrot.lane.b32.xlu0 %v1169, 127
        %v1215 = vpop.permute.xlu0 %1214
        %1216 = vrot.lane.b32.xlu0 %v1170, 127
        %v1217 = vpop.permute.xlu0 %1216
        %1218 = vrot.lane.b32.xlu0 %v1171, 127
        %v1219 = vpop.permute.xlu0 %1218
        %vm1220 = vcmask 1039360
        %v1221 = vsel %vm1220, %v1189, %v1191
        %v1222 = vsel %vm1220, %v1191, %v1193
        %v1223 = vsel %vm1220, %v1193, %v1195
        %v1224 = vsel %vm1220, %v1197, %v1199
        %v1225 = vsel %vm1220, %v1199, %v1201
        %v1226 = vsel %vm1220, %v1201, %v1203
        %v1227 = vsel %vm1220, %v1205, %v1207
        %v1228 = vsel %vm1220, %v1207, %v1209
        %v1229 = vsel %vm1220, %v1209, %v1211
        %v1230 = vsel %vm1220, %v1213, %v1215
        %v1231 = vsel %vm1220, %v1215, %v1217
        %v1232 = vsel %vm1220, %v1217, %v1219
        %v1249 = vadd.f32 %v1140, %v1221
        %v1250 = vadd.f32 %v1141, %v1222
        %v1251 = vadd.f32 %v1142, %v1223
        %v1252 = vadd.f32 %v1143, %v1195
        %v1253 = vadd.f32 %v1144, %v1224
        %v1254 = vadd.f32 %v1145, %v1225
        %v1255 = vadd.f32 %v1146, %v1226
        %v1256 = vadd.f32 %v1147, %v1203
        %v1257 = vadd.f32 %v1148, %v1227
        %v1258 = vadd.f32 %v1149, %v1228
        %v1259 = vadd.f32 %v1150, %v1229
        %v1260 = vadd.f32 %v1151, %v1211
        %v1261 = vadd.f32 %v1152, %v1230
        %v1262 = vadd.f32 %v1153, %v1231
        %v1263 = vadd.f32 %v1154, %v1232
        %v1264 = vadd.f32 %v1155, %v1219
        %v1265 = vld [vmem:[#allocation2 + $0x140] sm:$0xff]
        %v1266 = vld [vmem:[#allocation2 + $0x148] sm:$0xff]
        %v1267 = vld [vmem:[#allocation2 + $0x150] sm:$0xff]
        %v1268 = vld [vmem:[#allocation2 + $0x158] sm:$0xff]
        %v1269 = vld [vmem:[#allocation2 + $0x168] sm:$0xff]
        %v1270 = vld [vmem:[#allocation2 + $0x170] sm:$0xff]
        %v1271 = vld [vmem:[#allocation2 + $0x178] sm:$0xff]
        %v1272 = vld [vmem:[#allocation2 + $0x180] sm:$0xff]
        %v1273 = vld [vmem:[#allocation2 + $0x190] sm:$0xff]
        %v1274 = vld [vmem:[#allocation2 + $0x198] sm:$0xff]
        %v1275 = vld [vmem:[#allocation2 + $0x1a0] sm:$0xff]
        %v1276 = vld [vmem:[#allocation2 + $0x1a8] sm:$0xff]
        %v1277 = vld [vmem:[#allocation2 + $0x1b8] sm:$0xff]
        %v1278 = vld [vmem:[#allocation2 + $0x1c0] sm:$0xff]
        %v1279 = vld [vmem:[#allocation2 + $0x1c8] sm:$0xff]
        %v1280 = vld [vmem:[#allocation2 + $0x1d0] sm:$0xff]
        %1297 = vrot.lane.b32.xlu0 %v1265, 126
        %v1298 = vpop.permute.xlu0 %1297
        %1299 = vrot.lane.b32.xlu0 %v1266, 126
        %v1300 = vpop.permute.xlu0 %1299
        %1301 = vrot.lane.b32.xlu0 %v1267, 126
        %v1302 = vpop.permute.xlu0 %1301
        %1303 = vrot.lane.b32.xlu0 %v1268, 126
        %v1304 = vpop.permute.xlu0 %1303
        %1305 = vrot.lane.b32.xlu0 %v1269, 126
        %v1306 = vpop.permute.xlu0 %1305
        %1307 = vrot.lane.b32.xlu0 %v1270, 126
        %v1308 = vpop.permute.xlu0 %1307
        %1309 = vrot.lane.b32.xlu0 %v1271, 126
        %v1310 = vpop.permute.xlu0 %1309
        %1311 = vrot.lane.b32.xlu0 %v1272, 126
        %v1312 = vpop.permute.xlu0 %1311
        %1313 = vrot.lane.b32.xlu0 %v1273, 126
        %v1314 = vpop.permute.xlu0 %1313
        %1315 = vrot.lane.b32.xlu0 %v1274, 126
        %v1316 = vpop.permute.xlu0 %1315
        %1317 = vrot.lane.b32.xlu0 %v1275, 126
        %v1318 = vpop.permute.xlu0 %1317
        %1319 = vrot.lane.b32.xlu0 %v1276, 126
        %v1320 = vpop.permute.xlu0 %1319
        %1321 = vrot.lane.b32.xlu0 %v1277, 126
        %v1322 = vpop.permute.xlu0 %1321
        %1323 = vrot.lane.b32.xlu0 %v1278, 126
        %v1324 = vpop.permute.xlu0 %1323
        %1325 = vrot.lane.b32.xlu0 %v1279, 126
        %v1326 = vpop.permute.xlu0 %1325
        %1327 = vrot.lane.b32.xlu0 %v1280, 126
        %v1328 = vpop.permute.xlu0 %1327
        %vm1329 = vcmask 1031168
        %v1330 = vsel %vm1329, %v1298, %v1300
        %v1331 = vsel %vm1329, %v1300, %v1302
        %v1332 = vsel %vm1329, %v1302, %v1304
        %v1333 = vsel %vm1329, %v1306, %v1308
        %v1334 = vsel %vm1329, %v1308, %v1310
        %v1335 = vsel %vm1329, %v1310, %v1312
        %v1336 = vsel %vm1329, %v1314, %v1316
        %v1337 = vsel %vm1329, %v1316, %v1318
        %v1338 = vsel %vm1329, %v1318, %v1320
        %v1339 = vsel %vm1329, %v1322, %v1324
        %v1340 = vsel %vm1329, %v1324, %v1326
        %v1341 = vsel %vm1329, %v1326, %v1328
        %v1358 = vadd.f32 %v1249, %v1330
        %v1359 = vadd.f32 %v1250, %v1331
        %v1360 = vadd.f32 %v1251, %v1332
        %v1361 = vadd.f32 %v1252, %v1304
        %v1362 = vadd.f32 %v1253, %v1333
        %v1363 = vadd.f32 %v1254, %v1334
        %v1364 = vadd.f32 %v1255, %v1335
        %v1365 = vadd.f32 %v1256, %v1312
        %v1366 = vadd.f32 %v1257, %v1336
        %v1367 = vadd.f32 %v1258, %v1337
        %v1368 = vadd.f32 %v1259, %v1338
        %v1369 = vadd.f32 %v1260, %v1320
        %v1370 = vadd.f32 %v1261, %v1339
        %v1371 = vadd.f32 %v1262, %v1340
        %v1372 = vadd.f32 %v1263, %v1341
        %v1373 = vadd.f32 %v1264, %v1328
        %v1374 = vld [vmem:[#allocation2 + $0x1e0] sm:$0xff]
        %v1375 = vld [vmem:[#allocation2 + $0x1e8] sm:$0xff]
        %v1376 = vld [vmem:[#allocation2 + $0x1f0] sm:$0xff]
        %v1377 = vld [vmem:[#allocation2 + $0x1f8] sm:$0xff]
        %v1378 = vld [vmem:[#allocation2 + $0x208] sm:$0xff]
        %v1379 = vld [vmem:[#allocation2 + $0x210] sm:$0xff]
        %v1380 = vld [vmem:[#allocation2 + $0x218] sm:$0xff]
        %v1381 = vld [vmem:[#allocation2 + $0x220] sm:$0xff]
        %v1382 = vld [vmem:[#allocation2 + $0x230] sm:$0xff]
        %v1383 = vld [vmem:[#allocation2 + $0x238] sm:$0xff]
        %v1384 = vld [vmem:[#allocation2 + $0x240] sm:$0xff]
        %v1385 = vld [vmem:[#allocation2 + $0x248] sm:$0xff]
        %v1386 = vld [vmem:[#allocation2 + $0x258] sm:$0xff]
        %v1387 = vld [vmem:[#allocation2 + $0x260] sm:$0xff]
        %v1388 = vld [vmem:[#allocation2 + $0x268] sm:$0xff]
        %v1389 = vld [vmem:[#allocation2 + $0x270] sm:$0xff]
        %1406 = vrot.lane.b32.xlu0 %v1374, 110
        %v1407 = vpop.permute.xlu0 %1406
        %1408 = vrot.lane.b32.xlu0 %v1375, 110
        %v1409 = vpop.permute.xlu0 %1408
        %1410 = vrot.lane.b32.xlu0 %v1376, 110
        %v1411 = vpop.permute.xlu0 %1410
        %1412 = vrot.lane.b32.xlu0 %v1377, 110
        %v1413 = vpop.permute.xlu0 %1412
        %1414 = vrot.lane.b32.xlu0 %v1378, 110
        %v1415 = vpop.permute.xlu0 %1414
        %1416 = vrot.lane.b32.xlu0 %v1379, 110
        %v1417 = vpop.permute.xlu0 %1416
        %1418 = vrot.lane.b32.xlu0 %v1380, 110
        %v1419 = vpop.permute.xlu0 %1418
        %1420 = vrot.lane.b32.xlu0 %v1381, 110
        %v1421 = vpop.permute.xlu0 %1420
        %1422 = vrot.lane.b32.xlu0 %v1382, 110
        %v1423 = vpop.permute.xlu0 %1422
        %1424 = vrot.lane.b32.xlu0 %v1383, 110
        %v1425 = vpop.permute.xlu0 %1424
        %1426 = vrot.lane.b32.xlu0 %v1384, 110
        %v1427 = vpop.permute.xlu0 %1426
        %1428 = vrot.lane.b32.xlu0 %v1385, 110
        %v1429 = vpop.permute.xlu0 %1428
        %1430 = vrot.lane.b32.xlu0 %v1386, 110
        %v1431 = vpop.permute.xlu0 %1430
        %1432 = vrot.lane.b32.xlu0 %v1387, 110
        %v1433 = vpop.permute.xlu0 %1432
        %1434 = vrot.lane.b32.xlu0 %v1388, 110
        %v1435 = vpop.permute.xlu0 %1434
        %1436 = vrot.lane.b32.xlu0 %v1389, 110
        %v1437 = vpop.permute.xlu0 %1436
        %vm1438 = vcmask 900096
        %v1439 = vsel %vm1438, %v1407, %v1409
        %v1440 = vsel %vm1438, %v1409, %v1411
        %v1441 = vsel %vm1438, %v1411, %v1413
        %v1442 = vsel %vm1438, %v1415, %v1417
        %v1443 = vsel %vm1438, %v1417, %v1419
        %v1444 = vsel %vm1438, %v1419, %v1421
        %v1445 = vsel %vm1438, %v1423, %v1425
        %v1446 = vsel %vm1438, %v1425, %v1427
        %v1447 = vsel %vm1438, %v1427, %v1429
        %v1448 = vsel %vm1438, %v1431, %v1433
        %v1449 = vsel %vm1438, %v1433, %v1435
        %v1450 = vsel %vm1438, %v1435, %v1437
        %v1467 = vadd.f32 %v1358, %v1439
        %v1468 = vadd.f32 %v1359, %v1440
        %v1469 = vadd.f32 %v1360, %v1441
        %v1470 = vadd.f32 %v1361, %v1413
        %v1471 = vadd.f32 %v1362, %v1442
        %v1472 = vadd.f32 %v1363, %v1443
        %v1473 = vadd.f32 %v1364, %v1444
        %v1474 = vadd.f32 %v1365, %v1421
        %v1475 = vadd.f32 %v1366, %v1445
        %v1476 = vadd.f32 %v1367, %v1446
        %v1477 = vadd.f32 %v1368, %v1447
        %v1478 = vadd.f32 %v1369, %v1429
        %v1479 = vadd.f32 %v1370, %v1448
        %v1480 = vadd.f32 %v1371, %v1449
        %v1481 = vadd.f32 %v1372, %v1450
        %v1482 = vadd.f32 %v1373, %v1437
        %v1483 = vld [vmem:[#allocation2 + $0x288] sm:$0xff]
        %v1484 = vld [vmem:[#allocation2 + $0x290] sm:$0xff]
        %v1485 = vld [vmem:[#allocation2 + $0x298] sm:$0xff]
        %v1486 = vld [vmem:[#allocation2 + $0x2b0] sm:$0xff]
        %v1487 = vld [vmem:[#allocation2 + $0x2b8] sm:$0xff]
        %v1488 = vld [vmem:[#allocation2 + $0x2c0] sm:$0xff]
        %v1489 = vld [vmem:[#allocation2 + $0x2d8] sm:$0xff]
        %v1490 = vld [vmem:[#allocation2 + $0x2e0] sm:$0xff]
        %v1491 = vld [vmem:[#allocation2 + $0x2e8] sm:$0xff]
        %v1492 = vld [vmem:[#allocation2 + $0x300] sm:$0xff]
        %v1493 = vld [vmem:[#allocation2 + $0x308] sm:$0xff]
        %v1494 = vld [vmem:[#allocation2 + $0x310] sm:$0xff]
        %1507 = vrot.lane.b32.xlu0 %v1483, 109
        %v1508 = vpop.permute.xlu0 %1507
        %1509 = vrot.lane.b32.xlu0 %v1484, 109
        %v1510 = vpop.permute.xlu0 %1509
        %1511 = vrot.lane.b32.xlu0 %v1485, 109
        %v1512 = vpop.permute.xlu0 %1511
        %1513 = vrot.lane.b32.xlu0 %v1486, 109
        %v1514 = vpop.permute.xlu0 %1513
        %1515 = vrot.lane.b32.xlu0 %v1487, 109
        %v1516 = vpop.permute.xlu0 %1515
        %1517 = vrot.lane.b32.xlu0 %v1488, 109
        %v1518 = vpop.permute.xlu0 %1517
        %1519 = vrot.lane.b32.xlu0 %v1489, 109
        %v1520 = vpop.permute.xlu0 %1519
        %1521 = vrot.lane.b32.xlu0 %v1490, 109
        %v1522 = vpop.permute.xlu0 %1521
        %1523 = vrot.lane.b32.xlu0 %v1491, 109
        %v1524 = vpop.permute.xlu0 %1523
        %1525 = vrot.lane.b32.xlu0 %v1492, 109
        %v1526 = vpop.permute.xlu0 %1525
        %1527 = vrot.lane.b32.xlu0 %v1493, 109
        %v1528 = vpop.permute.xlu0 %1527
        %1529 = vrot.lane.b32.xlu0 %v1494, 109
        %v1530 = vpop.permute.xlu0 %1529
        %vm1531 = vcmask 891904
        %v1532 = vsel %vm1531, %v1508, %v1510
        %v1533 = vsel %vm1531, %v1510, %v1512
        %v1534 = vsel %vm1531, %v1514, %v1516
        %v1535 = vsel %vm1531, %v1516, %v1518
        %v1536 = vsel %vm1531, %v1520, %v1522
        %v1537 = vsel %vm1531, %v1522, %v1524
        %v1538 = vsel %vm1531, %v1526, %v1528
        %v1539 = vsel %vm1531, %v1528, %v1530
        %v1556 = vadd.f32 %v1467, %v1508
        %v1557 = vadd.f32 %v1468, %v1532
        %v1558 = vadd.f32 %v1469, %v1533
        %v1559 = vadd.f32 %v1470, %v1512
        %v1560 = vadd.f32 %v1471, %v1514
        %v1561 = vadd.f32 %v1472, %v1534
        %v1562 = vadd.f32 %v1473, %v1535
        %v1563 = vadd.f32 %v1474, %v1518
        %v1564 = vadd.f32 %v1475, %v1520
        %v1565 = vadd.f32 %v1476, %v1536
        %v1566 = vadd.f32 %v1477, %v1537
        %v1567 = vadd.f32 %v1478, %v1524
        %v1568 = vadd.f32 %v1479, %v1526
        %v1569 = vadd.f32 %v1480, %v1538
        %v1570 = vadd.f32 %v1481, %v1539
        %v1571 = vadd.f32 %v1482, %v1530
        %v1572 = vld [vmem:[#allocation2 + $0x328] sm:$0xff]
        %v1573 = vld [vmem:[#allocation2 + $0x330] sm:$0xff]
        %v1574 = vld [vmem:[#allocation2 + $0x338] sm:$0xff]
        %v1575 = vld [vmem:[#allocation2 + $0x350] sm:$0xff]
        %v1576 = vld [vmem:[#allocation2 + $0x358] sm:$0xff]
        %v1577 = vld [vmem:[#allocation2 + $0x360] sm:$0xff]
        %v1578 = vld [vmem:[#allocation2 + $0x378] sm:$0xff]
        %v1579 = vld [vmem:[#allocation2 + $0x380] sm:$0xff]
        %v1580 = vld [vmem:[#allocation2 + $0x388] sm:$0xff]
        %v1581 = vld [vmem:[#allocation2 + $0x3a0] sm:$0xff]
        %v1582 = vld [vmem:[#allocation2 + $0x3a8] sm:$0xff]
        %v1583 = vld [vmem:[#allocation2 + $0x3b0] sm:$0xff]
        %1596 = vrot.lane.b32.xlu0 %v1572, 108
        %v1597 = vpop.permute.xlu0 %1596
        %1598 = vrot.lane.b32.xlu0 %v1573, 108
        %v1599 = vpop.permute.xlu0 %1598
        %1600 = vrot.lane.b32.xlu0 %v1574, 108
        %v1601 = vpop.permute.xlu0 %1600
        %1602 = vrot.lane.b32.xlu0 %v1575, 108
        %v1603 = vpop.permute.xlu0 %1602
        %1604 = vrot.lane.b32.xlu0 %v1576, 108
        %v1605 = vpop.permute.xlu0 %1604
        %1606 = vrot.lane.b32.xlu0 %v1577, 108
        %v1607 = vpop.permute.xlu0 %1606
        %1608 = vrot.lane.b32.xlu0 %v1578, 108
        %v1609 = vpop.permute.xlu0 %1608
        %1610 = vrot.lane.b32.xlu0 %v1579, 108
        %v1611 = vpop.permute.xlu0 %1610
        %1612 = vrot.lane.b32.xlu0 %v1580, 108
        %v1613 = vpop.permute.xlu0 %1612
        %1614 = vrot.lane.b32.xlu0 %v1581, 108
        %v1615 = vpop.permute.xlu0 %1614
        %1616 = vrot.lane.b32.xlu0 %v1582, 108
        %v1617 = vpop.permute.xlu0 %1616
        %1618 = vrot.lane.b32.xlu0 %v1583, 108
        %v1619 = vpop.permute.xlu0 %1618
        %vm1620 = vcmask 883712
        %v1621 = vsel %vm1620, %v1597, %v1599
        %v1622 = vsel %vm1620, %v1599, %v1601
        %v1623 = vsel %vm1620, %v1603, %v1605
        %v1624 = vsel %vm1620, %v1605, %v1607
        %v1625 = vsel %vm1620, %v1609, %v1611
        %v1626 = vsel %vm1620, %v1611, %v1613
        %v1627 = vsel %vm1620, %v1615, %v1617
        %v1628 = vsel %vm1620, %v1617, %v1619
        %v1645 = vadd.f32 %v1556, %v1597
        %v1646 = vadd.f32 %v1557, %v1621
        %v1647 = vadd.f32 %v1558, %v1622
        %v1648 = vadd.f32 %v1559, %v1601
        %v1649 = vadd.f32 %v1560, %v1603
        %v1650 = vadd.f32 %v1561, %v1623
        %v1651 = vadd.f32 %v1562, %v1624
        %v1652 = vadd.f32 %v1563, %v1607
        %v1653 = vadd.f32 %v1564, %v1609
        %v1654 = vadd.f32 %v1565, %v1625
        %v1655 = vadd.f32 %v1566, %v1626
        %v1656 = vadd.f32 %v1567, %v1613
        %v1657 = vadd.f32 %v1568, %v1615
        %v1658 = vadd.f32 %v1569, %v1627
        %v1659 = vadd.f32 %v1570, %v1628
        %v1660 = vadd.f32 %v1571, %v1619
        %v1661 = vld [vmem:[#allocation2 + $0x3c8] sm:$0xff]
        %v1662 = vld [vmem:[#allocation2 + $0x3d0] sm:$0xff]
        %v1663 = vld [vmem:[#allocation2 + $0x3d8] sm:$0xff]
        %v1664 = vld [vmem:[#allocation2 + $0x3f0] sm:$0xff]
        %v1665 = vld [vmem:[#allocation2 + $0x3f8] sm:$0xff]
        %v1666 = vld [vmem:[#allocation2 + $0x400] sm:$0xff]
        %v1667 = vld [vmem:[#allocation2 + $0x418] sm:$0xff]
        %v1668 = vld [vmem:[#allocation2 + $0x420] sm:$0xff]
        %v1669 = vld [vmem:[#allocation2 + $0x428] sm:$0xff]
        %v1670 = vld [vmem:[#allocation2 + $0x440] sm:$0xff]
        %v1671 = vld [vmem:[#allocation2 + $0x448] sm:$0xff]
        %v1672 = vld [vmem:[#allocation2 + $0x450] sm:$0xff]
        %1685 = vrot.lane.b32.xlu0 %v1661, 92
        %v1686 = vpop.permute.xlu0 %1685
        %1687 = vrot.lane.b32.xlu0 %v1662, 92
        %v1688 = vpop.permute.xlu0 %1687
        %1689 = vrot.lane.b32.xlu0 %v1663, 92
        %v1690 = vpop.permute.xlu0 %1689
        %1691 = vrot.lane.b32.xlu0 %v1664, 92
        %v1692 = vpop.permute.xlu0 %1691
        %1693 = vrot.lane.b32.xlu0 %v1665, 92
        %v1694 = vpop.permute.xlu0 %1693
        %1695 = vrot.lane.b32.xlu0 %v1666, 92
        %v1696 = vpop.permute.xlu0 %1695
        %1697 = vrot.lane.b32.xlu0 %v1667, 92
        %v1698 = vpop.permute.xlu0 %1697
        %1699 = vrot.lane.b32.xlu0 %v1668, 92
        %v1700 = vpop.permute.xlu0 %1699
        %1701 = vrot.lane.b32.xlu0 %v1669, 92
        %v1702 = vpop.permute.xlu0 %1701
        %1703 = vrot.lane.b32.xlu0 %v1670, 92
        %v1704 = vpop.permute.xlu0 %1703
        %1705 = vrot.lane.b32.xlu0 %v1671, 92
        %v1706 = vpop.permute.xlu0 %1705
        %1707 = vrot.lane.b32.xlu0 %v1672, 92
        %v1708 = vpop.permute.xlu0 %1707
        %vm1709 = vcmask 752640
        %v1710 = vsel %vm1709, %v1686, %v1688
        %v1711 = vsel %vm1709, %v1688, %v1690
        %v1712 = vsel %vm1709, %v1692, %v1694
        %v1713 = vsel %vm1709, %v1694, %v1696
        %v1714 = vsel %vm1709, %v1698, %v1700
        %v1715 = vsel %vm1709, %v1700, %v1702
        %v1716 = vsel %vm1709, %v1704, %v1706
        %v1717 = vsel %vm1709, %v1706, %v1708
        %v1734 = vadd.f32 %v1645, %v1686
        %v1735 = vadd.f32 %v1646, %v1710
        %v1736 = vadd.f32 %v1647, %v1711
        %v1737 = vadd.f32 %v1648, %v1690
        %v1738 = vadd.f32 %v1649, %v1692
        %v1739 = vadd.f32 %v1650, %v1712
        %v1740 = vadd.f32 %v1651, %v1713
        %v1741 = vadd.f32 %v1652, %v1696
        %v1742 = vadd.f32 %v1653, %v1698
        %v1743 = vadd.f32 %v1654, %v1714
        %v1744 = vadd.f32 %v1655, %v1715
        %v1745 = vadd.f32 %v1656, %v1702
        %v1746 = vadd.f32 %v1657, %v1704
        %v1747 = vadd.f32 %v1658, %v1716
        %v1748 = vadd.f32 %v1659, %v1717
        %v1749 = vadd.f32 %v1660, %v1708
        %v1750 = vld [vmem:[#allocation2 + $0x468] sm:$0xff]
        %v1751 = vld [vmem:[#allocation2 + $0x470] sm:$0xff]
        %v1752 = vld [vmem:[#allocation2 + $0x478] sm:$0xff]
        %v1753 = vld [vmem:[#allocation2 + $0x490] sm:$0xff]
        %v1754 = vld [vmem:[#allocation2 + $0x498] sm:$0xff]
        %v1755 = vld [vmem:[#allocation2 + $0x4a0] sm:$0xff]
        %v1756 = vld [vmem:[#allocation2 + $0x4b8] sm:$0xff]
        %v1757 = vld [vmem:[#allocation2 + $0x4c0] sm:$0xff]
        %v1758 = vld [vmem:[#allocation2 + $0x4c8] sm:$0xff]
        %v1759 = vld [vmem:[#allocation2 + $0x4e0] sm:$0xff]
        %v1760 = vld [vmem:[#allocation2 + $0x4e8] sm:$0xff]
        %v1761 = vld [vmem:[#allocation2 + $0x4f0] sm:$0xff]
        %1774 = vrot.lane.b32.xlu0 %v1750, 91
        %v1775 = vpop.permute.xlu0 %1774
        %1776 = vrot.lane.b32.xlu0 %v1751, 91
        %v1777 = vpop.permute.xlu0 %1776
        %1778 = vrot.lane.b32.xlu0 %v1752, 91
        %v1779 = vpop.permute.xlu0 %1778
        %1780 = vrot.lane.b32.xlu0 %v1753, 91
        %v1781 = vpop.permute.xlu0 %1780
        %1782 = vrot.lane.b32.xlu0 %v1754, 91
        %v1783 = vpop.permute.xlu0 %1782
        %1784 = vrot.lane.b32.xlu0 %v1755, 91
        %v1785 = vpop.permute.xlu0 %1784
        %1786 = vrot.lane.b32.xlu0 %v1756, 91
        %v1787 = vpop.permute.xlu0 %1786
        %1788 = vrot.lane.b32.xlu0 %v1757, 91
        %v1789 = vpop.permute.xlu0 %1788
        %1790 = vrot.lane.b32.xlu0 %v1758, 91
        %v1791 = vpop.permute.xlu0 %1790
        %1792 = vrot.lane.b32.xlu0 %v1759, 91
        %v1793 = vpop.permute.xlu0 %1792
        %1794 = vrot.lane.b32.xlu0 %v1760, 91
        %v1795 = vpop.permute.xlu0 %1794
        %1796 = vrot.lane.b32.xlu0 %v1761, 91
        %v1797 = vpop.permute.xlu0 %1796
        %vm1798 = vcmask 744448
        %v1799 = vsel %vm1798, %v1775, %v1777
        %v1800 = vsel %vm1798, %v1777, %v1779
        %v1801 = vsel %vm1798, %v1781, %v1783
        %v1802 = vsel %vm1798, %v1783, %v1785
        %v1803 = vsel %vm1798, %v1787, %v1789
        %v1804 = vsel %vm1798, %v1789, %v1791
        %v1805 = vsel %vm1798, %v1793, %v1795
        %v1806 = vsel %vm1798, %v1795, %v1797
        %v1823 = vadd.f32 %v1734, %v1775
        %v1824 = vadd.f32 %v1735, %v1799
        %v1825 = vadd.f32 %v1736, %v1800
        %v1826 = vadd.f32 %v1737, %v1779
        %v1827 = vadd.f32 %v1738, %v1781
        %v1828 = vadd.f32 %v1739, %v1801
        %v1829 = vadd.f32 %v1740, %v1802
        %v1830 = vadd.f32 %v1741, %v1785
        %v1831 = vadd.f32 %v1742, %v1787
        %v1832 = vadd.f32 %v1743, %v1803
        %v1833 = vadd.f32 %v1744, %v1804
        %v1834 = vadd.f32 %v1745, %v1791
        %v1835 = vadd.f32 %v1746, %v1793
        %v1836 = vadd.f32 %v1747, %v1805
        %v1837 = vadd.f32 %v1748, %v1806
        %v1838 = vadd.f32 %v1749, %v1797
        %v1839 = vld [vmem:[#allocation2 + $0x508] sm:$0xff]
        %v1840 = vld [vmem:[#allocation2 + $0x510] sm:$0xff]
        %v1841 = vld [vmem:[#allocation2 + $0x518] sm:$0xff]
        %v1842 = vld [vmem:[#allocation2 + $0x530] sm:$0xff]
        %v1843 = vld [vmem:[#allocation2 + $0x538] sm:$0xff]
        %v1844 = vld [vmem:[#allocation2 + $0x540] sm:$0xff]
        %v1845 = vld [vmem:[#allocation2 + $0x558] sm:$0xff]
        %v1846 = vld [vmem:[#allocation2 + $0x560] sm:$0xff]
        %v1847 = vld [vmem:[#allocation2 + $0x568] sm:$0xff]
        %v1848 = vld [vmem:[#allocation2 + $0x580] sm:$0xff]
        %v1849 = vld [vmem:[#allocation2 + $0x588] sm:$0xff]
        %v1850 = vld [vmem:[#allocation2 + $0x590] sm:$0xff]
        %1863 = vrot.lane.b32.xlu0 %v1839, 90
        %v1864 = vpop.permute.xlu0 %1863
        %1865 = vrot.lane.b32.xlu0 %v1840, 90
        %v1866 = vpop.permute.xlu0 %1865
        %1867 = vrot.lane.b32.xlu0 %v1841, 90
        %v1868 = vpop.permute.xlu0 %1867
        %1869 = vrot.lane.b32.xlu0 %v1842, 90
        %v1870 = vpop.permute.xlu0 %1869
        %1871 = vrot.lane.b32.xlu0 %v1843, 90
        %v1872 = vpop.permute.xlu0 %1871
        %1873 = vrot.lane.b32.xlu0 %v1844, 90
        %v1874 = vpop.permute.xlu0 %1873
        %1875 = vrot.lane.b32.xlu0 %v1845, 90
        %v1876 = vpop.permute.xlu0 %1875
        %1877 = vrot.lane.b32.xlu0 %v1846, 90
        %v1878 = vpop.permute.xlu0 %1877
        %1879 = vrot.lane.b32.xlu0 %v1847, 90
        %v1880 = vpop.permute.xlu0 %1879
        %1881 = vrot.lane.b32.xlu0 %v1848, 90
        %v1882 = vpop.permute.xlu0 %1881
        %1883 = vrot.lane.b32.xlu0 %v1849, 90
        %v1884 = vpop.permute.xlu0 %1883
        %1885 = vrot.lane.b32.xlu0 %v1850, 90
        %v1886 = vpop.permute.xlu0 %1885
        %vm1887 = vcmask 736256
        %v1888 = vsel %vm1887, %v1864, %v1866
        %v1889 = vsel %vm1887, %v1866, %v1868
        %v1890 = vsel %vm1887, %v1870, %v1872
        %v1891 = vsel %vm1887, %v1872, %v1874
        %v1892 = vsel %vm1887, %v1876, %v1878
        %v1893 = vsel %vm1887, %v1878, %v1880
        %v1894 = vsel %vm1887, %v1882, %v1884
        %v1895 = vsel %vm1887, %v1884, %v1886
        %v1912 = vadd.f32 %v1823, %v1864
        %v1913 = vadd.f32 %v1824, %v1888
        %v1914 = vadd.f32 %v1825, %v1889
        %v1915 = vadd.f32 %v1826, %v1868
        %v1916 = vadd.f32 %v1827, %v1870
        %v1917 = vadd.f32 %v1828, %v1890
        %v1918 = vadd.f32 %v1829, %v1891
        %v1919 = vadd.f32 %v1830, %v1874
        %v1920 = vadd.f32 %v1831, %v1876
        %v1921 = vadd.f32 %v1832, %v1892
        %v1922 = vadd.f32 %v1833, %v1893
        %v1923 = vadd.f32 %v1834, %v1880
        %v1924 = vadd.f32 %v1835, %v1882
        %v1925 = vadd.f32 %v1836, %v1894
        %v1926 = vadd.f32 %v1837, %v1895
        %v1927 = vadd.f32 %v1838, %v1886
        %v1928 = vmax.f32 %v1912, 0.0
        %v1929 = vmax.f32 %v1913, 0.0
        %v1930 = vmax.f32 %v1914, 0.0
        %v1931 = vmax.f32 %v1915, 0.0
        %v1932 = vmax.f32 %v1916, 0.0
        %v1933 = vmax.f32 %v1917, 0.0
        %v1934 = vmax.f32 %v1918, 0.0
        %v1935 = vmax.f32 %v1919, 0.0
        %v1936 = vmax.f32 %v1920, 0.0
        %v1937 = vmax.f32 %v1921, 0.0
        %v1938 = vmax.f32 %v1922, 0.0
        %v1939 = vmax.f32 %v1923, 0.0
        %v1940 = vmax.f32 %v1924, 0.0
        %v1941 = vmax.f32 %v1925, 0.0
        %v1942 = vmax.f32 %v1926, 0.0
        %v1943 = vmax.f32 %v1927, 0.0
        %v1944 = vsel %vm309, 1, 0
        %v1945 = vlaneseq
        %v1946 = vshrl.u32 %v1945, 7
        %v1947 = vsub.s32 0, %v1946
        %v1948 = vrot.slane %v1944, %v1947
        %v1949 = vlaneseq
        %v1950 = vshrl.u32 %v1949, 7
        %v1951 = vsub.s32 1, %v1950
        %v1952 = vrot.slane %v1944, %v1951
        %v1953 = vlaneseq
        %v1954 = vshrl.u32 %v1953, 7
        %v1955 = vsub.s32 2, %v1954
        %v1956 = vrot.slane %v1944, %v1955
        %vm1957 = vcmp.eq.s32.totalorder %v1948, 1
        %vm1958 = vcmp.eq.s32.totalorder %v1952, 1
        %vm1959 = vcmp.eq.s32.totalorder %v1956, 1
        %1976 = vrot.lane.b32.xlu0 %v1928, 19
        %v1977 = vpop.permute.xlu0 %1976
        %1978 = vrot.lane.b32.xlu0 %v1929, 19
        %v1979 = vpop.permute.xlu0 %1978
        %1980 = vrot.lane.b32.xlu0 %v1930, 19
        %v1981 = vpop.permute.xlu0 %1980
        %1982 = vrot.lane.b32.xlu0 %v1931, 19
        %v1983 = vpop.permute.xlu0 %1982
        %1984 = vrot.lane.b32.xlu0 %v1932, 19
        %v1985 = vpop.permute.xlu0 %1984
        %1986 = vrot.lane.b32.xlu0 %v1933, 19
        %v1987 = vpop.permute.xlu0 %1986
        %1988 = vrot.lane.b32.xlu0 %v1934, 19
        %v1989 = vpop.permute.xlu0 %1988
        %1990 = vrot.lane.b32.xlu0 %v1935, 19
        %v1991 = vpop.permute.xlu0 %1990
        %1992 = vrot.lane.b32.xlu0 %v1936, 19
        %v1993 = vpop.permute.xlu0 %1992
        %1994 = vrot.lane.b32.xlu0 %v1937, 19
        %v1995 = vpop.permute.xlu0 %1994
        %1996 = vrot.lane.b32.xlu0 %v1938, 19
        %v1997 = vpop.permute.xlu0 %1996
        %1998 = vrot.lane.b32.xlu0 %v1939, 19
        %v1999 = vpop.permute.xlu0 %1998
        %2000 = vrot.lane.b32.xlu0 %v1940, 19
        %v2001 = vpop.permute.xlu0 %2000
        %2002 = vrot.lane.b32.xlu0 %v1941, 19
        %v2003 = vpop.permute.xlu0 %2002
        %2004 = vrot.lane.b32.xlu0 %v1942, 19
        %v2005 = vpop.permute.xlu0 %2004
        %2006 = vrot.lane.b32.xlu0 %v1943, 19
        %v2007 = vpop.permute.xlu0 %2006
        %vm2008 = vcmask 154624
        %v2009 = vsel %vm2008, %v1977, %v1979
        %v2010 = vsel %vm2008, %v1979, %v1981
        %v2011 = vsel %vm2008, %v1981, %v1983
        %v2012 = vsel %vm2008, %v1985, %v1987
        %v2013 = vsel %vm2008, %v1987, %v1989
        %v2014 = vsel %vm2008, %v1989, %v1991
        %v2015 = vsel %vm2008, %v1993, %v1995
        %v2016 = vsel %vm2008, %v1995, %v1997
        %v2017 = vsel %vm2008, %v1997, %v1999
        %v2018 = vsel %vm2008, %v2001, %v2003
        %v2019 = vsel %vm2008, %v2003, %v2005
        %v2020 = vsel %vm2008, %v2005, %v2007
        %v2033 = vsel %vm1957, %v2009, 0.0
        %v2034 = vsel %vm1958, %v2010, 0.0
        %v2035 = vsel %vm1959, %v2011, 0.0
        %v2036 = vsel %vm1957, %v2012, 0.0
        %v2037 = vsel %vm1958, %v2013, 0.0
        %v2038 = vsel %vm1959, %v2014, 0.0
        %v2039 = vsel %vm1957, %v2015, 0.0
        %v2040 = vsel %vm1958, %v2016, 0.0
        %v2041 = vsel %vm1959, %v2017, 0.0
        %v2042 = vsel %vm1957, %v2018, 0.0
        %v2043 = vsel %vm1958, %v2019, 0.0
        %v2044 = vsel %vm1959, %v2020, 0.0
        %v2045 = vld [vmem:[%s3] sm:$0xff]
        %v2046 = vld [vmem:[%s3 + $0x8] sm:$0xff]
        %v2047 = vld [vmem:[%s3 + $0x10] sm:$0xff]
        %v2048 = vld [vmem:[%s3 + $0x18] sm:$0xff]
        %v2049 = vld [vmem:[%s3 + $0x20] sm:$0xff]
        %v2050 = vld [vmem:[%s3 + $0x28] sm:$0xff]
        %v2051 = vld [vmem:[%s3 + $0x30] sm:$0xff]
        %v2052 = vld [vmem:[%s3 + $0x38] sm:$0xff]
        %v2053 = vld [vmem:[%s3 + $0x40] sm:$0xff]
        %v2054 = vld [vmem:[%s3 + $0x48] sm:$0xff]
        %v2055 = vld [vmem:[%s3 + $0x50] sm:$0xff]
        %v2056 = vld [vmem:[%s3 + $0x58] sm:$0xff]
        %v2057 = vld [vmem:[%s3 + $0x60] sm:$0xff]
        %v2058 = vld [vmem:[%s3 + $0x68] sm:$0xff]
        %v2059 = vld [vmem:[%s3 + $0x70] sm:$0xff]
        %v2060 = vld [vmem:[%s3 + $0x78] sm:$0xff]
        %v2061 = vld [vmem:[%s3 + $0x80] sm:$0xff]
        %v2062 = vld [vmem:[%s3 + $0x88] sm:$0xff]
        %v2063 = vld [vmem:[%s3 + $0x90] sm:$0xff]
        %v2064 = vld [vmem:[%s3 + $0x98] sm:$0xff]
        %v2065 = vld [vmem:[%s3 + $0xa0] sm:$0xff]
        %v2066 = vld [vmem:[%s3 + $0xa8] sm:$0xff]
        %v2067 = vld [vmem:[%s3 + $0xb0] sm:$0xff]
        %v2068 = vld [vmem:[%s3 + $0xb8] sm:$0xff]
        %v2069 = vld [vmem:[%s3 + $0xc0] sm:$0xff]
        %v2070 = vld [vmem:[%s3 + $0xc8] sm:$0xff]
        %v2071 = vld [vmem:[%s3 + $0xd0] sm:$0xff]
        %v2072 = vld [vmem:[%s3 + $0xd8] sm:$0xff]
        %v2073 = vld [vmem:[%s3 + $0xe0] sm:$0xff]
        %v2074 = vld [vmem:[%s3 + $0xe8] sm:$0xff]
        %v2075 = vld [vmem:[%s3 + $0xf0] sm:$0xff]
        %v2076 = vld [vmem:[%s3 + $0xf8] sm:$0xff]
        %v2077 = vld [vmem:[%s3 + $0x100] sm:$0xff]
        %v2078 = vld [vmem:[%s3 + $0x108] sm:$0xff]
        %v2079 = vld [vmem:[%s3 + $0x110] sm:$0xff]
        %v2080 = vld [vmem:[%s3 + $0x118] sm:$0xff]
        %vm2081 = vcmask 261120
        %v2083 = vsel %vm2081, %v2045, 0
        %v2086 = vsel %vm2081, %v2046, 0
        %v2089 = vsel %vm2081, %v2047, 0
        %v2092 = vsel %vm2081, %v2048, 0
        %v2095 = vsel %vm2081, %v2049, 0
        %v2098 = vsel %vm2081, %v2050, 0
        %v2101 = vsel %vm2081, %v2051, 0
        %v2104 = vsel %vm2081, %v2052, 0
        %v2107 = vsel %vm2081, %v2053, 0
        %v2110 = vsel %vm2081, %v2054, 0
        %v2113 = vsel %vm2081, %v2055, 0
        %v2116 = vsel %vm2081, %v2056, 0
        %v2119 = vsel %vm2081, %v2057, 0
        %v2122 = vsel %vm2081, %v2058, 0
        %v2125 = vsel %vm2081, %v2059, 0
        %v2128 = vsel %vm2081, %v2060, 0
        %v2131 = vsel %vm2081, %v2061, 0
        %v2134 = vsel %vm2081, %v2062, 0
        %v2137 = vsel %vm2081, %v2063, 0
        %v2140 = vsel %vm2081, %v2064, 0
        %v2143 = vsel %vm2081, %v2065, 0
        %v2146 = vsel %vm2081, %v2066, 0
        %v2149 = vsel %vm2081, %v2067, 0
        %v2152 = vsel %vm2081, %v2068, 0
        %v2155 = vsel %vm2081, %v2069, 0
        %v2158 = vsel %vm2081, %v2070, 0
        %v2161 = vsel %vm2081, %v2071, 0
        %v2164 = vsel %vm2081, %v2072, 0
        %v2167 = vsel %vm2081, %v2073, 0
        %v2170 = vsel %vm2081, %v2074, 0
        %v2173 = vsel %vm2081, %v2075, 0
        %v2176 = vsel %vm2081, %v2076, 0
        %v2179 = vsel %vm2081, %v2077, 0
        %v2182 = vsel %vm2081, %v2078, 0
        %v2185 = vsel %vm2081, %v2079, 0
        %v2188 = vsel %vm2081, %v2080, 0
        %2190 = vmatprep.subr.mxu0 %v2034
        %2191 = vmatpush1.msra.mxu0 %v2033
        %2192 = vmatprep.subr.mxu0 %v2037
        %2193 = vmatpush1.msra.mxu0 %v2036
        %2194 = vmatprep.subr.mxu0 %v2040
        %2195 = vmatpush1.msra.mxu0 %v2039
        %2196 = vmatprep.subr.mxu0 %v2043
        %2197 = vmatpush1.msra.mxu0 %v2042
        %2198 = vmatprep.subr.mxu0 0.0
        %2199 = vmatpush1.msra.mxu0 0.0
        %2200 = vmatprep.subr.mxu0 0.0
        %2201 = vmatpush1.msra.mxu0 0.0
        %2202 = vmatprep.subr.mxu0 0.0
        %2203 = vmatpush1.msra.mxu0 0.0
        %2204 = vmatprep.subr.mxu0 0.0
        %2205 = vmatpush1.msra.mxu0 0.0
        %2206 = vmatprep.subr.mxu0 0.0
        %2207 = vmatpush1.msra.mxu0 0.0
        %2208 = vmatprep.subr.mxu0 0.0
        %2209 = vmatpush1.msra.mxu0 0.0
        %2210 = vmatprep.subr.mxu0 0.0
        %2211 = vmatpush1.msra.mxu0 0.0
        %2212 = vmatprep.subr.mxu0 0.0
        %2213 = vmatpush1.msra.mxu0 0.0
        %2214 = vmatprep.subr.mxu0 0.0
        %2215 = vmatpush1.msra.mxu0 0.0
        %2216 = vmatprep.subr.mxu0 0.0
        %2217 = vmatpush1.msra.mxu0 0.0
        %2218 = vmatprep.subr.mxu0 0.0
        %2219 = vmatpush1.msra.mxu0 0.0
        %2220 = vmatprep.subr.mxu0 0.0
        %2221 = vmatpush1.msra.mxu0 0.0
        %2222 = vmatprep.subr.mxu0 0.0
        %2223 = vmatpush1.msra.mxu0 0.0
        %2224 = vmatprep.subr.mxu0 0.0
        %2225 = vmatpush1.msra.mxu0 0.0
        %2226 = vmatprep.subr.mxu0 0.0
        %2227 = vmatpush1.msra.mxu0 0.0
        %2228 = vmatprep.subr.mxu0 0.0
        %2229 = vmatpush1.msra.mxu0 0.0
        %2230 = vmatprep.subr.mxu0 0.0
        %2231 = vmatpush1.msra.mxu0 0.0
        %2232 = vmatprep.subr.mxu0 0.0
        %2233 = vmatpush1.msra.mxu0 0.0
        %2234 = vmatprep.subr.mxu0 0.0
        %2235 = vmatpush1.msra.mxu0 0.0
        %2236 = vmatprep.subr.mxu0 0.0
        %2237 = vmatpush1.msra.mxu0 0.0
        %2238 = vmatprep.subr.mxu0 0.0
        %2239 = vmatpush1.msra.mxu0 0.0
        %2240 = vmatprep.subr.mxu0 0.0
        %2241 = vmatpush1.msra.mxu0 0.0
        %2242 = vmatprep.subr.mxu0 0.0
        %2243 = vmatpush1.msra.mxu0 0.0
        %2244 = vmatprep.subr.mxu0 0.0
        %2245 = vmatpush1.msra.mxu0 0.0
        %2246 = vmatprep.subr.mxu0 0.0
        %2247 = vmatpush1.msra.mxu0 0.0
        %2248 = vmatprep.subr.mxu0 0.0
        %2249 = vmatpush1.msra.mxu0 0.0
        %2250 = vmatprep.subr.mxu0 0.0
        %2251 = vmatpush1.msra.mxu0 0.0
        %2252 = vmatprep.subr.mxu0 0.0
        %2253 = vmatpush1.msra.mxu0 0.0
        %2254 = vmatprep.mubr.f32.mxu0 0.0
        %2255 = vmatmul.mubr.f32.gmra.mrb[0].mxu0 %v2083
        %v2256 = vpop.f32.mrb[0].mxu0
        %v2257 = vadd.f32 0.0, %v2256
        %v2258 = vpop.f32.mrb[0].mxu0
        %v2259 = vadd.f32 0.0, %v2258
        %2260 = vmatprep.mubr.f32.mxu0 0.0
        %2261 = vmatmul.mubr.f32.gmra.mrb[0].mxu0 %v2086
        %v2262 = vpop.f32.mrb[0].mxu0
        %v2263 = vadd.f32 0.0, %v2262
        %v2264 = vpop.f32.mrb[0].mxu0
        %v2265 = vadd.f32 0.0, %v2264
        %2266 = vmatprep.mubr.f32.mxu0 0.0
        %2267 = vmatmul.mubr.f32.gmra.mrb[0].mxu0 %v2089
        %v2268 = vpop.f32.mrb[0].mxu0
        %v2269 = vadd.f32 0.0, %v2268
        %v2270 = vpop.f32.mrb[0].mxu0
        %v2271 = vadd.f32 0.0, %v2270
        %2272 = vmatprep.mubr.f32.mxu0 0.0
        %2273 = vmatmul.mubr.f32.gmra.mrb[0].mxu0 %v2092
        %v2274 = vpop.f32.mrb[0].mxu0
        %v2275 = vadd.f32 0.0, %v2274
        %v2276 = vpop.f32.mrb[0].mxu0
        %v2277 = vadd.f32 0.0, %v2276
        %2278 = vmatprep.mubr.f32.mxu0 0.0
        %2279 = vmatmul.mubr.f32.gmra.mrb[0].mxu0 %v2095
        %v2280 = vpop.f32.mrb[0].mxu0
        %v2281 = vadd.f32 0.0, %v2280
        %v2282 = vpop.f32.mrb[0].mxu0
        %v2283 = vadd.f32 0.0, %v2282
        %2284 = vmatprep.mubr.f32.mxu0 0.0
        %2285 = vmatmul.mubr.f32.gmra.mrb[0].mxu0 %v2098
        %v2286 = vpop.f32.mrb[0].mxu0
        %v2287 = vadd.f32 0.0, %v2286
        %v2288 = vpop.f32.mrb[0].mxu0
        %v2289 = vadd.f32 0.0, %v2288
        %2290 = vmatprep.mubr.f32.mxu0 0.0
        %2291 = vmatmul.mubr.f32.gmra.mrb[0].mxu0 %v2101
        %v2292 = vpop.f32.mrb[0].mxu0
        %v2293 = vadd.f32 0.0, %v2292
        %v2294 = vpop.f32.mrb[0].mxu0
        %v2295 = vadd.f32 0.0, %v2294
        %2296 = vmatprep.mubr.f32.mxu0 0.0
        %2297 = vmatmul.mubr.f32.gmra.mrb[0].mxu0 %v2104
        %v2298 = vpop.f32.mrb[0].mxu0
        %v2299 = vadd.f32 0.0, %v2298
        %v2300 = vpop.f32.mrb[0].mxu0
        %v2301 = vadd.f32 0.0, %v2300
        %2302 = vmatprep.mubr.f32.mxu0 0.0
        %2303 = vmatmul.mubr.f32.gmra.mrb[0].mxu0 %v2107
        %v2304 = vpop.f32.mrb[0].mxu0
        %v2305 = vadd.f32 0.0, %v2304
        %v2306 = vpop.f32.mrb[0].mxu0
        %v2307 = vadd.f32 0.0, %v2306
        %2308 = vmatprep.mubr.f32.mxu0 0.0
        %2309 = vmatmul.mubr.f32.gmra.mrb[0].mxu0 %v2110
        %v2310 = vpop.f32.mrb[0].mxu0
        %v2311 = vadd.f32 0.0, %v2310
        %v2312 = vpop.f32.mrb[0].mxu0
        %v2313 = vadd.f32 0.0, %v2312
        %2314 = vmatprep.mubr.f32.mxu0 0.0
        %2315 = vmatmul.mubr.f32.gmra.mrb[0].mxu0 %v2113
        %v2316 = vpop.f32.mrb[0].mxu0
        %v2317 = vadd.f32 0.0, %v2316
        %v2318 = vpop.f32.mrb[0].mxu0
        %v2319 = vadd.f32 0.0, %v2318
        %2320 = vmatprep.mubr.f32.mxu0 0.0
        %2321 = vmatmul.mubr.f32.gmra.mrb[0].mxu0 %v2116
        %v2322 = vpop.f32.mrb[0].mxu0
        %v2323 = vadd.f32 0.0, %v2322
        %v2324 = vpop.f32.mrb[0].mxu0
        %v2325 = vadd.f32 0.0, %v2324
        %2326 = vmatprep.mubr.f32.mxu0 0.0
        %2327 = vmatmul.mubr.f32.gmra.mrb[0].mxu0 %v2119
        %v2328 = vpop.f32.mrb[0].mxu0
        %v2329 = vadd.f32 0.0, %v2328
        %v2330 = vpop.f32.mrb[0].mxu0
        %v2331 = vadd.f32 0.0, %v2330
        %2332 = vmatprep.mubr.f32.mxu0 0.0
        %2333 = vmatmul.mubr.f32.gmra.mrb[0].mxu0 %v2122
        %v2334 = vpop.f32.mrb[0].mxu0
        %v2335 = vadd.f32 0.0, %v2334
        %v2336 = vpop.f32.mrb[0].mxu0
        %v2337 = vadd.f32 0.0, %v2336
        %2338 = vmatprep.mubr.f32.mxu0 0.0
        %2339 = vmatmul.mubr.f32.gmra.mrb[0].mxu0 %v2125
        %v2340 = vpop.f32.mrb[0].mxu0
        %v2341 = vadd.f32 0.0, %v2340
        %v2342 = vpop.f32.mrb[0].mxu0
        %v2343 = vadd.f32 0.0, %v2342
        %2344 = vmatprep.mubr.f32.mxu0 0.0
        %2345 = vmatmul.mubr.f32.gmra.mrb[0].mxu0 %v2128
        %v2346 = vpop.f32.mrb[0].mxu0
        %v2347 = vadd.f32 0.0, %v2346
        %v2348 = vpop.f32.mrb[0].mxu0
        %v2349 = vadd.f32 0.0, %v2348
        %2350 = vmatprep.mubr.f32.mxu0 0.0
        %2351 = vmatmul.mubr.f32.gmra.mrb[0].mxu0 %v2131
        %v2352 = vpop.f32.mrb[0].mxu0
        %v2353 = vadd.f32 0.0, %v2352
        %v2354 = vpop.f32.mrb[0].mxu0
        %v2355 = vadd.f32 0.0, %v2354
        %2356 = vmatprep.mubr.f32.mxu0 0.0
        %2357 = vmatmul.mubr.f32.gmra.mrb[0].mxu0 %v2134
        %v2358 = vpop.f32.mrb[0].mxu0
        %v2359 = vadd.f32 0.0, %v2358
        %v2360 = vpop.f32.mrb[0].mxu0
        %v2361 = vadd.f32 0.0, %v2360
        %2362 = vmatprep.mubr.f32.mxu0 0.0
        %2363 = vmatmul.mubr.f32.gmra.mrb[0].mxu0 %v2137
        %v2364 = vpop.f32.mrb[0].mxu0
        %v2365 = vadd.f32 0.0, %v2364
        %v2366 = vpop.f32.mrb[0].mxu0
        %v2367 = vadd.f32 0.0, %v2366
        %2368 = vmatprep.mubr.f32.mxu0 0.0
        %2369 = vmatmul.mubr.f32.gmra.mrb[0].mxu0 %v2140
        %v2370 = vpop.f32.mrb[0].mxu0
        %v2371 = vadd.f32 0.0, %v2370
        %v2372 = vpop.f32.mrb[0].mxu0
        %v2373 = vadd.f32 0.0, %v2372
        %2374 = vmatprep.mubr.f32.mxu0 0.0
        %2375 = vmatmul.mubr.f32.gmra.mrb[0].mxu0 %v2143
        %v2376 = vpop.f32.mrb[0].mxu0
        %v2377 = vadd.f32 0.0, %v2376
        %v2378 = vpop.f32.mrb[0].mxu0
        %v2379 = vadd.f32 0.0, %v2378
        %2380 = vmatprep.mubr.f32.mxu0 0.0
        %2381 = vmatmul.mubr.f32.gmra.mrb[0].mxu0 %v2146
        %v2382 = vpop.f32.mrb[0].mxu0
        %v2383 = vadd.f32 0.0, %v2382
        %v2384 = vpop.f32.mrb[0].mxu0
        %v2385 = vadd.f32 0.0, %v2384
        %2386 = vmatprep.mubr.f32.mxu0 0.0
        %2387 = vmatmul.mubr.f32.gmra.mrb[0].mxu0 %v2149
        %v2388 = vpop.f32.mrb[0].mxu0
        %v2389 = vadd.f32 0.0, %v2388
        %v2390 = vpop.f32.mrb[0].mxu0
        %v2391 = vadd.f32 0.0, %v2390
        %2392 = vmatprep.mubr.f32.mxu0 0.0
        %2393 = vmatmul.mubr.f32.gmra.mrb[0].mxu0 %v2152
        %v2394 = vpop.f32.mrb[0].mxu0
        %v2395 = vadd.f32 0.0, %v2394
        %v2396 = vpop.f32.mrb[0].mxu0
        %v2397 = vadd.f32 0.0, %v2396
        %2398 = vmatprep.mubr.f32.mxu0 0.0
        %2399 = vmatmul.mubr.f32.gmra.mrb[0].mxu0 %v2155
        %v2400 = vpop.f32.mrb[0].mxu0
        %v2401 = vadd.f32 0.0, %v2400
        %v2402 = vpop.f32.mrb[0].mxu0
        %v2403 = vadd.f32 0.0, %v2402
        %2404 = vmatprep.mubr.f32.mxu0 0.0
        %2405 = vmatmul.mubr.f32.gmra.mrb[0].mxu0 %v2158
        %v2406 = vpop.f32.mrb[0].mxu0
        %v2407 = vadd.f32 0.0, %v2406
        %v2408 = vpop.f32.mrb[0].mxu0
        %v2409 = vadd.f32 0.0, %v2408
        %2410 = vmatprep.mubr.f32.mxu0 0.0
        %2411 = vmatmul.mubr.f32.gmra.mrb[0].mxu0 %v2161
        %v2412 = vpop.f32.mrb[0].mxu0
        %v2413 = vadd.f32 0.0, %v2412
        %v2414 = vpop.f32.mrb[0].mxu0
        %v2415 = vadd.f32 0.0, %v2414
        %2416 = vmatprep.mubr.f32.mxu0 0.0
        %2417 = vmatmul.mubr.f32.gmra.mrb[0].mxu0 %v2164
        %v2418 = vpop.f32.mrb[0].mxu0
        %v2419 = vadd.f32 0.0, %v2418
        %v2420 = vpop.f32.mrb[0].mxu0
        %v2421 = vadd.f32 0.0, %v2420
        %2422 = vmatprep.mubr.f32.mxu0 0.0
        %2423 = vmatmul.mubr.f32.gmra.mrb[0].mxu0 %v2167
        %v2424 = vpop.f32.mrb[0].mxu0
        %v2425 = vadd.f32 0.0, %v2424
        %v2426 = vpop.f32.mrb[0].mxu0
        %v2427 = vadd.f32 0.0, %v2426
        %2428 = vmatprep.mubr.f32.mxu0 0.0
        %2429 = vmatmul.mubr.f32.gmra.mrb[0].mxu0 %v2170
        %v2430 = vpop.f32.mrb[0].mxu0
        %v2431 = vadd.f32 0.0, %v2430
        %v2432 = vpop.f32.mrb[0].mxu0
        %v2433 = vadd.f32 0.0, %v2432
        %2434 = vmatprep.mubr.f32.mxu0 0.0
        %2435 = vmatmul.mubr.f32.gmra.mrb[0].mxu0 %v2173
        %v2436 = vpop.f32.mrb[0].mxu0
        %v2437 = vadd.f32 0.0, %v2436
        %v2438 = vpop.f32.mrb[0].mxu0
        %v2439 = vadd.f32 0.0, %v2438
        %2440 = vmatprep.mubr.f32.mxu0 0.0
        %2441 = vmatmul.mubr.f32.gmra.mrb[0].mxu0 %v2176
        %v2442 = vpop.f32.mrb[0].mxu0
        %v2443 = vadd.f32 0.0, %v2442
        %v2444 = vpop.f32.mrb[0].mxu0
        %v2445 = vadd.f32 0.0, %v2444
        %2446 = vmatprep.mubr.f32.mxu0 0.0
        %2447 = vmatmul.mubr.f32.gmra.mrb[0].mxu0 %v2179
        %v2448 = vpop.f32.mrb[0].mxu0
        %v2449 = vadd.f32 0.0, %v2448
        %v2450 = vpop.f32.mrb[0].mxu0
        %v2451 = vadd.f32 0.0, %v2450
        %2452 = vmatprep.mubr.f32.mxu0 0.0
        %2453 = vmatmul.mubr.f32.gmra.mrb[0].mxu0 %v2182
        %v2454 = vpop.f32.mrb[0].mxu0
        %v2455 = vadd.f32 0.0, %v2454
        %v2456 = vpop.f32.mrb[0].mxu0
        %v2457 = vadd.f32 0.0, %v2456
        %2458 = vmatprep.mubr.f32.mxu0 0.0
        %2459 = vmatmul.mubr.f32.gmra.mrb[0].mxu0 %v2185
        %v2460 = vpop.f32.mrb[0].mxu0
        %v2461 = vadd.f32 0.0, %v2460
        %v2462 = vpop.f32.mrb[0].mxu0
        %v2463 = vadd.f32 0.0, %v2462
        %2464 = vmatprep.mubr.f32.mxu0 0.0
        %2465 = vmatmul.mubr.f32.gmra.mrb[0].mxu0 %v2188
        %v2466 = vpop.f32.mrb[0].mxu0
        %v2467 = vadd.f32 0.0, %v2466
        %v2468 = vpop.f32.mrb[0].mxu0
        %v2469 = vadd.f32 0.0, %v2468
        %2470 = vdwg.mxu0
        %2471 = vmatprep.subr.mxu0 0.0
        %2472 = vmatpush1.msra.mxu0 %v2035
        %2473 = vmatprep.subr.mxu0 0.0
        %2474 = vmatpush1.msra.mxu0 %v2038
        %2475 = vmatprep.subr.mxu0 0.0
        %2476 = vmatpush1.msra.mxu0 %v2041
        %2477 = vmatprep.subr.mxu0 0.0
        %2478 = vmatpush1.msra.mxu0 %v2044
        %2479 = vmatprep.subr.mxu0 0.0
        %2480 = vmatpush1.msra.mxu0 0.0
        %2481 = vmatprep.subr.mxu0 0.0
        %2482 = vmatpush1.msra.mxu0 0.0
        %2483 = vmatprep.subr.mxu0 0.0
        %2484 = vmatpush1.msra.mxu0 0.0
        %2485 = vmatprep.subr.mxu0 0.0
        %2486 = vmatpush1.msra.mxu0 0.0
        %2487 = vmatprep.subr.mxu0 0.0
        %2488 = vmatpush1.msra.mxu0 0.0
        %2489 = vmatprep.subr.mxu0 0.0
        %2490 = vmatpush1.msra.mxu0 0.0
        %2491 = vmatprep.subr.mxu0 0.0
        %2492 = vmatpush1.msra.mxu0 0.0
        %2493 = vmatprep.subr.mxu0 0.0
        %2494 = vmatpush1.msra.mxu0 0.0
        %2495 = vmatprep.subr.mxu0 0.0
        %2496 = vmatpush1.msra.mxu0 0.0
        %2497 = vmatprep.subr.mxu0 0.0
        %2498 = vmatpush1.msra.mxu0 0.0
        %2499 = vmatprep.subr.mxu0 0.0
        %2500 = vmatpush1.msra.mxu0 0.0
        %2501 = vmatprep.subr.mxu0 0.0
        %2502 = vmatpush1.msra.mxu0 0.0
        %2503 = vmatprep.subr.mxu0 0.0
        %2504 = vmatpush1.msra.mxu0 0.0
        %2505 = vmatprep.subr.mxu0 0.0
        %2506 = vmatpush1.msra.mxu0 0.0
        %2507 = vmatprep.subr.mxu0 0.0
        %2508 = vmatpush1.msra.mxu0 0.0
        %2509 = vmatprep.subr.mxu0 0.0
        %2510 = vmatpush1.msra.mxu0 0.0
        %2511 = vmatprep.subr.mxu0 0.0
        %2512 = vmatpush1.msra.mxu0 0.0
        %2513 = vmatprep.subr.mxu0 0.0
        %2514 = vmatpush1.msra.mxu0 0.0
        %2515 = vmatprep.subr.mxu0 0.0
        %2516 = vmatpush1.msra.mxu0 0.0
        %2517 = vmatprep.subr.mxu0 0.0
        %2518 = vmatpush1.msra.mxu0 0.0
        %2519 = vmatprep.subr.mxu0 0.0
        %2520 = vmatpush1.msra.mxu0 0.0
        %2521 = vmatprep.subr.mxu0 0.0
        %2522 = vmatpush1.msra.mxu0 0.0
        %2523 = vmatprep.subr.mxu0 0.0
        %2524 = vmatpush1.msra.mxu0 0.0
        %2525 = vmatprep.subr.mxu0 0.0
        %2526 = vmatpush1.msra.mxu0 0.0
        %2527 = vmatprep.subr.mxu0 0.0
        %2528 = vmatpush1.msra.mxu0 0.0
        %2529 = vmatprep.subr.mxu0 0.0
        %2530 = vmatpush1.msra.mxu0 0.0
        %2531 = vmatprep.subr.mxu0 0.0
        %2532 = vmatpush1.msra.mxu0 0.0
        %2533 = vmatprep.subr.mxu0 0.0
        %2534 = vmatpush1.msra.mxu0 0.0
        %2535 = vmatprep.mubr.f32.mxu0 0.0
        %2536 = vmatmul.mubr.f32.gmra.mrb[0].mxu0 %v2083
        %v2537 = vpop.f32.mrb[0].mxu0
        %v2538 = vadd.f32 0.0, %v2537
        %v2539 = vpop.f32.mrb[0].mxu0
        %2540 = vmatprep.mubr.f32.mxu0 0.0
        %2541 = vmatmul.mubr.f32.gmra.mrb[0].mxu0 %v2086
        %v2542 = vpop.f32.mrb[0].mxu0
        %v2543 = vadd.f32 0.0, %v2542
        %v2544 = vpop.f32.mrb[0].mxu0
        %2545 = vmatprep.mubr.f32.mxu0 0.0
        %2546 = vmatmul.mubr.f32.gmra.mrb[0].mxu0 %v2089
        %v2547 = vpop.f32.mrb[0].mxu0
        %v2548 = vadd.f32 0.0, %v2547
        %v2549 = vpop.f32.mrb[0].mxu0
        %2550 = vmatprep.mubr.f32.mxu0 0.0
        %2551 = vmatmul.mubr.f32.gmra.mrb[0].mxu0 %v2092
        %v2552 = vpop.f32.mrb[0].mxu0
        %v2553 = vadd.f32 0.0, %v2552
        %v2554 = vpop.f32.mrb[0].mxu0
        %2555 = vmatprep.mubr.f32.mxu0 0.0
        %2556 = vmatmul.mubr.f32.gmra.mrb[0].mxu0 %v2095
        %v2557 = vpop.f32.mrb[0].mxu0
        %v2558 = vadd.f32 0.0, %v2557
        %v2559 = vpop.f32.mrb[0].mxu0
        %2560 = vmatprep.mubr.f32.mxu0 0.0
        %2561 = vmatmul.mubr.f32.gmra.mrb[0].mxu0 %v2098
        %v2562 = vpop.f32.mrb[0].mxu0
        %v2563 = vadd.f32 0.0, %v2562
        %v2564 = vpop.f32.mrb[0].mxu0
        %2565 = vmatprep.mubr.f32.mxu0 0.0
        %2566 = vmatmul.mubr.f32.gmra.mrb[0].mxu0 %v2101
        %v2567 = vpop.f32.mrb[0].mxu0
        %v2568 = vadd.f32 0.0, %v2567
        %v2569 = vpop.f32.mrb[0].mxu0
        %2570 = vmatprep.mubr.f32.mxu0 0.0
        %2571 = vmatmul.mubr.f32.gmra.mrb[0].mxu0 %v2104
        %v2572 = vpop.f32.mrb[0].mxu0
        %v2573 = vadd.f32 0.0, %v2572
        %v2574 = vpop.f32.mrb[0].mxu0
        %2575 = vmatprep.mubr.f32.mxu0 0.0
        %2576 = vmatmul.mubr.f32.gmra.mrb[0].mxu0 %v2107
        %v2577 = vpop.f32.mrb[0].mxu0
        %v2578 = vadd.f32 0.0, %v2577
        %v2579 = vpop.f32.mrb[0].mxu0
        %2580 = vmatprep.mubr.f32.mxu0 0.0
        %2581 = vmatmul.mubr.f32.gmra.mrb[0].mxu0 %v2110
        %v2582 = vpop.f32.mrb[0].mxu0
        %v2583 = vadd.f32 0.0, %v2582
        %v2584 = vpop.f32.mrb[0].mxu0
        %2585 = vmatprep.mubr.f32.mxu0 0.0
        %2586 = vmatmul.mubr.f32.gmra.mrb[0].mxu0 %v2113
        %v2587 = vpop.f32.mrb[0].mxu0
        %v2588 = vadd.f32 0.0, %v2587
        %v2589 = vpop.f32.mrb[0].mxu0
        %2590 = vmatprep.mubr.f32.mxu0 0.0
        %2591 = vmatmul.mubr.f32.gmra.mrb[0].mxu0 %v2116
        %v2592 = vpop.f32.mrb[0].mxu0
        %v2593 = vadd.f32 0.0, %v2592
        %v2594 = vpop.f32.mrb[0].mxu0
        %2595 = vmatprep.mubr.f32.mxu0 0.0
        %2596 = vmatmul.mubr.f32.gmra.mrb[0].mxu0 %v2119
        %v2597 = vpop.f32.mrb[0].mxu0
        %v2598 = vadd.f32 0.0, %v2597
        %v2599 = vpop.f32.mrb[0].mxu0
        %2600 = vmatprep.mubr.f32.mxu0 0.0
        %2601 = vmatmul.mubr.f32.gmra.mrb[0].mxu0 %v2122
        %v2602 = vpop.f32.mrb[0].mxu0
        %v2603 = vadd.f32 0.0, %v2602
        %v2604 = vpop.f32.mrb[0].mxu0
        %2605 = vmatprep.mubr.f32.mxu0 0.0
        %2606 = vmatmul.mubr.f32.gmra.mrb[0].mxu0 %v2125
        %v2607 = vpop.f32.mrb[0].mxu0
        %v2608 = vadd.f32 0.0, %v2607
        %v2609 = vpop.f32.mrb[0].mxu0
        %2610 = vmatprep.mubr.f32.mxu0 0.0
        %2611 = vmatmul.mubr.f32.gmra.mrb[0].mxu0 %v2128
        %v2612 = vpop.f32.mrb[0].mxu0
        %v2613 = vadd.f32 0.0, %v2612
        %v2614 = vpop.f32.mrb[0].mxu0
        %2615 = vmatprep.mubr.f32.mxu0 0.0
        %2616 = vmatmul.mubr.f32.gmra.mrb[0].mxu0 %v2131
        %v2617 = vpop.f32.mrb[0].mxu0
        %v2618 = vadd.f32 0.0, %v2617
        %v2619 = vpop.f32.mrb[0].mxu0
        %2620 = vmatprep.mubr.f32.mxu0 0.0
        %2621 = vmatmul.mubr.f32.gmra.mrb[0].mxu0 %v2134
        %v2622 = vpop.f32.mrb[0].mxu0
        %v2623 = vadd.f32 0.0, %v2622
        %v2624 = vpop.f32.mrb[0].mxu0
        %2625 = vmatprep.mubr.f32.mxu0 0.0
        %2626 = vmatmul.mubr.f32.gmra.mrb[0].mxu0 %v2137
        %v2627 = vpop.f32.mrb[0].mxu0
        %v2628 = vadd.f32 0.0, %v2627
        %v2629 = vpop.f32.mrb[0].mxu0
        %2630 = vmatprep.mubr.f32.mxu0 0.0
        %2631 = vmatmul.mubr.f32.gmra.mrb[0].mxu0 %v2140
        %v2632 = vpop.f32.mrb[0].mxu0
        %v2633 = vadd.f32 0.0, %v2632
        %v2634 = vpop.f32.mrb[0].mxu0
        %2635 = vmatprep.mubr.f32.mxu0 0.0
        %2636 = vmatmul.mubr.f32.gmra.mrb[0].mxu0 %v2143
        %v2637 = vpop.f32.mrb[0].mxu0
        %v2638 = vadd.f32 0.0, %v2637
        %v2639 = vpop.f32.mrb[0].mxu0
        %2640 = vmatprep.mubr.f32.mxu0 0.0
        %2641 = vmatmul.mubr.f32.gmra.mrb[0].mxu0 %v2146
        %v2642 = vpop.f32.mrb[0].mxu0
        %v2643 = vadd.f32 0.0, %v2642
        %v2644 = vpop.f32.mrb[0].mxu0
        %2645 = vmatprep.mubr.f32.mxu0 0.0
        %2646 = vmatmul.mubr.f32.gmra.mrb[0].mxu0 %v2149
        %v2647 = vpop.f32.mrb[0].mxu0
        %v2648 = vadd.f32 0.0, %v2647
        %v2649 = vpop.f32.mrb[0].mxu0
        %2650 = vmatprep.mubr.f32.mxu0 0.0
        %2651 = vmatmul.mubr.f32.gmra.mrb[0].mxu0 %v2152
        %v2652 = vpop.f32.mrb[0].mxu0
        %v2653 = vadd.f32 0.0, %v2652
        %v2654 = vpop.f32.mrb[0].mxu0
        %2655 = vmatprep.mubr.f32.mxu0 0.0
        %2656 = vmatmul.mubr.f32.gmra.mrb[0].mxu0 %v2155
        %v2657 = vpop.f32.mrb[0].mxu0
        %v2658 = vadd.f32 0.0, %v2657
        %v2659 = vpop.f32.mrb[0].mxu0
        %2660 = vmatprep.mubr.f32.mxu0 0.0
        %2661 = vmatmul.mubr.f32.gmra.mrb[0].mxu0 %v2158
        %v2662 = vpop.f32.mrb[0].mxu0
        %v2663 = vadd.f32 0.0, %v2662
        %v2664 = vpop.f32.mrb[0].mxu0
        %2665 = vmatprep.mubr.f32.mxu0 0.0
        %2666 = vmatmul.mubr.f32.gmra.mrb[0].mxu0 %v2161
        %v2667 = vpop.f32.mrb[0].mxu0
        %v2668 = vadd.f32 0.0, %v2667
        %v2669 = vpop.f32.mrb[0].mxu0
        %2670 = vmatprep.mubr.f32.mxu0 0.0
        %2671 = vmatmul.mubr.f32.gmra.mrb[0].mxu0 %v2164
        %v2672 = vpop.f32.mrb[0].mxu0
        %v2673 = vadd.f32 0.0, %v2672
        %v2674 = vpop.f32.mrb[0].mxu0
        %2675 = vmatprep.mubr.f32.mxu0 0.0
        %2676 = vmatmul.mubr.f32.gmra.mrb[0].mxu0 %v2167
        %v2677 = vpop.f32.mrb[0].mxu0
        %v2678 = vadd.f32 0.0, %v2677
        %v2679 = vpop.f32.mrb[0].mxu0
        %2680 = vmatprep.mubr.f32.mxu0 0.0
        %2681 = vmatmul.mubr.f32.gmra.mrb[0].mxu0 %v2170
        %v2682 = vpop.f32.mrb[0].mxu0
        %v2683 = vadd.f32 0.0, %v2682
        %v2684 = vpop.f32.mrb[0].mxu0
        %2685 = vmatprep.mubr.f32.mxu0 0.0
        %2686 = vmatmul.mubr.f32.gmra.mrb[0].mxu0 %v2173
        %v2687 = vpop.f32.mrb[0].mxu0
        %v2688 = vadd.f32 0.0, %v2687
        %v2689 = vpop.f32.mrb[0].mxu0
        %2690 = vmatprep.mubr.f32.mxu0 0.0
        %2691 = vmatmul.mubr.f32.gmra.mrb[0].mxu0 %v2176
        %v2692 = vpop.f32.mrb[0].mxu0
        %v2693 = vadd.f32 0.0, %v2692
        %v2694 = vpop.f32.mrb[0].mxu0
        %2695 = vmatprep.mubr.f32.mxu0 0.0
        %2696 = vmatmul.mubr.f32.gmra.mrb[0].mxu0 %v2179
        %v2697 = vpop.f32.mrb[0].mxu0
        %v2698 = vadd.f32 0.0, %v2697
        %v2699 = vpop.f32.mrb[0].mxu0
        %2700 = vmatprep.mubr.f32.mxu0 0.0
        %2701 = vmatmul.mubr.f32.gmra.mrb[0].mxu0 %v2182
        %v2702 = vpop.f32.mrb[0].mxu0
        %v2703 = vadd.f32 0.0, %v2702
        %v2704 = vpop.f32.mrb[0].mxu0
        %2705 = vmatprep.mubr.f32.mxu0 0.0
        %2706 = vmatmul.mubr.f32.gmra.mrb[0].mxu0 %v2185
        %v2707 = vpop.f32.mrb[0].mxu0
        %v2708 = vadd.f32 0.0, %v2707
        %v2709 = vpop.f32.mrb[0].mxu0
        %2710 = vmatprep.mubr.f32.mxu0 0.0
        %2711 = vmatmul.mubr.f32.gmra.mrb[0].mxu0 %v2188
        %v2712 = vpop.f32.mrb[0].mxu0
        %v2713 = vadd.f32 0.0, %v2712
        %v2714 = vpop.f32.mrb[0].mxu0
        %2715 = vdwg.mxu0
        %2716 = vst [vmem:[#allocation2 + $0x8] sm:$0xff] %v2257
        %2717 = vst [vmem:[#allocation2 + $0x10] sm:$0xff] %v2259
        %2718 = vst.msk [vmem:[#allocation2 + $0x18] sm:$0xff] %vm993, %v2538
        %2719 = vst [vmem:[#allocation2 + $0x30] sm:$0xff] %v2263
        %2720 = vst [vmem:[#allocation2 + $0x38] sm:$0xff] %v2265
        %2721 = vst.msk [vmem:[#allocation2 + $0x40] sm:$0xff] %vm993, %v2543
        %2722 = vst [vmem:[#allocation2 + $0x58] sm:$0xff] %v2269
        %2723 = vst [vmem:[#allocation2 + $0x60] sm:$0xff] %v2271
        %2724 = vst.msk [vmem:[#allocation2 + $0x68] sm:$0xff] %vm993, %v2548
        %2725 = vst [vmem:[#allocation2 + $0x80] sm:$0xff] %v2275
        %2726 = vst [vmem:[#allocation2 + $0x88] sm:$0xff] %v2277
        %2727 = vst.msk [vmem:[#allocation2 + $0x90] sm:$0xff] %vm993, %v2553
        %2728 = vst [vmem:[#allocation2 + $0xa8] sm:$0xff] %v2281
        %2729 = vst [vmem:[#allocation2 + $0xb0] sm:$0xff] %v2283
        %2730 = vst.msk [vmem:[#allocation2 + $0xb8] sm:$0xff] %vm993, %v2558
        %2731 = vst [vmem:[#allocation2 + $0xd0] sm:$0xff] %v2287
        %2732 = vst [vmem:[#allocation2 + $0xd8] sm:$0xff] %v2289
        %2733 = vst.msk [vmem:[#allocation2 + $0xe0] sm:$0xff] %vm993, %v2563
        %2734 = vst [vmem:[#allocation2 + $0xf8] sm:$0xff] %v2293
        %2735 = vst [vmem:[#allocation2 + $0x100] sm:$0xff] %v2295
        %2736 = vst.msk [vmem:[#allocation2 + $0x108] sm:$0xff] %vm993, %v2568
        %2737 = vst [vmem:[#allocation2 + $0x120] sm:$0xff] %v2299
        %2738 = vst [vmem:[#allocation2 + $0x128] sm:$0xff] %v2301
        %2739 = vst.msk [vmem:[#allocation2 + $0x130] sm:$0xff] %vm993, %v2573
        %2740 = vst [vmem:[#allocation2 + $0x148] sm:$0xff] %v2305
        %2741 = vst [vmem:[#allocation2 + $0x150] sm:$0xff] %v2307
        %2742 = vst.msk [vmem:[#allocation2 + $0x158] sm:$0xff] %vm993, %v2578
        %2743 = vst [vmem:[#allocation2 + $0x170] sm:$0xff] %v2311
        %2744 = vst [vmem:[#allocation2 + $0x178] sm:$0xff] %v2313
        %2745 = vst.msk [vmem:[#allocation2 + $0x180] sm:$0xff] %vm993, %v2583
        %2746 = vst [vmem:[#allocation2 + $0x198] sm:$0xff] %v2317
        %2747 = vst [vmem:[#allocation2 + $0x1a0] sm:$0xff] %v2319
        %2748 = vst.msk [vmem:[#allocation2 + $0x1a8] sm:$0xff] %vm993, %v2588
        %2749 = vst [vmem:[#allocation2 + $0x1c0] sm:$0xff] %v2323
        %2750 = vst [vmem:[#allocation2 + $0x1c8] sm:$0xff] %v2325
        %2751 = vst.msk [vmem:[#allocation2 + $0x1d0] sm:$0xff] %vm993, %v2593
        %2752 = vst [vmem:[#allocation2 + $0x1e8] sm:$0xff] %v2329
        %2753 = vst [vmem:[#allocation2 + $0x1f0] sm:$0xff] %v2331
        %2754 = vst.msk [vmem:[#allocation2 + $0x1f8] sm:$0xff] %vm993, %v2598
        %2755 = vst [vmem:[#allocation2 + $0x210] sm:$0xff] %v2335
        %2756 = vst [vmem:[#allocation2 + $0x218] sm:$0xff] %v2337
        %2757 = vst.msk [vmem:[#allocation2 + $0x220] sm:$0xff] %vm993, %v2603
        %2758 = vst [vmem:[#allocation2 + $0x238] sm:$0xff] %v2341
        %2759 = vst [vmem:[#allocation2 + $0x240] sm:$0xff] %v2343
        %2760 = vst.msk [vmem:[#allocation2 + $0x248] sm:$0xff] %vm993, %v2608
        %2761 = vst [vmem:[#allocation2 + $0x260] sm:$0xff] %v2347
        %2762 = vst [vmem:[#allocation2 + $0x268] sm:$0xff] %v2349
        %2763 = vst.msk [vmem:[#allocation2 + $0x270] sm:$0xff] %vm993, %v2613
        %2764 = vst [vmem:[#allocation2 + $0x288] sm:$0xff] %v2353
        %2765 = vst [vmem:[#allocation2 + $0x290] sm:$0xff] %v2355
        %2766 = vst.msk [vmem:[#allocation2 + $0x298] sm:$0xff] %vm993, %v2618
        %2767 = vst [vmem:[#allocation2 + $0x2b0] sm:$0xff] %v2359
        %2768 = vst [vmem:[#allocation2 + $0x2b8] sm:$0xff] %v2361
        %2769 = vst.msk [vmem:[#allocation2 + $0x2c0] sm:$0xff] %vm993, %v2623
        %2770 = vst [vmem:[#allocation2 + $0x2d8] sm:$0xff] %v2365
        %2771 = vst [vmem:[#allocation2 + $0x2e0] sm:$0xff] %v2367
        %2772 = vst.msk [vmem:[#allocation2 + $0x2e8] sm:$0xff] %vm993, %v2628
        %2773 = vst [vmem:[#allocation2 + $0x300] sm:$0xff] %v2371
        %2774 = vst [vmem:[#allocation2 + $0x308] sm:$0xff] %v2373
        %2775 = vst.msk [vmem:[#allocation2 + $0x310] sm:$0xff] %vm993, %v2633
        %2776 = vst [vmem:[#allocation2 + $0x328] sm:$0xff] %v2377
        %2777 = vst [vmem:[#allocation2 + $0x330] sm:$0xff] %v2379
        %2778 = vst.msk [vmem:[#allocation2 + $0x338] sm:$0xff] %vm993, %v2638
        %2779 = vst [vmem:[#allocation2 + $0x350] sm:$0xff] %v2383
        %2780 = vst [vmem:[#allocation2 + $0x358] sm:$0xff] %v2385
        %2781 = vst.msk [vmem:[#allocation2 + $0x360] sm:$0xff] %vm993, %v2643
        %2782 = vst [vmem:[#allocation2 + $0x378] sm:$0xff] %v2389
        %2783 = vst [vmem:[#allocation2 + $0x380] sm:$0xff] %v2391
        %2784 = vst.msk [vmem:[#allocation2 + $0x388] sm:$0xff] %vm993, %v2648
        %2785 = vst [vmem:[#allocation2 + $0x3a0] sm:$0xff] %v2395
        %2786 = vst [vmem:[#allocation2 + $0x3a8] sm:$0xff] %v2397
        %2787 = vst.msk [vmem:[#allocation2 + $0x3b0] sm:$0xff] %vm993, %v2653
        %2788 = vst [vmem:[#allocation2 + $0x3c8] sm:$0xff] %v2401
        %2789 = vst [vmem:[#allocation2 + $0x3d0] sm:$0xff] %v2403
        %2790 = vst.msk [vmem:[#allocation2 + $0x3d8] sm:$0xff] %vm993, %v2658
        %2791 = vst [vmem:[#allocation2 + $0x3f0] sm:$0xff] %v2407
        %2792 = vst [vmem:[#allocation2 + $0x3f8] sm:$0xff] %v2409
        %2793 = vst.msk [vmem:[#allocation2 + $0x400] sm:$0xff] %vm993, %v2663
        %2794 = vst [vmem:[#allocation2 + $0x418] sm:$0xff] %v2413
        %2795 = vst [vmem:[#allocation2 + $0x420] sm:$0xff] %v2415
        %2796 = vst.msk [vmem:[#allocation2 + $0x428] sm:$0xff] %vm993, %v2668
        %2797 = vst [vmem:[#allocation2 + $0x440] sm:$0xff] %v2419
        %2798 = vst [vmem:[#allocation2 + $0x448] sm:$0xff] %v2421
        %2799 = vst.msk [vmem:[#allocation2 + $0x450] sm:$0xff] %vm993, %v2673
        %2800 = vst [vmem:[#allocation2 + $0x468] sm:$0xff] %v2425
        %2801 = vst [vmem:[#allocation2 + $0x470] sm:$0xff] %v2427
        %2802 = vst.msk [vmem:[#allocation2 + $0x478] sm:$0xff] %vm993, %v2678
        %2803 = vst [vmem:[#allocation2 + $0x490] sm:$0xff] %v2431
        %2804 = vst [vmem:[#allocation2 + $0x498] sm:$0xff] %v2433
        %2805 = vst.msk [vmem:[#allocation2 + $0x4a0] sm:$0xff] %vm993, %v2683
        %2806 = vst [vmem:[#allocation2 + $0x4b8] sm:$0xff] %v2437
        %2807 = vst [vmem:[#allocation2 + $0x4c0] sm:$0xff] %v2439
        %2808 = vst.msk [vmem:[#allocation2 + $0x4c8] sm:$0xff] %vm993, %v2688
        %2809 = vst [vmem:[#allocation2 + $0x4e0] sm:$0xff] %v2443
        %2810 = vst [vmem:[#allocation2 + $0x4e8] sm:$0xff] %v2445
        %2811 = vst.msk [vmem:[#allocation2 + $0x4f0] sm:$0xff] %vm993, %v2693
        %2812 = vst [vmem:[#allocation2 + $0x508] sm:$0xff] %v2449
        %2813 = vst [vmem:[#allocation2 + $0x510] sm:$0xff] %v2451
        %2814 = vst.msk [vmem:[#allocation2 + $0x518] sm:$0xff] %vm993, %v2698
        %2815 = vst [vmem:[#allocation2 + $0x530] sm:$0xff] %v2455
        %2816 = vst [vmem:[#allocation2 + $0x538] sm:$0xff] %v2457
        %2817 = vst.msk [vmem:[#allocation2 + $0x540] sm:$0xff] %vm993, %v2703
        %2818 = vst [vmem:[#allocation2 + $0x558] sm:$0xff] %v2461
        %2819 = vst [vmem:[#allocation2 + $0x560] sm:$0xff] %v2463
        %2820 = vst.msk [vmem:[#allocation2 + $0x568] sm:$0xff] %vm993, %v2708
        %2821 = vst [vmem:[#allocation2 + $0x580] sm:$0xff] %v2467
        %2822 = vst [vmem:[#allocation2 + $0x588] sm:$0xff] %v2469
        %2823 = vst.msk [vmem:[#allocation2 + $0x590] sm:$0xff] %vm993, %v2713
        %v2824 = vld [vmem:[%s4] sm:$0xff]
        %v2825 = vld [vmem:[%s4 + $0x8] sm:$0xff]
        %v2826 = vld [vmem:[%s4 + $0x10] sm:$0xff]
        %v2827 = vld [vmem:[%s4 + $0x18] sm:$0xff]
        %2829 = vset.pattern.permute.xlu0 0
        %2830 = vperm.xlu0 %2829, %v2824
        %v2831 = vpop.permute.xlu0 %2830
        %2834 = vset.pattern.permute.xlu0 0
        %2835 = vperm.xlu0 %2834, %v2825
        %v2836 = vpop.permute.xlu0 %2835
        %2839 = vset.pattern.permute.xlu0 0
        %2840 = vperm.xlu0 %2839, %v2826
        %v2841 = vpop.permute.xlu0 %2840
        %2844 = vset.pattern.permute.xlu0 0
        %2845 = vperm.xlu0 %2844, %v2827
        %v2846 = vpop.permute.xlu0 %2845
        %v2848 = vld [vmem:[#allocation2] sm:$0xff]
        %v2849 = vld [vmem:[#allocation2 + $0x8] sm:$0xff]
        %v2850 = vld [vmem:[#allocation2 + $0x10] sm:$0xff]
        %v2851 = vld [vmem:[#allocation2 + $0x18] sm:$0xff]
        %v2852 = vld [vmem:[#allocation2 + $0x28] sm:$0xff]
        %v2853 = vld [vmem:[#allocation2 + $0x30] sm:$0xff]
        %v2854 = vld [vmem:[#allocation2 + $0x38] sm:$0xff]
        %v2855 = vld [vmem:[#allocation2 + $0x40] sm:$0xff]
        %v2856 = vld [vmem:[#allocation2 + $0x50] sm:$0xff]
        %v2857 = vld [vmem:[#allocation2 + $0x58] sm:$0xff]
        %v2858 = vld [vmem:[#allocation2 + $0x60] sm:$0xff]
        %v2859 = vld [vmem:[#allocation2 + $0x68] sm:$0xff]
        %v2860 = vld [vmem:[#allocation2 + $0x78] sm:$0xff]
        %v2861 = vld [vmem:[#allocation2 + $0x80] sm:$0xff]
        %v2862 = vld [vmem:[#allocation2 + $0x88] sm:$0xff]
        %v2863 = vld [vmem:[#allocation2 + $0x90] sm:$0xff]
        %v2864 = vadd.f32 %v2831, %v2848
        %v2865 = vadd.f32 %v2831, %v2849
        %v2866 = vadd.f32 %v2831, %v2850
        %v2867 = vadd.f32 %v2831, %v2851
        %v2868 = vadd.f32 %v2836, %v2852
        %v2869 = vadd.f32 %v2836, %v2853
        %v2870 = vadd.f32 %v2836, %v2854
        %v2871 = vadd.f32 %v2836, %v2855
        %v2872 = vadd.f32 %v2841, %v2856
        %v2873 = vadd.f32 %v2841, %v2857
        %v2874 = vadd.f32 %v2841, %v2858
        %v2875 = vadd.f32 %v2841, %v2859
        %v2876 = vadd.f32 %v2846, %v2860
        %v2877 = vadd.f32 %v2846, %v2861
        %v2878 = vadd.f32 %v2846, %v2862
        %v2879 = vadd.f32 %v2846, %v2863
        %v2880 = vld [vmem:[#allocation2 + $0xa0] sm:$0xff]
        %v2881 = vld [vmem:[#allocation2 + $0xa8] sm:$0xff]
        %v2882 = vld [vmem:[#allocation2 + $0xb0] sm:$0xff]
        %v2883 = vld [vmem:[#allocation2 + $0xb8] sm:$0xff]
        %v2884 = vld [vmem:[#allocation2 + $0xc8] sm:$0xff]
        %v2885 = vld [vmem:[#allocation2 + $0xd0] sm:$0xff]
        %v2886 = vld [vmem:[#allocation2 + $0xd8] sm:$0xff]
        %v2887 = vld [vmem:[#allocation2 + $0xe0] sm:$0xff]
        %v2888 = vld [vmem:[#allocation2 + $0xf0] sm:$0xff]
        %v2889 = vld [vmem:[#allocation2 + $0xf8] sm:$0xff]
        %v2890 = vld [vmem:[#allocation2 + $0x100] sm:$0xff]
        %v2891 = vld [vmem:[#allocation2 + $0x108] sm:$0xff]
        %v2892 = vld [vmem:[#allocation2 + $0x118] sm:$0xff]
        %v2893 = vld [vmem:[#allocation2 + $0x120] sm:$0xff]
        %v2894 = vld [vmem:[#allocation2 + $0x128] sm:$0xff]
        %v2895 = vld [vmem:[#allocation2 + $0x130] sm:$0xff]
        %2912 = vrot.lane.b32.xlu0 %v2880, 127
        %v2913 = vpop.permute.xlu0 %2912
        %2914 = vrot.lane.b32.xlu0 %v2881, 127
        %v2915 = vpop.permute.xlu0 %2914
        %2916 = vrot.lane.b32.xlu0 %v2882, 127
        %v2917 = vpop.permute.xlu0 %2916
        %2918 = vrot.lane.b32.xlu0 %v2883, 127
        %v2919 = vpop.permute.xlu0 %2918
        %2920 = vrot.lane.b32.xlu0 %v2884, 127
        %v2921 = vpop.permute.xlu0 %2920
        %2922 = vrot.lane.b32.xlu0 %v2885, 127
        %v2923 = vpop.permute.xlu0 %2922
        %2924 = vrot.lane.b32.xlu0 %v2886, 127
        %v2925 = vpop.permute.xlu0 %2924
        %2926 = vrot.lane.b32.xlu0 %v2887, 127
        %v2927 = vpop.permute.xlu0 %2926
        %2928 = vrot.lane.b32.xlu0 %v2888, 127
        %v2929 = vpop.permute.xlu0 %2928
        %2930 = vrot.lane.b32.xlu0 %v2889, 127
        %v2931 = vpop.permute.xlu0 %2930
        %2932 = vrot.lane.b32.xlu0 %v2890, 127
        %v2933 = vpop.permute.xlu0 %2932
        %2934 = vrot.lane.b32.xlu0 %v2891, 127
        %v2935 = vpop.permute.xlu0 %2934
        %2936 = vrot.lane.b32.xlu0 %v2892, 127
        %v2937 = vpop.permute.xlu0 %2936
        %2938 = vrot.lane.b32.xlu0 %v2893, 127
        %v2939 = vpop.permute.xlu0 %2938
        %2940 = vrot.lane.b32.xlu0 %v2894, 127
        %v2941 = vpop.permute.xlu0 %2940
        %2942 = vrot.lane.b32.xlu0 %v2895, 127
        %v2943 = vpop.permute.xlu0 %2942
        %v2944 = vsel %vm1220, %v2913, %v2915
        %v2945 = vsel %vm1220, %v2915, %v2917
        %v2946 = vsel %vm1220, %v2917, %v2919
        %v2947 = vsel %vm1220, %v2921, %v2923
        %v2948 = vsel %vm1220, %v2923, %v2925
        %v2949 = vsel %vm1220, %v2925, %v2927
        %v2950 = vsel %vm1220, %v2929, %v2931
        %v2951 = vsel %vm1220, %v2931, %v2933
        %v2952 = vsel %vm1220, %v2933, %v2935
        %v2953 = vsel %vm1220, %v2937, %v2939
        %v2954 = vsel %vm1220, %v2939, %v2941
        %v2955 = vsel %vm1220, %v2941, %v2943
        %v2972 = vadd.f32 %v2864, %v2944
        %v2973 = vadd.f32 %v2865, %v2945
        %v2974 = vadd.f32 %v2866, %v2946
        %v2975 = vadd.f32 %v2867, %v2919
        %v2976 = vadd.f32 %v2868, %v2947
        %v2977 = vadd.f32 %v2869, %v2948
        %v2978 = vadd.f32 %v2870, %v2949
        %v2979 = vadd.f32 %v2871, %v2927
        %v2980 = vadd.f32 %v2872, %v2950
        %v2981 = vadd.f32 %v2873, %v2951
        %v2982 = vadd.f32 %v2874, %v2952
        %v2983 = vadd.f32 %v2875, %v2935
        %v2984 = vadd.f32 %v2876, %v2953
        %v2985 = vadd.f32 %v2877, %v2954
        %v2986 = vadd.f32 %v2878, %v2955
        %v2987 = vadd.f32 %v2879, %v2943
        %v2988 = vld [vmem:[#allocation2 + $0x140] sm:$0xff]
        %v2989 = vld [vmem:[#allocation2 + $0x148] sm:$0xff]
        %v2990 = vld [vmem:[#allocation2 + $0x150] sm:$0xff]
        %v2991 = vld [vmem:[#allocation2 + $0x158] sm:$0xff]
        %v2992 = vld [vmem:[#allocation2 + $0x168] sm:$0xff]
        %v2993 = vld [vmem:[#allocation2 + $0x170] sm:$0xff]
        %v2994 = vld [vmem:[#allocation2 + $0x178] sm:$0xff]
        %v2995 = vld [vmem:[#allocation2 + $0x180] sm:$0xff]
        %v2996 = vld [vmem:[#allocation2 + $0x190] sm:$0xff]
        %v2997 = vld [vmem:[#allocation2 + $0x198] sm:$0xff]
        %v2998 = vld [vmem:[#allocation2 + $0x1a0] sm:$0xff]
        %v2999 = vld [vmem:[#allocation2 + $0x1a8] sm:$0xff]
        %v3000 = vld [vmem:[#allocation2 + $0x1b8] sm:$0xff]
        %v3001 = vld [vmem:[#allocation2 + $0x1c0] sm:$0xff]
        %v3002 = vld [vmem:[#allocation2 + $0x1c8] sm:$0xff]
        %v3003 = vld [vmem:[#allocation2 + $0x1d0] sm:$0xff]
        %3020 = vrot.lane.b32.xlu0 %v2988, 126
        %v3021 = vpop.permute.xlu0 %3020
        %3022 = vrot.lane.b32.xlu0 %v2989, 126
        %v3023 = vpop.permute.xlu0 %3022
        %3024 = vrot.lane.b32.xlu0 %v2990, 126
        %v3025 = vpop.permute.xlu0 %3024
        %3026 = vrot.lane.b32.xlu0 %v2991, 126
        %v3027 = vpop.permute.xlu0 %3026
        %3028 = vrot.lane.b32.xlu0 %v2992, 126
        %v3029 = vpop.permute.xlu0 %3028
        %3030 = vrot.lane.b32.xlu0 %v2993, 126
        %v3031 = vpop.permute.xlu0 %3030
        %3032 = vrot.lane.b32.xlu0 %v2994, 126
        %v3033 = vpop.permute.xlu0 %3032
        %3034 = vrot.lane.b32.xlu0 %v2995, 126
        %v3035 = vpop.permute.xlu0 %3034
        %3036 = vrot.lane.b32.xlu0 %v2996, 126
        %v3037 = vpop.permute.xlu0 %3036
        %3038 = vrot.lane.b32.xlu0 %v2997, 126
        %v3039 = vpop.permute.xlu0 %3038
        %3040 = vrot.lane.b32.xlu0 %v2998, 126
        %v3041 = vpop.permute.xlu0 %3040
        %3042 = vrot.lane.b32.xlu0 %v2999, 126
        %v3043 = vpop.permute.xlu0 %3042
        %3044 = vrot.lane.b32.xlu0 %v3000, 126
        %v3045 = vpop.permute.xlu0 %3044
        %3046 = vrot.lane.b32.xlu0 %v3001, 126
        %v3047 = vpop.permute.xlu0 %3046
        %3048 = vrot.lane.b32.xlu0 %v3002, 126
        %v3049 = vpop.permute.xlu0 %3048
        %3050 = vrot.lane.b32.xlu0 %v3003, 126
        %v3051 = vpop.permute.xlu0 %3050
        %v3052 = vsel %vm1329, %v3021, %v3023
        %v3053 = vsel %vm1329, %v3023, %v3025
        %v3054 = vsel %vm1329, %v3025, %v3027
        %v3055 = vsel %vm1329, %v3029, %v3031
        %v3056 = vsel %vm1329, %v3031, %v3033
        %v3057 = vsel %vm1329, %v3033, %v3035
        %v3058 = vsel %vm1329, %v3037, %v3039
        %v3059 = vsel %vm1329, %v3039, %v3041
        %v3060 = vsel %vm1329, %v3041, %v3043
        %v3061 = vsel %vm1329, %v3045, %v3047
        %v3062 = vsel %vm1329, %v3047, %v3049
        %v3063 = vsel %vm1329, %v3049, %v3051
        %v3080 = vadd.f32 %v2972, %v3052
        %v3081 = vadd.f32 %v2973, %v3053
        %v3082 = vadd.f32 %v2974, %v3054
        %v3083 = vadd.f32 %v2975, %v3027
        %v3084 = vadd.f32 %v2976, %v3055
        %v3085 = vadd.f32 %v2977, %v3056
        %v3086 = vadd.f32 %v2978, %v3057
        %v3087 = vadd.f32 %v2979, %v3035
        %v3088 = vadd.f32 %v2980, %v3058
        %v3089 = vadd.f32 %v2981, %v3059
        %v3090 = vadd.f32 %v2982, %v3060
        %v3091 = vadd.f32 %v2983, %v3043
        %v3092 = vadd.f32 %v2984, %v3061
        %v3093 = vadd.f32 %v2985, %v3062
        %v3094 = vadd.f32 %v2986, %v3063
        %v3095 = vadd.f32 %v2987, %v3051
        %v3096 = vld [vmem:[#allocation2 + $0x1e0] sm:$0xff]
        %v3097 = vld [vmem:[#allocation2 + $0x1e8] sm:$0xff]
        %v3098 = vld [vmem:[#allocation2 + $0x1f0] sm:$0xff]
        %v3099 = vld [vmem:[#allocation2 + $0x1f8] sm:$0xff]
        %v3100 = vld [vmem:[#allocation2 + $0x208] sm:$0xff]
        %v3101 = vld [vmem:[#allocation2 + $0x210] sm:$0xff]
        %v3102 = vld [vmem:[#allocation2 + $0x218] sm:$0xff]
        %v3103 = vld [vmem:[#allocation2 + $0x220] sm:$0xff]
        %v3104 = vld [vmem:[#allocation2 + $0x230] sm:$0xff]
        %v3105 = vld [vmem:[#allocation2 + $0x238] sm:$0xff]
        %v3106 = vld [vmem:[#allocation2 + $0x240] sm:$0xff]
        %v3107 = vld [vmem:[#allocation2 + $0x248] sm:$0xff]
        %v3108 = vld [vmem:[#allocation2 + $0x258] sm:$0xff]
        %v3109 = vld [vmem:[#allocation2 + $0x260] sm:$0xff]
        %v3110 = vld [vmem:[#allocation2 + $0x268] sm:$0xff]
        %v3111 = vld [vmem:[#allocation2 + $0x270] sm:$0xff]
        %3128 = vrot.lane.b32.xlu0 %v3096, 110
        %v3129 = vpop.permute.xlu0 %3128
        %3130 = vrot.lane.b32.xlu0 %v3097, 110
        %v3131 = vpop.permute.xlu0 %3130
        %3132 = vrot.lane.b32.xlu0 %v3098, 110
        %v3133 = vpop.permute.xlu0 %3132
        %3134 = vrot.lane.b32.xlu0 %v3099, 110
        %v3135 = vpop.permute.xlu0 %3134
        %3136 = vrot.lane.b32.xlu0 %v3100, 110
        %v3137 = vpop.permute.xlu0 %3136
        %3138 = vrot.lane.b32.xlu0 %v3101, 110
        %v3139 = vpop.permute.xlu0 %3138
        %3140 = vrot.lane.b32.xlu0 %v3102, 110
        %v3141 = vpop.permute.xlu0 %3140
        %3142 = vrot.lane.b32.xlu0 %v3103, 110
        %v3143 = vpop.permute.xlu0 %3142
        %3144 = vrot.lane.b32.xlu0 %v3104, 110
        %v3145 = vpop.permute.xlu0 %3144
        %3146 = vrot.lane.b32.xlu0 %v3105, 110
        %v3147 = vpop.permute.xlu0 %3146
        %3148 = vrot.lane.b32.xlu0 %v3106, 110
        %v3149 = vpop.permute.xlu0 %3148
        %3150 = vrot.lane.b32.xlu0 %v3107, 110
        %v3151 = vpop.permute.xlu0 %3150
        %3152 = vrot.lane.b32.xlu0 %v3108, 110
        %v3153 = vpop.permute.xlu0 %3152
        %3154 = vrot.lane.b32.xlu0 %v3109, 110
        %v3155 = vpop.permute.xlu0 %3154
        %3156 = vrot.lane.b32.xlu0 %v3110, 110
        %v3157 = vpop.permute.xlu0 %3156
        %3158 = vrot.lane.b32.xlu0 %v3111, 110
        %v3159 = vpop.permute.xlu0 %3158
        %v3160 = vsel %vm1438, %v3129, %v3131
        %v3161 = vsel %vm1438, %v3131, %v3133
        %v3162 = vsel %vm1438, %v3133, %v3135
        %v3163 = vsel %vm1438, %v3137, %v3139
        %v3164 = vsel %vm1438, %v3139, %v3141
        %v3165 = vsel %vm1438, %v3141, %v3143
        %v3166 = vsel %vm1438, %v3145, %v3147
        %v3167 = vsel %vm1438, %v3147, %v3149
        %v3168 = vsel %vm1438, %v3149, %v3151
        %v3169 = vsel %vm1438, %v3153, %v3155
        %v3170 = vsel %vm1438, %v3155, %v3157
        %v3171 = vsel %vm1438, %v3157, %v3159
        %v3188 = vadd.f32 %v3080, %v3160
        %v3189 = vadd.f32 %v3081, %v3161
        %v3190 = vadd.f32 %v3082, %v3162
        %v3191 = vadd.f32 %v3083, %v3135
        %v3192 = vadd.f32 %v3084, %v3163
        %v3193 = vadd.f32 %v3085, %v3164
        %v3194 = vadd.f32 %v3086, %v3165
        %v3195 = vadd.f32 %v3087, %v3143
        %v3196 = vadd.f32 %v3088, %v3166
        %v3197 = vadd.f32 %v3089, %v3167
        %v3198 = vadd.f32 %v3090, %v3168
        %v3199 = vadd.f32 %v3091, %v3151
        %v3200 = vadd.f32 %v3092, %v3169
        %v3201 = vadd.f32 %v3093, %v3170
        %v3202 = vadd.f32 %v3094, %v3171
        %v3203 = vadd.f32 %v3095, %v3159
        %v3204 = vld [vmem:[#allocation2 + $0x288] sm:$0xff]
        %v3205 = vld [vmem:[#allocation2 + $0x290] sm:$0xff]
        %v3206 = vld [vmem:[#allocation2 + $0x298] sm:$0xff]
        %v3207 = vld [vmem:[#allocation2 + $0x2b0] sm:$0xff]
        %v3208 = vld [vmem:[#allocation2 + $0x2b8] sm:$0xff]
        %v3209 = vld [vmem:[#allocation2 + $0x2c0] sm:$0xff]
        %v3210 = vld [vmem:[#allocation2 + $0x2d8] sm:$0xff]
        %v3211 = vld [vmem:[#allocation2 + $0x2e0] sm:$0xff]
        %v3212 = vld [vmem:[#allocation2 + $0x2e8] sm:$0xff]
        %v3213 = vld [vmem:[#allocation2 + $0x300] sm:$0xff]
        %v3214 = vld [vmem:[#allocation2 + $0x308] sm:$0xff]
        %v3215 = vld [vmem:[#allocation2 + $0x310] sm:$0xff]
        %3228 = vrot.lane.b32.xlu0 %v3204, 109
        %v3229 = vpop.permute.xlu0 %3228
        %3230 = vrot.lane.b32.xlu0 %v3205, 109
        %v3231 = vpop.permute.xlu0 %3230
        %3232 = vrot.lane.b32.xlu0 %v3206, 109
        %v3233 = vpop.permute.xlu0 %3232
        %3234 = vrot.lane.b32.xlu0 %v3207, 109
        %v3235 = vpop.permute.xlu0 %3234
        %3236 = vrot.lane.b32.xlu0 %v3208, 109
        %v3237 = vpop.permute.xlu0 %3236
        %3238 = vrot.lane.b32.xlu0 %v3209, 109
        %v3239 = vpop.permute.xlu0 %3238
        %3240 = vrot.lane.b32.xlu0 %v3210, 109
        %v3241 = vpop.permute.xlu0 %3240
        %3242 = vrot.lane.b32.xlu0 %v3211, 109
        %v3243 = vpop.permute.xlu0 %3242
        %3244 = vrot.lane.b32.xlu0 %v3212, 109
        %v3245 = vpop.permute.xlu0 %3244
        %3246 = vrot.lane.b32.xlu0 %v3213, 109
        %v3247 = vpop.permute.xlu0 %3246
        %3248 = vrot.lane.b32.xlu0 %v3214, 109
        %v3249 = vpop.permute.xlu0 %3248
        %3250 = vrot.lane.b32.xlu0 %v3215, 109
        %v3251 = vpop.permute.xlu0 %3250
        %v3252 = vsel %vm1531, %v3229, %v3231
        %v3253 = vsel %vm1531, %v3231, %v3233
        %v3254 = vsel %vm1531, %v3235, %v3237
        %v3255 = vsel %vm1531, %v3237, %v3239
        %v3256 = vsel %vm1531, %v3241, %v3243
        %v3257 = vsel %vm1531, %v3243, %v3245
        %v3258 = vsel %vm1531, %v3247, %v3249
        %v3259 = vsel %vm1531, %v3249, %v3251
        %v3276 = vadd.f32 %v3188, %v3229
        %v3277 = vadd.f32 %v3189, %v3252
        %v3278 = vadd.f32 %v3190, %v3253
        %v3279 = vadd.f32 %v3191, %v3233
        %v3280 = vadd.f32 %v3192, %v3235
        %v3281 = vadd.f32 %v3193, %v3254
        %v3282 = vadd.f32 %v3194, %v3255
        %v3283 = vadd.f32 %v3195, %v3239
        %v3284 = vadd.f32 %v3196, %v3241
        %v3285 = vadd.f32 %v3197, %v3256
        %v3286 = vadd.f32 %v3198, %v3257
        %v3287 = vadd.f32 %v3199, %v3245
        %v3288 = vadd.f32 %v3200, %v3247
        %v3289 = vadd.f32 %v3201, %v3258
        %v3290 = vadd.f32 %v3202, %v3259
        %v3291 = vadd.f32 %v3203, %v3251
        %v3292 = vld [vmem:[#allocation2 + $0x328] sm:$0xff]
        %v3293 = vld [vmem:[#allocation2 + $0x330] sm:$0xff]
        %v3294 = vld [vmem:[#allocation2 + $0x338] sm:$0xff]
        %v3295 = vld [vmem:[#allocation2 + $0x350] sm:$0xff]
        %v3296 = vld [vmem:[#allocation2 + $0x358] sm:$0xff]
        %v3297 = vld [vmem:[#allocation2 + $0x360] sm:$0xff]
        %v3298 = vld [vmem:[#allocation2 + $0x378] sm:$0xff]
        %v3299 = vld [vmem:[#allocation2 + $0x380] sm:$0xff]
        %v3300 = vld [vmem:[#allocation2 + $0x388] sm:$0xff]
        %v3301 = vld [vmem:[#allocation2 + $0x3a0] sm:$0xff]
        %v3302 = vld [vmem:[#allocation2 + $0x3a8] sm:$0xff]
        %v3303 = vld [vmem:[#allocation2 + $0x3b0] sm:$0xff]
        %3316 = vrot.lane.b32.xlu0 %v3292, 108
        %v3317 = vpop.permute.xlu0 %3316
        %3318 = vrot.lane.b32.xlu0 %v3293, 108
        %v3319 = vpop.permute.xlu0 %3318
        %3320 = vrot.lane.b32.xlu0 %v3294, 108
        %v3321 = vpop.permute.xlu0 %3320
        %3322 = vrot.lane.b32.xlu0 %v3295, 108
        %v3323 = vpop.permute.xlu0 %3322
        %3324 = vrot.lane.b32.xlu0 %v3296, 108
        %v3325 = vpop.permute.xlu0 %3324
        %3326 = vrot.lane.b32.xlu0 %v3297, 108
        %v3327 = vpop.permute.xlu0 %3326
        %3328 = vrot.lane.b32.xlu0 %v3298, 108
        %v3329 = vpop.permute.xlu0 %3328
        %3330 = vrot.lane.b32.xlu0 %v3299, 108
        %v3331 = vpop.permute.xlu0 %3330
        %3332 = vrot.lane.b32.xlu0 %v3300, 108
        %v3333 = vpop.permute.xlu0 %3332
        %3334 = vrot.lane.b32.xlu0 %v3301, 108
        %v3335 = vpop.permute.xlu0 %3334
        %3336 = vrot.lane.b32.xlu0 %v3302, 108
        %v3337 = vpop.permute.xlu0 %3336
        %3338 = vrot.lane.b32.xlu0 %v3303, 108
        %v3339 = vpop.permute.xlu0 %3338
        %v3340 = vsel %vm1620, %v3317, %v3319
        %v3341 = vsel %vm1620, %v3319, %v3321
        %v3342 = vsel %vm1620, %v3323, %v3325
        %v3343 = vsel %vm1620, %v3325, %v3327
        %v3344 = vsel %vm1620, %v3329, %v3331
        %v3345 = vsel %vm1620, %v3331, %v3333
        %v3346 = vsel %vm1620, %v3335, %v3337
        %v3347 = vsel %vm1620, %v3337, %v3339
        %v3364 = vadd.f32 %v3276, %v3317
        %v3365 = vadd.f32 %v3277, %v3340
        %v3366 = vadd.f32 %v3278, %v3341
        %v3367 = vadd.f32 %v3279, %v3321
        %v3368 = vadd.f32 %v3280, %v3323
        %v3369 = vadd.f32 %v3281, %v3342
        %v3370 = vadd.f32 %v3282, %v3343
        %v3371 = vadd.f32 %v3283, %v3327
        %v3372 = vadd.f32 %v3284, %v3329
        %v3373 = vadd.f32 %v3285, %v3344
        %v3374 = vadd.f32 %v3286, %v3345
        %v3375 = vadd.f32 %v3287, %v3333
        %v3376 = vadd.f32 %v3288, %v3335
        %v3377 = vadd.f32 %v3289, %v3346
        %v3378 = vadd.f32 %v3290, %v3347
        %v3379 = vadd.f32 %v3291, %v3339
        %v3380 = vld [vmem:[#allocation2 + $0x3c8] sm:$0xff]
        %v3381 = vld [vmem:[#allocation2 + $0x3d0] sm:$0xff]
        %v3382 = vld [vmem:[#allocation2 + $0x3d8] sm:$0xff]
        %v3383 = vld [vmem:[#allocation2 + $0x3f0] sm:$0xff]
        %v3384 = vld [vmem:[#allocation2 + $0x3f8] sm:$0xff]
        %v3385 = vld [vmem:[#allocation2 + $0x400] sm:$0xff]
        %v3386 = vld [vmem:[#allocation2 + $0x418] sm:$0xff]
        %v3387 = vld [vmem:[#allocation2 + $0x420] sm:$0xff]
        %v3388 = vld [vmem:[#allocation2 + $0x428] sm:$0xff]
        %v3389 = vld [vmem:[#allocation2 + $0x440] sm:$0xff]
        %v3390 = vld [vmem:[#allocation2 + $0x448] sm:$0xff]
        %v3391 = vld [vmem:[#allocation2 + $0x450] sm:$0xff]
        %3404 = vrot.lane.b32.xlu0 %v3380, 92
        %v3405 = vpop.permute.xlu0 %3404
        %3406 = vrot.lane.b32.xlu0 %v3381, 92
        %v3407 = vpop.permute.xlu0 %3406
        %3408 = vrot.lane.b32.xlu0 %v3382, 92
        %v3409 = vpop.permute.xlu0 %3408
        %3410 = vrot.lane.b32.xlu0 %v3383, 92
        %v3411 = vpop.permute.xlu0 %3410
        %3412 = vrot.lane.b32.xlu0 %v3384, 92
        %v3413 = vpop.permute.xlu0 %3412
        %3414 = vrot.lane.b32.xlu0 %v3385, 92
        %v3415 = vpop.permute.xlu0 %3414
        %3416 = vrot.lane.b32.xlu0 %v3386, 92
        %v3417 = vpop.permute.xlu0 %3416
        %3418 = vrot.lane.b32.xlu0 %v3387, 92
        %v3419 = vpop.permute.xlu0 %3418
        %3420 = vrot.lane.b32.xlu0 %v3388, 92
        %v3421 = vpop.permute.xlu0 %3420
        %3422 = vrot.lane.b32.xlu0 %v3389, 92
        %v3423 = vpop.permute.xlu0 %3422
        %3424 = vrot.lane.b32.xlu0 %v3390, 92
        %v3425 = vpop.permute.xlu0 %3424
        %3426 = vrot.lane.b32.xlu0 %v3391, 92
        %v3427 = vpop.permute.xlu0 %3426
        %v3428 = vsel %vm1709, %v3405, %v3407
        %v3429 = vsel %vm1709, %v3407, %v3409
        %v3430 = vsel %vm1709, %v3411, %v3413
        %v3431 = vsel %vm1709, %v3413, %v3415
        %v3432 = vsel %vm1709, %v3417, %v3419
        %v3433 = vsel %vm1709, %v3419, %v3421
        %v3434 = vsel %vm1709, %v3423, %v3425
        %v3435 = vsel %vm1709, %v3425, %v3427
        %v3452 = vadd.f32 %v3364, %v3405
        %v3453 = vadd.f32 %v3365, %v3428
        %v3454 = vadd.f32 %v3366, %v3429
        %v3455 = vadd.f32 %v3367, %v3409
        %v3456 = vadd.f32 %v3368, %v3411
        %v3457 = vadd.f32 %v3369, %v3430
        %v3458 = vadd.f32 %v3370, %v3431
        %v3459 = vadd.f32 %v3371, %v3415
        %v3460 = vadd.f32 %v3372, %v3417
        %v3461 = vadd.f32 %v3373, %v3432
        %v3462 = vadd.f32 %v3374, %v3433
        %v3463 = vadd.f32 %v3375, %v3421
        %v3464 = vadd.f32 %v3376, %v3423
        %v3465 = vadd.f32 %v3377, %v3434
        %v3466 = vadd.f32 %v3378, %v3435
        %v3467 = vadd.f32 %v3379, %v3427
        %v3468 = vld [vmem:[#allocation2 + $0x468] sm:$0xff]
        %v3469 = vld [vmem:[#allocation2 + $0x470] sm:$0xff]
        %v3470 = vld [vmem:[#allocation2 + $0x478] sm:$0xff]
        %v3471 = vld [vmem:[#allocation2 + $0x490] sm:$0xff]
        %v3472 = vld [vmem:[#allocation2 + $0x498] sm:$0xff]
        %v3473 = vld [vmem:[#allocation2 + $0x4a0] sm:$0xff]
        %v3474 = vld [vmem:[#allocation2 + $0x4b8] sm:$0xff]
        %v3475 = vld [vmem:[#allocation2 + $0x4c0] sm:$0xff]
        %v3476 = vld [vmem:[#allocation2 + $0x4c8] sm:$0xff]
        %v3477 = vld [vmem:[#allocation2 + $0x4e0] sm:$0xff]
        %v3478 = vld [vmem:[#allocation2 + $0x4e8] sm:$0xff]
        %v3479 = vld [vmem:[#allocation2 + $0x4f0] sm:$0xff]
        %3492 = vrot.lane.b32.xlu0 %v3468, 91
        %v3493 = vpop.permute.xlu0 %3492
        %3494 = vrot.lane.b32.xlu0 %v3469, 91
        %v3495 = vpop.permute.xlu0 %3494
        %3496 = vrot.lane.b32.xlu0 %v3470, 91
        %v3497 = vpop.permute.xlu0 %3496
        %3498 = vrot.lane.b32.xlu0 %v3471, 91
        %v3499 = vpop.permute.xlu0 %3498
        %3500 = vrot.lane.b32.xlu0 %v3472, 91
        %v3501 = vpop.permute.xlu0 %3500
        %3502 = vrot.lane.b32.xlu0 %v3473, 91
        %v3503 = vpop.permute.xlu0 %3502
        %3504 = vrot.lane.b32.xlu0 %v3474, 91
        %v3505 = vpop.permute.xlu0 %3504
        %3506 = vrot.lane.b32.xlu0 %v3475, 91
        %v3507 = vpop.permute.xlu0 %3506
        %3508 = vrot.lane.b32.xlu0 %v3476, 91
        %v3509 = vpop.permute.xlu0 %3508
        %3510 = vrot.lane.b32.xlu0 %v3477, 91
        %v3511 = vpop.permute.xlu0 %3510
        %3512 = vrot.lane.b32.xlu0 %v3478, 91
        %v3513 = vpop.permute.xlu0 %3512
        %3514 = vrot.lane.b32.xlu0 %v3479, 91
        %v3515 = vpop.permute.xlu0 %3514
        %v3516 = vsel %vm1798, %v3493, %v3495
        %v3517 = vsel %vm1798, %v3495, %v3497
        %v3518 = vsel %vm1798, %v3499, %v3501
        %v3519 = vsel %vm1798, %v3501, %v3503
        %v3520 = vsel %vm1798, %v3505, %v3507
        %v3521 = vsel %vm1798, %v3507, %v3509
        %v3522 = vsel %vm1798, %v3511, %v3513
        %v3523 = vsel %vm1798, %v3513, %v3515
        %v3540 = vadd.f32 %v3452, %v3493
        %v3541 = vadd.f32 %v3453, %v3516
        %v3542 = vadd.f32 %v3454, %v3517
        %v3543 = vadd.f32 %v3455, %v3497
        %v3544 = vadd.f32 %v3456, %v3499
        %v3545 = vadd.f32 %v3457, %v3518
        %v3546 = vadd.f32 %v3458, %v3519
        %v3547 = vadd.f32 %v3459, %v3503
        %v3548 = vadd.f32 %v3460, %v3505
        %v3549 = vadd.f32 %v3461, %v3520
        %v3550 = vadd.f32 %v3462, %v3521
        %v3551 = vadd.f32 %v3463, %v3509
        %v3552 = vadd.f32 %v3464, %v3511
        %v3553 = vadd.f32 %v3465, %v3522
        %v3554 = vadd.f32 %v3466, %v3523
        %v3555 = vadd.f32 %v3467, %v3515
        %v3556 = vld [vmem:[#allocation2 + $0x508] sm:$0xff]
        %v3557 = vld [vmem:[#allocation2 + $0x510] sm:$0xff]
        %v3558 = vld [vmem:[#allocation2 + $0x518] sm:$0xff]
        %v3559 = vld [vmem:[#allocation2 + $0x530] sm:$0xff]
        %v3560 = vld [vmem:[#allocation2 + $0x538] sm:$0xff]
        %v3561 = vld [vmem:[#allocation2 + $0x540] sm:$0xff]
        %v3562 = vld [vmem:[#allocation2 + $0x558] sm:$0xff]
        %v3563 = vld [vmem:[#allocation2 + $0x560] sm:$0xff]
        %v3564 = vld [vmem:[#allocation2 + $0x568] sm:$0xff]
        %v3565 = vld [vmem:[#allocation2 + $0x580] sm:$0xff]
        %v3566 = vld [vmem:[#allocation2 + $0x588] sm:$0xff]
        %v3567 = vld [vmem:[#allocation2 + $0x590] sm:$0xff]
        %3580 = vrot.lane.b32.xlu0 %v3556, 90
        %v3581 = vpop.permute.xlu0 %3580
        %3582 = vrot.lane.b32.xlu0 %v3557, 90
        %v3583 = vpop.permute.xlu0 %3582
        %3584 = vrot.lane.b32.xlu0 %v3558, 90
        %v3585 = vpop.permute.xlu0 %3584
        %3586 = vrot.lane.b32.xlu0 %v3559, 90
        %v3587 = vpop.permute.xlu0 %3586
        %3588 = vrot.lane.b32.xlu0 %v3560, 90
        %v3589 = vpop.permute.xlu0 %3588
        %3590 = vrot.lane.b32.xlu0 %v3561, 90
        %v3591 = vpop.permute.xlu0 %3590
        %3592 = vrot.lane.b32.xlu0 %v3562, 90
        %v3593 = vpop.permute.xlu0 %3592
        %3594 = vrot.lane.b32.xlu0 %v3563, 90
        %v3595 = vpop.permute.xlu0 %3594
        %3596 = vrot.lane.b32.xlu0 %v3564, 90
        %v3597 = vpop.permute.xlu0 %3596
        %3598 = vrot.lane.b32.xlu0 %v3565, 90
        %v3599 = vpop.permute.xlu0 %3598
        %3600 = vrot.lane.b32.xlu0 %v3566, 90
        %v3601 = vpop.permute.xlu0 %3600
        %3602 = vrot.lane.b32.xlu0 %v3567, 90
        %v3603 = vpop.permute.xlu0 %3602
        %v3604 = vsel %vm1887, %v3581, %v3583
        %v3605 = vsel %vm1887, %v3583, %v3585
        %v3606 = vsel %vm1887, %v3587, %v3589
        %v3607 = vsel %vm1887, %v3589, %v3591
        %v3608 = vsel %vm1887, %v3593, %v3595
        %v3609 = vsel %vm1887, %v3595, %v3597
        %v3610 = vsel %vm1887, %v3599, %v3601
        %v3611 = vsel %vm1887, %v3601, %v3603
        %v3628 = vadd.f32 %v3540, %v3581
        %v3629 = vadd.f32 %v3541, %v3604
        %v3630 = vadd.f32 %v3542, %v3605
        %v3631 = vadd.f32 %v3543, %v3585
        %v3632 = vadd.f32 %v3544, %v3587
        %v3633 = vadd.f32 %v3545, %v3606
        %v3634 = vadd.f32 %v3546, %v3607
        %v3635 = vadd.f32 %v3547, %v3591
        %v3636 = vadd.f32 %v3548, %v3593
        %v3637 = vadd.f32 %v3549, %v3608
        %v3638 = vadd.f32 %v3550, %v3609
        %v3639 = vadd.f32 %v3551, %v3597
        %v3640 = vadd.f32 %v3552, %v3599
        %v3641 = vadd.f32 %v3553, %v3610
        %v3642 = vadd.f32 %v3554, %v3611
        %v3643 = vadd.f32 %v3555, %v3603
        %v3644 = vmax.f32 %v3628, 0.0
        %v3645 = vmax.f32 %v3629, 0.0
        %v3646 = vmax.f32 %v3630, 0.0
        %v3647 = vmax.f32 %v3631, 0.0
        %v3648 = vmax.f32 %v3632, 0.0
        %v3649 = vmax.f32 %v3633, 0.0
        %v3650 = vmax.f32 %v3634, 0.0
        %v3651 = vmax.f32 %v3635, 0.0
        %v3652 = vmax.f32 %v3636, 0.0
        %v3653 = vmax.f32 %v3637, 0.0
        %v3654 = vmax.f32 %v3638, 0.0
        %v3655 = vmax.f32 %v3639, 0.0
        %v3656 = vmax.f32 %v3640, 0.0
        %v3657 = vmax.f32 %v3641, 0.0
        %v3658 = vmax.f32 %v3642, 0.0
        %v3659 = vmax.f32 %v3643, 0.0
        %3676 = vrot.lane.b32.xlu0 %v3644, 19
        %v3677 = vpop.permute.xlu0 %3676
        %3678 = vrot.lane.b32.xlu0 %v3645, 19
        %v3679 = vpop.permute.xlu0 %3678
        %3680 = vrot.lane.b32.xlu0 %v3646, 19
        %v3681 = vpop.permute.xlu0 %3680
        %3682 = vrot.lane.b32.xlu0 %v3647, 19
        %v3683 = vpop.permute.xlu0 %3682
        %3684 = vrot.lane.b32.xlu0 %v3648, 19
        %v3685 = vpop.permute.xlu0 %3684
        %3686 = vrot.lane.b32.xlu0 %v3649, 19
        %v3687 = vpop.permute.xlu0 %3686
        %3688 = vrot.lane.b32.xlu0 %v3650, 19
        %v3689 = vpop.permute.xlu0 %3688
        %3690 = vrot.lane.b32.xlu0 %v3651, 19
        %v3691 = vpop.permute.xlu0 %3690
        %3692 = vrot.lane.b32.xlu0 %v3652, 19
        %v3693 = vpop.permute.xlu0 %3692
        %3694 = vrot.lane.b32.xlu0 %v3653, 19
        %v3695 = vpop.permute.xlu0 %3694
        %3696 = vrot.lane.b32.xlu0 %v3654, 19
        %v3697 = vpop.permute.xlu0 %3696
        %3698 = vrot.lane.b32.xlu0 %v3655, 19
        %v3699 = vpop.permute.xlu0 %3698
        %3700 = vrot.lane.b32.xlu0 %v3656, 19
        %v3701 = vpop.permute.xlu0 %3700
        %3702 = vrot.lane.b32.xlu0 %v3657, 19
        %v3703 = vpop.permute.xlu0 %3702
        %3704 = vrot.lane.b32.xlu0 %v3658, 19
        %v3705 = vpop.permute.xlu0 %3704
        %3706 = vrot.lane.b32.xlu0 %v3659, 19
        %v3707 = vpop.permute.xlu0 %3706
        %v3708 = vsel %vm2008, %v3677, %v3679
        %v3709 = vsel %vm2008, %v3679, %v3681
        %v3710 = vsel %vm2008, %v3681, %v3683
        %v3711 = vsel %vm2008, %v3685, %v3687
        %v3712 = vsel %vm2008, %v3687, %v3689
        %v3713 = vsel %vm2008, %v3689, %v3691
        %v3714 = vsel %vm2008, %v3693, %v3695
        %v3715 = vsel %vm2008, %v3695, %v3697
        %v3716 = vsel %vm2008, %v3697, %v3699
        %v3717 = vsel %vm2008, %v3701, %v3703
        %v3718 = vsel %vm2008, %v3703, %v3705
        %v3719 = vsel %vm2008, %v3705, %v3707
        %v3732 = vsel %vm1957, %v3708, 0.0
        %v3733 = vsel %vm1958, %v3709, 0.0
        %v3734 = vsel %vm1959, %v3710, 0.0
        %v3735 = vsel %vm1957, %v3711, 0.0
        %v3736 = vsel %vm1958, %v3712, 0.0
        %v3737 = vsel %vm1959, %v3713, 0.0
        %v3738 = vsel %vm1957, %v3714, 0.0
        %v3739 = vsel %vm1958, %v3715, 0.0
        %v3740 = vsel %vm1959, %v3716, 0.0
        %v3741 = vsel %vm1957, %v3717, 0.0
        %v3742 = vsel %vm1958, %v3718, 0.0
        %v3743 = vsel %vm1959, %v3719, 0.0
        %v3744 = vld [vmem:[%s5] sm:$0xff]
        %v3745 = vld [vmem:[%s5 + $0x8] sm:$0x1]
        %v3747 = vsel %vm2081, %v3744, 0
        %v3750 = vsel %vm2081, %v3745, 0
        %3752 = vmatprep.subr.mxu0 %v3733
        %3753 = vmatpush1.msra.mxu0 %v3732
        %3754 = vmatprep.subr.mxu0 %v3736
        %3755 = vmatpush1.msra.mxu0 %v3735
        %3756 = vmatprep.subr.mxu0 %v3739
        %3757 = vmatpush1.msra.mxu0 %v3738
        %3758 = vmatprep.subr.mxu0 %v3742
        %3759 = vmatpush1.msra.mxu0 %v3741
        %3760 = vmatprep.subr.mxu0 0.0
        %3761 = vmatpush1.msra.mxu0 0.0
        %3762 = vmatprep.subr.mxu0 0.0
        %3763 = vmatpush1.msra.mxu0 0.0
        %3764 = vmatprep.subr.mxu0 0.0
        %3765 = vmatpush1.msra.mxu0 0.0
        %3766 = vmatprep.subr.mxu0 0.0
        %3767 = vmatpush1.msra.mxu0 0.0
        %3768 = vmatprep.subr.mxu0 0.0
        %3769 = vmatpush1.msra.mxu0 0.0
        %3770 = vmatprep.subr.mxu0 0.0
        %3771 = vmatpush1.msra.mxu0 0.0
        %3772 = vmatprep.subr.mxu0 0.0
        %3773 = vmatpush1.msra.mxu0 0.0
        %3774 = vmatprep.subr.mxu0 0.0
        %3775 = vmatpush1.msra.mxu0 0.0
        %3776 = vmatprep.subr.mxu0 0.0
        %3777 = vmatpush1.msra.mxu0 0.0
        %3778 = vmatprep.subr.mxu0 0.0
        %3779 = vmatpush1.msra.mxu0 0.0
        %3780 = vmatprep.subr.mxu0 0.0
        %3781 = vmatpush1.msra.mxu0 0.0
        %3782 = vmatprep.subr.mxu0 0.0
        %3783 = vmatpush1.msra.mxu0 0.0
        %3784 = vmatprep.subr.mxu0 0.0
        %3785 = vmatpush1.msra.mxu0 0.0
        %3786 = vmatprep.subr.mxu0 0.0
        %3787 = vmatpush1.msra.mxu0 0.0
        %3788 = vmatprep.subr.mxu0 0.0
        %3789 = vmatpush1.msra.mxu0 0.0
        %3790 = vmatprep.subr.mxu0 0.0
        %3791 = vmatpush1.msra.mxu0 0.0
        %3792 = vmatprep.subr.mxu0 0.0
        %3793 = vmatpush1.msra.mxu0 0.0
        %3794 = vmatprep.subr.mxu0 0.0
        %3795 = vmatpush1.msra.mxu0 0.0
        %3796 = vmatprep.subr.mxu0 0.0
        %3797 = vmatpush1.msra.mxu0 0.0
        %3798 = vmatprep.subr.mxu0 0.0
        %3799 = vmatpush1.msra.mxu0 0.0
        %3800 = vmatprep.subr.mxu0 0.0
        %3801 = vmatpush1.msra.mxu0 0.0
        %3802 = vmatprep.subr.mxu0 0.0
        %3803 = vmatpush1.msra.mxu0 0.0
        %3804 = vmatprep.subr.mxu0 0.0
        %3805 = vmatpush1.msra.mxu0 0.0
        %3806 = vmatprep.subr.mxu0 0.0
        %3807 = vmatpush1.msra.mxu0 0.0
        %3808 = vmatprep.subr.mxu0 0.0
        %3809 = vmatpush1.msra.mxu0 0.0
        %3810 = vmatprep.subr.mxu0 0.0
        %3811 = vmatpush1.msra.mxu0 0.0
        %3812 = vmatprep.subr.mxu0 0.0
        %3813 = vmatpush1.msra.mxu0 0.0
        %3814 = vmatprep.subr.mxu0 0.0
        %3815 = vmatpush1.msra.mxu0 0.0
        %3816 = vmatprep.mubr.f32.mxu0 0.0
        %3817 = vmatmul.mubr.f32.gmra.mrb[0].mxu0 %v3747
        %v3818 = vpop.f32.mrb[0].mxu0
        %v3819 = vadd.f32 0.0, %v3818
        %v3820 = vpop.f32.mrb[0].mxu0
        %v3821 = vadd.f32 0.0, %v3820
        %3822 = vmatprep.mubr.f32.mxu0 0.0
        %3823 = vmatmul.mubr.f32.gmra.mrb[0].mxu0 %v3750
        %v3824 = vpop.f32.mrb[0].mxu0
        %v3825 = vadd.f32 0.0, %v3824
        %v3826 = vpop.f32.mrb[0].mxu0
        %v3827 = vadd.f32 0.0, %v3826
        %3828 = vdwg.mxu0
        %3829 = vmatprep.subr.mxu0 0.0
        %3830 = vmatpush1.msra.mxu0 %v3734
        %3831 = vmatprep.subr.mxu0 0.0
        %3832 = vmatpush1.msra.mxu0 %v3737
        %3833 = vmatprep.subr.mxu0 0.0
        %3834 = vmatpush1.msra.mxu0 %v3740
        %3835 = vmatprep.subr.mxu0 0.0
        %3836 = vmatpush1.msra.mxu0 %v3743
        %3837 = vmatprep.subr.mxu0 0.0
        %3838 = vmatpush1.msra.mxu0 0.0
        %3839 = vmatprep.subr.mxu0 0.0
        %3840 = vmatpush1.msra.mxu0 0.0
        %3841 = vmatprep.subr.mxu0 0.0
        %3842 = vmatpush1.msra.mxu0 0.0
        %3843 = vmatprep.subr.mxu0 0.0
        %3844 = vmatpush1.msra.mxu0 0.0
        %3845 = vmatprep.subr.mxu0 0.0
        %3846 = vmatpush1.msra.mxu0 0.0
        %3847 = vmatprep.subr.mxu0 0.0
        %3848 = vmatpush1.msra.mxu0 0.0
        %3849 = vmatprep.subr.mxu0 0.0
        %3850 = vmatpush1.msra.mxu0 0.0
        %3851 = vmatprep.subr.mxu0 0.0
        %3852 = vmatpush1.msra.mxu0 0.0
        %3853 = vmatprep.subr.mxu0 0.0
        %3854 = vmatpush1.msra.mxu0 0.0
        %3855 = vmatprep.subr.mxu0 0.0
        %3856 = vmatpush1.msra.mxu0 0.0
        %3857 = vmatprep.subr.mxu0 0.0
        %3858 = vmatpush1.msra.mxu0 0.0
        %3859 = vmatprep.subr.mxu0 0.0
        %3860 = vmatpush1.msra.mxu0 0.0
        %3861 = vmatprep.subr.mxu0 0.0
        %3862 = vmatpush1.msra.mxu0 0.0
        %3863 = vmatprep.subr.mxu0 0.0
        %3864 = vmatpush1.msra.mxu0 0.0
        %3865 = vmatprep.subr.mxu0 0.0
        %3866 = vmatpush1.msra.mxu0 0.0
        %3867 = vmatprep.subr.mxu0 0.0
        %3868 = vmatpush1.msra.mxu0 0.0
        %3869 = vmatprep.subr.mxu0 0.0
        %3870 = vmatpush1.msra.mxu0 0.0
        %3871 = vmatprep.subr.mxu0 0.0
        %3872 = vmatpush1.msra.mxu0 0.0
        %3873 = vmatprep.subr.mxu0 0.0
        %3874 = vmatpush1.msra.mxu0 0.0
        %3875 = vmatprep.subr.mxu0 0.0
        %3876 = vmatpush1.msra.mxu0 0.0
        %3877 = vmatprep.subr.mxu0 0.0
        %3878 = vmatpush1.msra.mxu0 0.0
        %3879 = vmatprep.subr.mxu0 0.0
        %3880 = vmatpush1.msra.mxu0 0.0
        %3881 = vmatprep.subr.mxu0 0.0
        %3882 = vmatpush1.msra.mxu0 0.0
        %3883 = vmatprep.subr.mxu0 0.0
        %3884 = vmatpush1.msra.mxu0 0.0
        %3885 = vmatprep.subr.mxu0 0.0
        %3886 = vmatpush1.msra.mxu0 0.0
        %3887 = vmatprep.subr.mxu0 0.0
        %3888 = vmatpush1.msra.mxu0 0.0
        %3889 = vmatprep.subr.mxu0 0.0
        %3890 = vmatpush1.msra.mxu0 0.0
        %3891 = vmatprep.subr.mxu0 0.0
        %3892 = vmatpush1.msra.mxu0 0.0
        %3893 = vmatprep.mubr.f32.mxu0 0.0
        %3894 = vmatmul.mubr.f32.gmra.mrb[0].mxu0 %v3747
        %v3895 = vpop.f32.mrb[0].mxu0
        %v3896 = vadd.f32 0.0, %v3895
        %v3897 = vpop.f32.mrb[0].mxu0
        %3898 = vmatprep.mubr.f32.mxu0 0.0
        %3899 = vmatmul.mubr.f32.gmra.mrb[0].mxu0 %v3750
        %v3900 = vpop.f32.mrb[0].mxu0
        %v3901 = vadd.f32 0.0, %v3900
        %v3902 = vpop.f32.mrb[0].mxu0
        %3903 = vdwg.mxu0
        %3904 = vst [vmem:[#allocation2 + $0x8] sm:$0xff] %v3819
        %3905 = vst [vmem:[#allocation2 + $0x10] sm:$0xff] %v3821
        %3906 = vst.msk [vmem:[#allocation2 + $0x18] sm:$0xff] %vm993, %v3896
        %3907 = vst [vmem:[#allocation2 + $0x30] sm:$0x1] %v3825
        %3908 = vst [vmem:[#allocation2 + $0x38] sm:$0x1] %v3827
        %vm3909 = vcmask 548864
        %3910 = vst.msk [vmem:[#allocation2 + $0x40] sm:$0x1] %vm3909, %v3901
        %v3911 = vld [vmem:[#allocation3] sm:$0x1]
        %3913 = vset.pattern.permute.xlu0 0
        %3914 = vperm.xlu0 %3913, %v3911
        %v3915 = vpop.permute.xlu0 %3914
        %v3917 = vlaneseq
        %v3918 = vshrl.u32 %v3917, 7
        %v3919 = vsub.s32 0, %v3918
        %v3920 = vrot.slane %v3915, %v3919
        %v3921 = vld [vmem:[#allocation2] ss:$8 sm:$0xf]
        %v3922 = vadd.f32 %v3920, %v3921
        %s3923 = scalar_lea.vmem [#allocation2], 1
        %v3924 = vld [vmem:[%s3923] ss:$8 sm:$0xf]
        %3926 = vrot.lane.b32.xlu0 %v3924, 127
        %v3927 = vpop.permute.xlu0 %3926
        %v3928 = vrot.slane %v3927, 1
        %v3929 = vsel %vm1220, %v3927, %v3928
        %v3931 = vadd.f32 %v3922, %v3929
        %s3932 = scalar_lea.vmem [#allocation2], 2
        %v3933 = vld [vmem:[%s3932] ss:$8 sm:$0xf]
        %3935 = vrot.lane.b32.xlu0 %v3933, 126
        %v3936 = vpop.permute.xlu0 %3935
        %v3937 = vrot.slane %v3936, 1
        %v3938 = vsel %vm1329, %v3936, %v3937
        %v3940 = vadd.f32 %v3931, %v3938
        %s3941 = scalar_lea.vmem [#allocation2], 3
        %v3942 = vld [vmem:[%s3941] ss:$8 sm:$0xf]
        %3944 = vrot.lane.b32.xlu0 %v3942, 110
        %v3945 = vpop.permute.xlu0 %3944
        %v3946 = vrot.slane %v3945, 1
        %v3947 = vsel %vm1438, %v3945, %v3946
        %v3949 = vadd.f32 %v3940, %v3947
        %s3950 = scalar_lea.vmem [#allocation2], 12
        %v3951 = vld [vmem:[%s3950] ss:$8 sm:$0x7]
        %3953 = vrot.lane.b32.xlu0 %v3951, 109
        %v3954 = vpop.permute.xlu0 %3953
        %v3955 = vrot.slane %v3954, 7
        %v3956 = vsel %vm1531, %v3955, %v3954
        %v3958 = vadd.f32 %v3949, %v3956
        %s3959 = scalar_lea.vmem [#allocation2], 13
        %v3960 = vld [vmem:[%s3959] ss:$8 sm:$0x7]
        %3962 = vrot.lane.b32.xlu0 %v3960, 108
        %v3963 = vpop.permute.xlu0 %3962
        %v3964 = vrot.slane %v3963, 7
        %v3965 = vsel %vm1620, %v3964, %v3963
        %v3967 = vadd.f32 %v3958, %v3965
        %s3968 = scalar_lea.vmem [#allocation2], 14
        %v3969 = vld [vmem:[%s3968] ss:$8 sm:$0x7]
        %3971 = vrot.lane.b32.xlu0 %v3969, 92
        %v3972 = vpop.permute.xlu0 %3971
        %v3973 = vrot.slane %v3972, 7
        %v3974 = vsel %vm1709, %v3973, %v3972
        %v3976 = vadd.f32 %v3967, %v3974
        %s3977 = scalar_lea.vmem [#allocation2], 15
        %v3978 = vld [vmem:[%s3977] ss:$8 sm:$0x7]
        %3980 = vrot.lane.b32.xlu0 %v3978, 91
        %v3981 = vpop.permute.xlu0 %3980
        %v3982 = vrot.slane %v3981, 7
        %v3983 = vsel %vm1798, %v3982, %v3981
        %v3985 = vadd.f32 %v3976, %v3983
        %s3986 = scalar_lea.vmem [#allocation2], 48
        %v3987 = vld [vmem:[%s3986] ss:$8 sm:$0x7]
        %3989 = vrot.lane.b32.xlu0 %v3987, 90
        %v3990 = vpop.permute.xlu0 %3989
        %v3991 = vrot.slane %v3990, 7
        %v3992 = vsel %vm1887, %v3991, %v3990
        %v3994 = vadd.f32 %v3985, %v3992
        %v3995 = vxor.u32 %v3994, 2147483648
        %v3996 = vmul.f32 %v3995, 1.442695
        %v3997 = vpow.pop %v3996
        %v3998 = vadd.f32 %v3997, 1.0
        %v3999 = vrcp.pop %v3998
        %v4000 = vmul.f32 1.0, %v3999
        %4002 = vrot.lane.b32.xlu0 %v4000, 19
        %v4003 = vpop.permute.xlu0 %4002
        %v4004 = vrot.slane %v4003, 1
        %v4005 = vsel %vm2008, %v4003, %v4004
        %v4007 = vsel %vm309, %v4005, 0.0
        %v4008 = vlaneseq
        %vm4009 = vcmp.ge.s32.totalorder %v4008, 0
        %vm4010 = vcmp.lt.s32.totalorder %v4008, 324
        %vm4011 = vmand %vm4009, %vm4010
        %4012 = vst.msk [vmem:[%s300] sm:$0x7] %vm4011, %v4007
        %s4013 = sand.u32 %s205, 1
        %s4014 = scalar_lea.sflag [#allocation5], %s4013
        %s4015 = sand.u32 %s205, 1
        %s4016 = smul.addr %s4015, 3
        %s4017 = scalar_lea.vmem [#allocation4], %s4016
        // Predicated region
        $region53: #{tpu_custom_call.1} parent=51 // pred_check
          %p4018 = pneg %p215
        $region54: #{tpu_custom_call.1} parent=51 // pred_check_branch
          %4020 = sbr.rel (%p4018) target = $region56
        $region55: #{tpu_custom_call.1} parent=51 // pred_region
          %s4022 = ssub.s32 48, 48
          %4023 = vsyncadd %s4014, %s4022
          %s4024 = smul.addr %s24, 3
          %s4025 = smul.addr %s4024, 16
          %s4026 = scalar_lea.hbm %s8, %s4025
          %s4028 = sshll.u32 %s4017, 4
          %s4029 = int_to_ptr.vmem [resolvable:$true] %s4028
          %4031 = dma.vmem_to_hbm [thread:$0]  %s4029, 48, %s4026, %s4014
        $region56: #{tpu_custom_call.1} parent=51 // pred_fallthru
          _
      $region52: #{tpu_custom_call.1} parent=5 // pred_fallthru
        _
      %p4032 = scmp.le.s32.totalorder 2, %s19
      // Predicated region
      $region57: #{tpu_custom_call.1} parent=5 // pred_check
        %p4033 = pneg %p4032
      $region58: #{tpu_custom_call.1} parent=5 // pred_check_branch
        %4035 = sbr.rel (%p4033) target = $region60
      $region59: #{tpu_custom_call.1} parent=5 // pred_region
        %s4036 = ssub.s32 %s19, 2
        // Predicated region
        $region61: #{tpu_custom_call.1} parent=59 // pred_check
          %p4037 = pneg %p221
        $region62: #{tpu_custom_call.1} parent=59 // pred_check_branch
          %4039 = sbr.rel (%p4037) target = $region64
        $region63: #{tpu_custom_call.1} parent=59 // pred_region
          %s4040 = sand.u32 %s206, 1
          %s4041 = scalar_lea.sflag [#allocation5], %s4040
          %s4042 = sand.u32 %s206, 1
          %s4043 = smul.addr %s4042, 3
          %s4044 = scalar_lea.vmem [#allocation4], %s4043
          %4045 = dma.done %s4041, 48
        $region64: #{tpu_custom_call.1} parent=59 // pred_fallthru
          _
      $region60: #{tpu_custom_call.1} parent=5 // pred_fallthru
        _
    $region6: #{tpu_custom_call.1} parent=1 // loop_footer
      %s23 = sadd.s32 1, %s19
    $region7: #{tpu_custom_call.1} parent=1 // loop_footer_branch
      %18 = sbr.rel target = $region3
    $region8: #{tpu_custom_call.1} parent=1 // loop_exit
      _
    %4046 = vsyncpa [#allocation5], 1
    %s4047 = scalar_lea.sflag [#allocation5], 1
    %4048 = vsyncpa %s4047, 1

</llo_original>
